<compile_context>
chip_gen: v7x
topology: tpu7x:2x2x1
jax: 0.10.0
libtpu: 0.0.40
codegen_flags: <defaults>
</compile_context>

<pallas_src>
import functools
import math

import jax
import jax.numpy as jnp
from jax.experimental import pallas as pl
from jax.experimental.pallas import tpu as pltpu


# ------------------------------- config --------------------------------------
CONFIG = dict(
    num_hidden_layers=2,
    hidden_size=32,
    num_attention_heads=4,
    intermediate_size=64,
    max_position_embeddings=16,
    layer_norm_eps=1e-12,
    hidden_act="gelu_new",        # ACT2FN['gelu_new'] (tanh GELU)
    output_hidden_states=True,
    output_attentions=False,
)

LANES = 128                       # slab lane width (native TPU lane count)


# ------------------------------ slab packing ----------------------------------
def _pad_to_lanes(arr2d):
    arr2d = jnp.asarray(arr2d, jnp.float32)
    r, c = arr2d.shape
    assert c <= LANES, f"parameter wider than {LANES} lanes: {arr2d.shape}"
    if c == LANES:
        return arr2d
    return jnp.zeros((r, LANES), jnp.float32).at[:, :c].set(arr2d)


class _SlabBuilder:
    """Stacks 2-D arrays into one (R, 128) f32 slab + a static {name: (row, nrows, ncols)} layout."""

    def __init__(self):
        self._parts = []
        self.layout = {}
        self._nrows = 0

    def add(self, name, arr2d, align=1):
        pad = (-self._nrows) % align
        if pad:
            self._parts.append(jnp.zeros((pad, LANES), jnp.float32))
            self._nrows += pad
        r, c = arr2d.shape
        self._parts.append(_pad_to_lanes(arr2d))
        self.layout[name] = (self._nrows, r, c)
        self._nrows += r

    def build(self):
        pad = (-self._nrows) % 8                 # keep sublane-tiled total height
        if pad:
            self._parts.append(jnp.zeros((pad, LANES), jnp.float32))
            self._nrows += pad
        return jnp.concatenate(self._parts, axis=0), dict(self.layout)


# --------------------------- in-kernel math helpers ---------------------------
def _gelu_new(x):
    # ACT2FN['gelu_new']: 0.5*x*(1+tanh(sqrt(2/pi)*(x+0.044715*x^3)))
    c = math.sqrt(2.0 / math.pi)
    return 0.5 * x * (1.0 + jnp.tanh(c * (x + 0.044715 * x * x * x)))


def _erf(x):
    # Abramowitz & Stegun 7.1.26 rational approximation, |err| <= 1.5e-7.
    # TODO(synk): could be shortened if a bundle dump ever shows VALU-bound.
    a1, a2, a3, a4, a5 = 0.254829592, -0.284496736, 1.421413741, -1.453152027, 1.061405429
    pp = 0.3275911
    ax = jnp.abs(x)
    t = 1.0 / (1.0 + pp * ax)
    poly = ((((a5 * t + a4) * t + a3) * t + a2) * t + a1) * t
    y = 1.0 - poly * jnp.exp(-ax * ax)
    return jnp.where(x >= 0.0, y, -y)


def _gelu_exact(x):
    # ACT2FN['gelu'] (erf-based), used by the layerwise adaptor nonlinearity.
    return 0.5 * x * (1.0 + _erf(x * (1.0 / math.sqrt(2.0))))


def _activation(name, x):
    if name == "gelu_new":
        return _gelu_new(x)
    if name == "gelu":
        return _gelu_exact(x)
    if name == "relu":
        return jnp.maximum(x, 0.0)
    if name == "swish":
        return x * jax.nn.sigmoid(x)
    if name == "mish":
        return x * jnp.tanh(jax.nn.softplus(x))
    raise NotImplementedError(f"hidden_act={name!r}")


def _layernorm(x, gamma, beta, eps):
    mean = jnp.mean(x, axis=-1, keepdims=True)
    c = x - mean
    var = jnp.mean(c * c, axis=-1, keepdims=True)        # biased variance (torch LayerNorm)
    return c * jax.lax.rsqrt(var + eps) * gamma + beta


def _adaptor(kb, W, b, w2eff):
    # alpha_i * (w2_i * gelu(V h_kb + c)) with alpha pre-folded into w2eff at pack time.
    a = jnp.dot(kb, W, preferred_element_type=jnp.float32) + b
    return w2eff * _gelu_exact(a)


# ------------------------------- fused kernel ---------------------------------
def _make_encoder_kernel(num_layers, num_heads, eps, hidden_act,
                         w_layout, d_layout, S, H, out_cols):
    hd = H // num_heads

    def kernel(w_ref, d_ref, out_ref):
        def w(name):
            r, n, c = w_layout[name]
            return w_ref[r:r + n, 0:c]

        def d(name):
            r, n, c = d_layout[name]
            return d_ref[r:r + n, 0:c]

        h = d("x")                                          # (S, H), VMEM-resident throughout
        mask_b = jnp.broadcast_to(d("mask"), (S, S))        # hoisted: broadcast once, reused 8x

        layer_outs = []
        for l in range(num_layers):
            pfx = f"l{l}_"

            # ---- layerwise-connection adaptor (idx > 0 only), fused in-kernel ----
            if l > 0:
                add_att = _adaptor(d(f"{pfx}kb_att"), w(f"{pfx}ad_att_W"),
                                   w(f"{pfx}ad_att_b"), w(f"{pfx}ad_att_w2"))
                add_ffn = _adaptor(d(f"{pfx}kb_ffn"), w(f"{pfx}ad_ffn_W"),
                                   w(f"{pfx}ad_ffn_b"), w(f"{pfx}ad_ffn_w2"))
            else:
                add_att = 0.0
                add_ffn = 0.0

            # ---- fused Q|K|V projection (1/sqrt(hd) pre-folded into Wq/bq) -------
            qkv = jnp.dot(h, w(f"{pfx}Wqkv"),
                          preferred_element_type=jnp.float32) + w(f"{pfx}bqkv")   # (S, 3H)

            # ---- multi-head self-attention: static unrolled loop over heads ------
            ctx_heads = []
            for hh in range(num_heads):
                q_h = qkv[:, hh * hd:(hh + 1) * hd]                 # (S, hd), already scaled
                k_h = qkv[:, H + hh * hd:H + (hh + 1) * hd]
                v_h = qkv[:, 2 * H + hh * hd:2 * H + (hh + 1) * hd]
                # Contract on the last dims directly — no transpose materialized.
                scores = jax.lax.dot_general(
                    q_h, k_h, (((1,), (1,)), ((), ())),
                    preferred_element_type=jnp.float32) + mask_b     # (S, S)
                scores = scores - jnp.max(scores, axis=-1, keepdims=True)
                e = jnp.exp(scores)
                probs = e * pl.reciprocal(jnp.sum(e, axis=-1, keepdims=True), approx=True)
                # TODO(synk): head_mask multiplication branch not implemented (head_mask is None).
                ctx_heads.append(jnp.dot(probs, v_h, preferred_element_type=jnp.float32))

            # Heads reassembled lane-contiguous -> single (S,H)@(H,H) output projection.
            ctx = jnp.concatenate(ctx_heads, axis=-1)                # (S, H)
            attn_dense = jnp.dot(ctx, w(f"{pfx}Wo"),
                                 preferred_element_type=jnp.float32) + w(f"{pfx}bo")

            # ---- BertSelfOutput: dense(+adaptor) + residual + LayerNorm ----------
            attention_output = _layernorm(attn_dense + add_att + h,
                                          w(f"{pfx}ln1_g"), w(f"{pfx}ln1_b"), eps)

            # ---- BertIntermediate + BertOutput -----------------------------------
            inter = jnp.dot(attention_output, w(f"{pfx}Wff1"),
                            preferred_element_type=jnp.float32) + w(f"{pfx}bff1")
            inter = _activation(hidden_act, inter)
            ffn_dense = jnp.dot(inter, w(f"{pfx}Wff2"),
                                preferred_element_type=jnp.float32) + w(f"{pfx}bff2")
            layer_out = _layernorm(ffn_dense + add_ffn + attention_output,
                                   w(f"{pfx}ln2_g"), w(f"{pfx}ln2_b"), eps)

            layer_outs.append(layer_out)
            h = layer_out                    # feeds next layer without leaving VMEM

        # Single lane-dense output write (pad to out_cols lanes -> unmasked store).
        pad_cols = out_cols - num_layers * H
        if pad_cols:
            layer_outs = layer_outs + [jnp.zeros((S, pad_cols), jnp.float32)]
        out_ref[...] = jnp.concatenate(layer_outs, axis=-1)

    return kernel


# ------------------------------- params --------------------------------------
def init_params(key, config):
    H = config["hidden_size"]
    I = config["intermediate_size"]
    P = config["max_position_embeddings"]

    def lin(k, din, dout, scale=0.05):
        kw, kb = jax.random.split(k)
        W = jax.random.normal(kw, (din, dout), jnp.float32) * scale   # stored (in, out)
        b = jax.random.normal(kb, (dout,), jnp.float32) * 0.01
        return W, b

    layers = []
    for idx in range(config["num_hidden_layers"]):
        key, *ks = jax.random.split(key, 16)
        p = {}
        p["Wq"], p["bq"] = lin(ks[0], H, H)
        p["Wk"], p["bk"] = lin(ks[1], H, H)
        p["Wv"], p["bv"] = lin(ks[2], H, H)
        p["Wo"], p["bo"] = lin(ks[3], H, H)
        p["ln1_g"] = jnp.ones((H,), jnp.float32)
        p["ln1_b"] = jnp.zeros((H,), jnp.float32)
        p["Wff1"], p["bff1"] = lin(ks[4], H, I)
        p["Wff2"], p["bff2"] = lin(ks[5], I, H)
        p["ln2_g"] = jnp.ones((H,), jnp.float32)
        p["ln2_b"] = jnp.zeros((H,), jnp.float32)
        if idx > 0:   # layerwise-connection adaptor (torch: idx > 0)
            p["ad_att_W"], p["ad_att_b"] = lin(ks[6], H, H)
            p["ad_ffn_W"], p["ad_ffn_b"] = lin(ks[7], H, H)
            p["ad_att_w2"] = jax.random.uniform(ks[8], (P, H), jnp.float32)
            p["ad_ffn_w2"] = jax.random.uniform(ks[9], (P, H), jnp.float32)
            p["ad_att_alpha"] = jax.random.uniform(ks[10], (P,), jnp.float32)
            p["ad_ffn_alpha"] = jax.random.uniform(ks[11], (P,), jnp.float32)
        layers.append(p)
    return layers


def pack_encoder_params(layers, S, config):
    """One-time repack of ALL encoder weights into a single (R, 128) f32 slab:
    fuse Q|K|V, fold the attention scale into Wq/bq, fold adaptor alpha into
    weight2 (pre-sliced to the S live rows), reshape 1-D params to (1, N)."""
    H = config["hidden_size"]
    heads = config["num_attention_heads"]
    hd = H // heads
    scale = 1.0 / math.sqrt(hd)
    P = config["max_position_embeddings"]
    assert S <= P, "sequence length must not exceed max_position_embeddings"

    sb = _SlabBuilder()
    for i, p in enumerate(layers):
        pfx = f"l{i}_"
        Wqkv = jnp.concatenate([p["Wq"] * scale, p["Wk"], p["Wv"]], axis=1)       # (H, 3H)
        bqkv = jnp.concatenate([p["bq"] * scale, p["bk"], p["bv"]]).reshape(1, 3 * H)
        sb.add(pfx + "Wqkv", Wqkv, align=8)
        sb.add(pfx + "Wo", p["Wo"], align=8)
        sb.add(pfx + "Wff1", p["Wff1"], align=8)
        sb.add(pfx + "Wff2", p["Wff2"], align=8)
        sb.add(pfx + "bqkv", bqkv)
        sb.add(pfx + "bo", p["bo"].reshape(1, H))
        sb.add(pfx + "ln1_g", p["ln1_g"].reshape(1, H))
        sb.add(pfx + "ln1_b", p["ln1_b"].reshape(1, H))
        sb.add(pfx + "bff1", p["bff1"].reshape(1, -1))
        sb.add(pfx + "bff2", p["bff2"].reshape(1, H))
        sb.add(pfx + "ln2_g", p["ln2_g"].reshape(1, H))
        sb.add(pfx + "ln2_b", p["ln2_b"].reshape(1, H))
        if i > 0:
            for typ in ("att", "ffn"):
                sb.add(f"{pfx}ad_{typ}_W", p[f"ad_{typ}_W"], align=8)
                sb.add(f"{pfx}ad_{typ}_b", p[f"ad_{typ}_b"].reshape(1, H))
                w2eff = p[f"ad_{typ}_alpha"][:S].reshape(S, 1) * p[f"ad_{typ}_w2"][:S]
                sb.add(f"{pfx}ad_{typ}_w2", w2eff, align=8)                        # (S, H)
    return sb.build()                                    # (weight_slab, weight_layout)


def _prep_kb(kb, S):
    """KB hidden states (1, S_kb, H) -> the S rows the adaptor output is added on
    (equivalent to the torch pad-to-P / slice-back for S <= max_position_embeddings)."""
    kb2d = kb[0]                                    # batch == 1 (torch squeezes dim 0)
    S_kb, H = kb2d.shape
    if S_kb == S:
        return kb2d
    if S_kb > S:
        return kb2d[:S]
    return jnp.zeros((S, H), kb2d.dtype).at[:S_kb].set(kb2d)


# ------------------------------- model ---------------------------------------
def bert_encoder_forward(weight_slab, hidden_states, attention_mask, head_mask,
                         layerwise_outputs, *, config, weight_layout):
    B, S, H = hidden_states.shape
    assert B == 1, "layerwise adaptor assumes batch == 1 (torch squeezes dim 0)"
    L = config["num_hidden_layers"]
    heads = config["num_attention_heads"]
    eps = config["layer_norm_eps"]
    act = config["hidden_act"]

    for hm in head_mask:
        if hm is not None:
            # TODO(synk): head_mask multiplication branch not implemented (always None here).
            raise NotImplementedError("head_mask is not supported")
    if config["output_attentions"]:
        # TODO(synk): attention-prob outputs are not returned from the fused kernel.
        raise NotImplementedError("output_attentions=True is not supported")

    if attention_mask is None:
        mask_row = jnp.zeros((1, S), jnp.float32)
    else:
        assert attention_mask.size == S, \
            "expected a (B,1,1,S)-style additive mask broadcast over query rows"
        mask_row = attention_mask.reshape(1, S).astype(jnp.float32)

    # Pack ALL runtime tensors into one small dynamic slab (1 DMA instead of ~5).
    db = _SlabBuilder()
    db.add("x", hidden_states.reshape(S, H), align=8)
    db.add("mask", mask_row)
    for i in range(1, L):
        lw = layerwise_outputs[i - 1]
        db.add(f"l{i}_kb_att", _prep_kb(lw["att"], S), align=8)
        db.add(f"l{i}_kb_ffn", _prep_kb(lw["ffn"], S), align=8)
    dyn_slab, dyn_layout = db.build()

    out_cols = ((L * H + LANES - 1) // LANES) * LANES            # lane-dense output width

    kernel = _make_encoder_kernel(L, heads, eps, act,
                                  weight_layout, dyn_layout, S, H, out_cols)
    vmem = lambda: pl.BlockSpec(memory_space=pltpu.MemorySpace.VMEM)
    merged = pl.pallas_call(
        kernel,
        out_shape=jax.ShapeDtypeStruct((S, out_cols), jnp.float32),
        in_specs=[vmem(), vmem()],          # two whole-array VMEM inputs, no grid
        out_specs=vmem(),
    )(weight_slab, dyn_slab)

    outs3d = tuple(merged[:, l * H:(l + 1) * H].reshape(B, S, H) for l in range(L))
    outputs = (outs3d[-1],)
    if config["output_hidden_states"]:
        outputs = outputs + ((hidden_states,) + outs3d,)
    return outputs


# -------------------------------- main ----------------------------------------
if __name__ == "__main__":
    cfg = CONFIG
    B, S, H = 1, 8, cfg["hidden_size"]

    key = jax.random.PRNGKey(0)
    k_param, k_x, k_att, k_ffn = jax.random.split(key, 4)

    layers = init_params(k_param, cfg)
    weight_slab, weight_layout = pack_encoder_params(layers, S, cfg)

    hidden_states = jax.random.normal(k_x, (B, S, H), jnp.float32)

    # HF-style additive attention mask: last 2 tokens masked out.
    valid = jnp.array([1, 1, 1, 1, 1, 1, 0, 0], jnp.float32)
    attention_mask = ((1.0 - valid) * -10000.0).reshape(1, 1, 1, S)

    head_mask = [None] * cfg["num_hidden_layers"]

    # layerwise_outputs[i-1] feeds layer i (i > 0): KB hidden states for the adaptor.
    layerwise_outputs = [
        {"att": jax.random.normal(jax.random.fold_in(k_att, i), (1, S, H), jnp.float32),
         "ffn": jax.random.normal(jax.random.fold_in(k_ffn, i), (1, S, H), jnp.float32)}
        for i in range(cfg["num_hidden_layers"] - 1)
    ]

    fwd = jax.jit(functools.partial(bert_encoder_forward,
                                    config=cfg, weight_layout=weight_layout))
    outputs = fwd(weight_slab, hidden_states, attention_mask, head_mask, layerwise_outputs)

    final = jax.block_until_ready(outputs[0])
    assert final.shape == (B, S, H)
    assert len(outputs[1]) == cfg["num_hidden_layers"] + 1
    print("KERNEL_OK")
</pallas_src>

<mosaic_0001>
module attributes {stable_mosaic.version = 11 : i64} {
  func.func @kernel(%arg0: memref<432x128xf32, #tpu.memory_space<vmem>>, %arg1: memref<32x128xf32, #tpu.memory_space<vmem>>, %arg2: memref<8x128xf32, #tpu.memory_space<vmem>>) attributes {dimension_semantics = [], scalar_prefetch = 0 : i64, scratch_operands = 0 : i64, tpu.core_type = #tpu.core_type<tc>} {
    %c0 = arith.constant 0 : index
    %c0_0 = arith.constant 0 : index
    %0 = vector.load %arg1[%c0, %c0_0] : memref<32x128xf32, #tpu.memory_space<vmem>>, vector<8x32xf32>
    %c8 = arith.constant 8 : index
    %c0_1 = arith.constant 0 : index
    %1 = vector.load %arg1[%c8, %c0_1] : memref<32x128xf32, #tpu.memory_space<vmem>>, vector<1x8xf32>
    %2 = vector.shape_cast %1 : vector<1x8xf32> to vector<1x8xf32>
    %3 = vector.broadcast %2 : vector<1x8xf32> to vector<8x8xf32>
    %c0_2 = arith.constant 0 : index
    %c0_3 = arith.constant 0 : index
    %4 = vector.load %arg0[%c0_2, %c0_3] : memref<432x128xf32, #tpu.memory_space<vmem>>, vector<32x96xf32>
    %cst = arith.constant dense<0.000000e+00> : vector<8x96xf32>
    %5 = tpu.matmul %0, %4, %cst {dimension_numbers = #tpu.dot_dimension_numbers<[1], [0], [0], [1], [0, 0, 1, 1], [], []>} : vector<8x32xf32>, vector<32x96xf32>, vector<8x96xf32> -> vector<8x96xf32>
    %c160 = arith.constant 160 : index
    %c0_4 = arith.constant 0 : index
    %6 = vector.load %arg0[%c160, %c0_4] : memref<432x128xf32, #tpu.memory_space<vmem>>, vector<1x96xf32>
    %7 = vector.broadcast %6 : vector<1x96xf32> to vector<8x96xf32>
    %8 = arith.addf %5, %7 : vector<8x96xf32>
    %9 = vector.extract_strided_slice %8 {offsets = [0, 0], sizes = [8, 8], strides = [1, 1]} : vector<8x96xf32> to vector<8x8xf32>
    %10 = vector.extract_strided_slice %8 {offsets = [0, 32], sizes = [8, 8], strides = [1, 1]} : vector<8x96xf32> to vector<8x8xf32>
    %11 = vector.extract_strided_slice %8 {offsets = [0, 64], sizes = [8, 8], strides = [1, 1]} : vector<8x96xf32> to vector<8x8xf32>
    %cst_5 = arith.constant dense<0.000000e+00> : vector<8x8xf32>
    %12 = tpu.matmul %9, %10, %cst_5 {dimension_numbers = #tpu.dot_dimension_numbers<[1], [1], [0], [0], [0, 0, 1, 0], [], []>} : vector<8x8xf32>, vector<8x8xf32>, vector<8x8xf32> -> vector<8x8xf32>
    %13 = arith.addf %12, %3 : vector<8x8xf32>
    %cst_6 = arith.constant dense<0xFF800000> : vector<8xf32>
    %14 = vector.multi_reduction <maximumf>, %13, %cst_6 [1] : vector<8x8xf32> to vector<8xf32>
    %15 = vector.shape_cast %14 : vector<8xf32> to vector<8x1xf32>
    %16 = vector.broadcast %15 : vector<8x1xf32> to vector<8x8xf32>
    %17 = arith.subf %13, %16 : vector<8x8xf32>
    %18 = math.exp %17 : vector<8x8xf32>
    %cst_7 = arith.constant dense<0.000000e+00> : vector<8xf32>
    %19 = vector.multi_reduction <add>, %18, %cst_7 [1] : vector<8x8xf32> to vector<8xf32>
    %20 = vector.shape_cast %19 : vector<8xf32> to vector<8x1xf32>
    %21 = tpu.reciprocal %20 {approx = true} : vector<8x1xf32> -> vector<8x1xf32>
    %22 = vector.broadcast %21 : vector<8x1xf32> to vector<8x8xf32>
    %23 = arith.mulf %18, %22 : vector<8x8xf32>
    %cst_8 = arith.constant dense<0.000000e+00> : vector<8x8xf32>
    %24 = tpu.matmul %23, %11, %cst_8 {dimension_numbers = #tpu.dot_dimension_numbers<[1], [0], [0], [1], [0, 0, 1, 1], [], []>} : vector<8x8xf32>, vector<8x8xf32>, vector<8x8xf32> -> vector<8x8xf32>
    %25 = vector.extract_strided_slice %8 {offsets = [0, 8], sizes = [8, 8], strides = [1, 1]} : vector<8x96xf32> to vector<8x8xf32>
    %26 = vector.extract_strided_slice %8 {offsets = [0, 40], sizes = [8, 8], strides = [1, 1]} : vector<8x96xf32> to vector<8x8xf32>
    %27 = vector.extract_strided_slice %8 {offsets = [0, 72], sizes = [8, 8], strides = [1, 1]} : vector<8x96xf32> to vector<8x8xf32>
    %cst_9 = arith.constant dense<0.000000e+00> : vector<8x8xf32>
    %28 = tpu.matmul %25, %26, %cst_9 {dimension_numbers = #tpu.dot_dimension_numbers<[1], [1], [0], [0], [0, 0, 1, 0], [], []>} : vector<8x8xf32>, vector<8x8xf32>, vector<8x8xf32> -> vector<8x8xf32>
    %29 = arith.addf %28, %3 : vector<8x8xf32>
    %cst_10 = arith.constant dense<0xFF800000> : vector<8xf32>
    %30 = vector.multi_reduction <maximumf>, %29, %cst_10 [1] : vector<8x8xf32> to vector<8xf32>
    %31 = vector.shape_cast %30 : vector<8xf32> to vector<8x1xf32>
    %32 = vector.broadcast %31 : vector<8x1xf32> to vector<8x8xf32>
    %33 = arith.subf %29, %32 : vector<8x8xf32>
    %34 = math.exp %33 : vector<8x8xf32>
    %cst_11 = arith.constant dense<0.000000e+00> : vector<8xf32>
    %35 = vector.multi_reduction <add>, %34, %cst_11 [1] : vector<8x8xf32> to vector<8xf32>
    %36 = vector.shape_cast %35 : vector<8xf32> to vector<8x1xf32>
    %37 = tpu.reciprocal %36 {approx = true} : vector<8x1xf32> -> vector<8x1xf32>
    %38 = vector.broadcast %37 : vector<8x1xf32> to vector<8x8xf32>
    %39 = arith.mulf %34, %38 : vector<8x8xf32>
    %cst_12 = arith.constant dense<0.000000e+00> : vector<8x8xf32>
    %40 = tpu.matmul %39, %27, %cst_12 {dimension_numbers = #tpu.dot_dimension_numbers<[1], [0], [0], [1], [0, 0, 1, 1], [], []>} : vector<8x8xf32>, vector<8x8xf32>, vector<8x8xf32> -> vector<8x8xf32>
    %41 = vector.extract_strided_slice %8 {offsets = [0, 16], sizes = [8, 8], strides = [1, 1]} : vector<8x96xf32> to vector<8x8xf32>
    %42 = vector.extract_strided_slice %8 {offsets = [0, 48], sizes = [8, 8], strides = [1, 1]} : vector<8x96xf32> to vector<8x8xf32>
    %43 = vector.extract_strided_slice %8 {offsets = [0, 80], sizes = [8, 8], strides = [1, 1]} : vector<8x96xf32> to vector<8x8xf32>
    %cst_13 = arith.constant dense<0.000000e+00> : vector<8x8xf32>
    %44 = tpu.matmul %41, %42, %cst_13 {dimension_numbers = #tpu.dot_dimension_numbers<[1], [1], [0], [0], [0, 0, 1, 0], [], []>} : vector<8x8xf32>, vector<8x8xf32>, vector<8x8xf32> -> vector<8x8xf32>
    %45 = arith.addf %44, %3 : vector<8x8xf32>
    %cst_14 = arith.constant dense<0xFF800000> : vector<8xf32>
    %46 = vector.multi_reduction <maximumf>, %45, %cst_14 [1] : vector<8x8xf32> to vector<8xf32>
    %47 = vector.shape_cast %46 : vector<8xf32> to vector<8x1xf32>
    %48 = vector.broadcast %47 : vector<8x1xf32> to vector<8x8xf32>
    %49 = arith.subf %45, %48 : vector<8x8xf32>
    %50 = math.exp %49 : vector<8x8xf32>
    %cst_15 = arith.constant dense<0.000000e+00> : vector<8xf32>
    %51 = vector.multi_reduction <add>, %50, %cst_15 [1] : vector<8x8xf32> to vector<8xf32>
    %52 = vector.shape_cast %51 : vector<8xf32> to vector<8x1xf32>
    %53 = tpu.reciprocal %52 {approx = true} : vector<8x1xf32> -> vector<8x1xf32>
    %54 = vector.broadcast %53 : vector<8x1xf32> to vector<8x8xf32>
    %55 = arith.mulf %50, %54 : vector<8x8xf32>
    %cst_16 = arith.constant dense<0.000000e+00> : vector<8x8xf32>
    %56 = tpu.matmul %55, %43, %cst_16 {dimension_numbers = #tpu.dot_dimension_numbers<[1], [0], [0], [1], [0, 0, 1, 1], [], []>} : vector<8x8xf32>, vector<8x8xf32>, vector<8x8xf32> -> vector<8x8xf32>
    %57 = vector.extract_strided_slice %8 {offsets = [0, 24], sizes = [8, 8], strides = [1, 1]} : vector<8x96xf32> to vector<8x8xf32>
    %58 = vector.extract_strided_slice %8 {offsets = [0, 56], sizes = [8, 8], strides = [1, 1]} : vector<8x96xf32> to vector<8x8xf32>
    %59 = vector.extract_strided_slice %8 {offsets = [0, 88], sizes = [8, 8], strides = [1, 1]} : vector<8x96xf32> to vector<8x8xf32>
    %cst_17 = arith.constant dense<0.000000e+00> : vector<8x8xf32>
    %60 = tpu.matmul %57, %58, %cst_17 {dimension_numbers = #tpu.dot_dimension_numbers<[1], [1], [0], [0], [0, 0, 1, 0], [], []>} : vector<8x8xf32>, vector<8x8xf32>, vector<8x8xf32> -> vector<8x8xf32>
    %61 = arith.addf %60, %3 : vector<8x8xf32>
    %cst_18 = arith.constant dense<0xFF800000> : vector<8xf32>
    %62 = vector.multi_reduction <maximumf>, %61, %cst_18 [1] : vector<8x8xf32> to vector<8xf32>
    %63 = vector.shape_cast %62 : vector<8xf32> to vector<8x1xf32>
    %64 = vector.broadcast %63 : vector<8x1xf32> to vector<8x8xf32>
    %65 = arith.subf %61, %64 : vector<8x8xf32>
    %66 = math.exp %65 : vector<8x8xf32>
    %cst_19 = arith.constant dense<0.000000e+00> : vector<8xf32>
    %67 = vector.multi_reduction <add>, %66, %cst_19 [1] : vector<8x8xf32> to vector<8xf32>
    %68 = vector.shape_cast %67 : vector<8xf32> to vector<8x1xf32>
    %69 = tpu.reciprocal %68 {approx = true} : vector<8x1xf32> -> vector<8x1xf32>
    %70 = vector.broadcast %69 : vector<8x1xf32> to vector<8x8xf32>
    %71 = arith.mulf %66, %70 : vector<8x8xf32>
    %cst_20 = arith.constant dense<0.000000e+00> : vector<8x8xf32>
    %72 = tpu.matmul %71, %59, %cst_20 {dimension_numbers = #tpu.dot_dimension_numbers<[1], [0], [0], [1], [0, 0, 1, 1], [], []>} : vector<8x8xf32>, vector<8x8xf32>, vector<8x8xf32> -> vector<8x8xf32>
    %73 = tpu.concatenate %24, %40, %56, %72 in 1 : vector<8x8xf32>, vector<8x8xf32>, vector<8x8xf32>, vector<8x8xf32> -> vector<8x32xf32>
    %c32 = arith.constant 32 : index
    %c0_21 = arith.constant 0 : index
    %74 = vector.load %arg0[%c32, %c0_21] : memref<432x128xf32, #tpu.memory_space<vmem>>, vector<32x32xf32>
    %cst_22 = arith.constant dense<0.000000e+00> : vector<8x32xf32>
    %75 = tpu.matmul %73, %74, %cst_22 {dimension_numbers = #tpu.dot_dimension_numbers<[1], [0], [0], [1], [0, 0, 1, 1], [], []>} : vector<8x32xf32>, vector<32x32xf32>, vector<8x32xf32> -> vector<8x32xf32>
    %c161 = arith.constant 161 : index
    %c0_23 = arith.constant 0 : index
    %76 = vector.load %arg0[%c161, %c0_23] : memref<432x128xf32, #tpu.memory_space<vmem>>, vector<1x32xf32>
    %77 = vector.broadcast %76 : vector<1x32xf32> to vector<8x32xf32>
    %78 = arith.addf %75, %77 : vector<8x32xf32>
    %cst_24 = arith.constant 0.000000e+00 : f32
    %79 = vector.broadcast %cst_24 : f32 to vector<8x32xf32>
    %80 = arith.addf %78, %79 : vector<8x32xf32>
    %81 = arith.addf %80, %0 : vector<8x32xf32>
    %c162 = arith.constant 162 : index
    %c0_25 = arith.constant 0 : index
    %82 = vector.load %arg0[%c162, %c0_25] : memref<432x128xf32, #tpu.memory_space<vmem>>, vector<1x32xf32>
    %c163 = arith.constant 163 : index
    %c0_26 = arith.constant 0 : index
    %83 = vector.load %arg0[%c163, %c0_26] : memref<432x128xf32, #tpu.memory_space<vmem>>, vector<1x32xf32>
    %cst_27 = arith.constant dense<0.000000e+00> : vector<8xf32>
    %84 = vector.multi_reduction <add>, %81, %cst_27 [1] : vector<8x32xf32> to vector<8xf32>
    %85 = vector.shape_cast %84 : vector<8xf32> to vector<8x1xf32>
    %cst_28 = arith.constant 3.200000e+01 : f32
    %86 = vector.broadcast %cst_28 : f32 to vector<8x1xf32>
    %87 = arith.divf %85, %86 : vector<8x1xf32>
    %88 = vector.broadcast %87 : vector<8x1xf32> to vector<8x32xf32>
    %89 = arith.subf %81, %88 : vector<8x32xf32>
    %90 = arith.mulf %89, %89 : vector<8x32xf32>
    %cst_29 = arith.constant dense<0.000000e+00> : vector<8xf32>
    %91 = vector.multi_reduction <add>, %90, %cst_29 [1] : vector<8x32xf32> to vector<8xf32>
    %92 = vector.shape_cast %91 : vector<8xf32> to vector<8x1xf32>
    %cst_30 = arith.constant 3.200000e+01 : f32
    %93 = vector.broadcast %cst_30 : f32 to vector<8x1xf32>
    %94 = arith.divf %92, %93 : vector<8x1xf32>
    %cst_31 = arith.constant 9.99999996E-13 : f32
    %95 = vector.broadcast %cst_31 : f32 to vector<8x1xf32>
    %96 = arith.addf %94, %95 : vector<8x1xf32>
    %97 = math.rsqrt %96 : vector<8x1xf32>
    %98 = vector.broadcast %97 : vector<8x1xf32> to vector<8x32xf32>
    %99 = arith.mulf %89, %98 : vector<8x32xf32>
    %100 = vector.broadcast %82 : vector<1x32xf32> to vector<8x32xf32>
    %101 = arith.mulf %99, %100 : vector<8x32xf32>
    %102 = vector.broadcast %83 : vector<1x32xf32> to vector<8x32xf32>
    %103 = arith.addf %101, %102 : vector<8x32xf32>
    %c64 = arith.constant 64 : index
    %c0_32 = arith.constant 0 : index
    %104 = vector.load %arg0[%c64, %c0_32] : memref<432x128xf32, #tpu.memory_space<vmem>>, vector<32x64xf32>
    %cst_33 = arith.constant dense<0.000000e+00> : vector<8x64xf32>
    %105 = tpu.matmul %103, %104, %cst_33 {dimension_numbers = #tpu.dot_dimension_numbers<[1], [0], [0], [1], [0, 0, 1, 1], [], []>} : vector<8x32xf32>, vector<32x64xf32>, vector<8x64xf32> -> vector<8x64xf32>
    %c164 = arith.constant 164 : index
    %c0_34 = arith.constant 0 : index
    %106 = vector.load %arg0[%c164, %c0_34] : memref<432x128xf32, #tpu.memory_space<vmem>>, vector<1x64xf32>
    %107 = vector.broadcast %106 : vector<1x64xf32> to vector<8x64xf32>
    %108 = arith.addf %105, %107 : vector<8x64xf32>
    %cst_35 = arith.constant 5.000000e-01 : f32
    %109 = vector.broadcast %cst_35 : f32 to vector<8x64xf32>
    %110 = arith.mulf %109, %108 : vector<8x64xf32>
    %cst_36 = arith.constant 4.471500e-02 : f32
    %111 = vector.broadcast %cst_36 : f32 to vector<8x64xf32>
    %112 = arith.mulf %111, %108 : vector<8x64xf32>
    %113 = arith.mulf %112, %108 : vector<8x64xf32>
    %114 = arith.mulf %113, %108 : vector<8x64xf32>
    %115 = arith.addf %108, %114 : vector<8x64xf32>
    %cst_37 = arith.constant 0.797884583 : f32
    %116 = vector.broadcast %cst_37 : f32 to vector<8x64xf32>
    %117 = arith.mulf %116, %115 : vector<8x64xf32>
    %118 = math.tanh %117 : vector<8x64xf32>
    %cst_38 = arith.constant 1.000000e+00 : f32
    %119 = vector.broadcast %cst_38 : f32 to vector<8x64xf32>
    %120 = arith.addf %119, %118 : vector<8x64xf32>
    %121 = arith.mulf %110, %120 : vector<8x64xf32>
    %c96 = arith.constant 96 : index
    %c0_39 = arith.constant 0 : index
    %122 = vector.load %arg0[%c96, %c0_39] : memref<432x128xf32, #tpu.memory_space<vmem>>, vector<64x32xf32>
    %cst_40 = arith.constant dense<0.000000e+00> : vector<8x32xf32>
    %123 = tpu.matmul %121, %122, %cst_40 {dimension_numbers = #tpu.dot_dimension_numbers<[1], [0], [0], [1], [0, 0, 1, 1], [], []>} : vector<8x64xf32>, vector<64x32xf32>, vector<8x32xf32> -> vector<8x32xf32>
    %c165 = arith.constant 165 : index
    %c0_41 = arith.constant 0 : index
    %124 = vector.load %arg0[%c165, %c0_41] : memref<432x128xf32, #tpu.memory_space<vmem>>, vector<1x32xf32>
    %125 = vector.broadcast %124 : vector<1x32xf32> to vector<8x32xf32>
    %126 = arith.addf %123, %125 : vector<8x32xf32>
    %cst_42 = arith.constant 0.000000e+00 : f32
    %127 = vector.broadcast %cst_42 : f32 to vector<8x32xf32>
    %128 = arith.addf %126, %127 : vector<8x32xf32>
    %129 = arith.addf %128, %103 : vector<8x32xf32>
    %c166 = arith.constant 166 : index
    %c0_43 = arith.constant 0 : index
    %130 = vector.load %arg0[%c166, %c0_43] : memref<432x128xf32, #tpu.memory_space<vmem>>, vector<1x32xf32>
    %c167 = arith.constant 167 : index
    %c0_44 = arith.constant 0 : index
    %131 = vector.load %arg0[%c167, %c0_44] : memref<432x128xf32, #tpu.memory_space<vmem>>, vector<1x32xf32>
    %cst_45 = arith.constant dense<0.000000e+00> : vector<8xf32>
    %132 = vector.multi_reduction <add>, %129, %cst_45 [1] : vector<8x32xf32> to vector<8xf32>
    %133 = vector.shape_cast %132 : vector<8xf32> to vector<8x1xf32>
    %cst_46 = arith.constant 3.200000e+01 : f32
    %134 = vector.broadcast %cst_46 : f32 to vector<8x1xf32>
    %135 = arith.divf %133, %134 : vector<8x1xf32>
    %136 = vector.broadcast %135 : vector<8x1xf32> to vector<8x32xf32>
    %137 = arith.subf %129, %136 : vector<8x32xf32>
    %138 = arith.mulf %137, %137 : vector<8x32xf32>
    %cst_47 = arith.constant dense<0.000000e+00> : vector<8xf32>
    %139 = vector.multi_reduction <add>, %138, %cst_47 [1] : vector<8x32xf32> to vector<8xf32>
    %140 = vector.shape_cast %139 : vector<8xf32> to vector<8x1xf32>
    %cst_48 = arith.constant 3.200000e+01 : f32
    %141 = vector.broadcast %cst_48 : f32 to vector<8x1xf32>
    %142 = arith.divf %140, %141 : vector<8x1xf32>
    %cst_49 = arith.constant 9.99999996E-13 : f32
    %143 = vector.broadcast %cst_49 : f32 to vector<8x1xf32>
    %144 = arith.addf %142, %143 : vector<8x1xf32>
    %145 = math.rsqrt %144 : vector<8x1xf32>
    %146 = vector.broadcast %145 : vector<8x1xf32> to vector<8x32xf32>
    %147 = arith.mulf %137, %146 : vector<8x32xf32>
    %148 = vector.broadcast %130 : vector<1x32xf32> to vector<8x32xf32>
    %149 = arith.mulf %147, %148 : vector<8x32xf32>
    %150 = vector.broadcast %131 : vector<1x32xf32> to vector<8x32xf32>
    %151 = arith.addf %149, %150 : vector<8x32xf32>
    %c16 = arith.constant 16 : index
    %c0_50 = arith.constant 0 : index
    %152 = vector.load %arg1[%c16, %c0_50] : memref<32x128xf32, #tpu.memory_space<vmem>>, vector<8x32xf32>
    %c336 = arith.constant 336 : index
    %c0_51 = arith.constant 0 : index
    %153 = vector.load %arg0[%c336, %c0_51] : memref<432x128xf32, #tpu.memory_space<vmem>>, vector<32x32xf32>
    %c368 = arith.constant 368 : index
    %c0_52 = arith.constant 0 : index
    %154 = vector.load %arg0[%c368, %c0_52] : memref<432x128xf32, #tpu.memory_space<vmem>>, vector<1x32xf32>
    %c376 = arith.constant 376 : index
    %c0_53 = arith.constant 0 : index
    %155 = vector.load %arg0[%c376, %c0_53] : memref<432x128xf32, #tpu.memory_space<vmem>>, vector<8x32xf32>
    %cst_54 = arith.constant dense<0.000000e+00> : vector<8x32xf32>
    %156 = tpu.matmul %152, %153, %cst_54 {dimension_numbers = #tpu.dot_dimension_numbers<[1], [0], [0], [1], [0, 0, 1, 1], [], []>} : vector<8x32xf32>, vector<32x32xf32>, vector<8x32xf32> -> vector<8x32xf32>
    %157 = vector.broadcast %154 : vector<1x32xf32> to vector<8x32xf32>
    %158 = arith.addf %156, %157 : vector<8x32xf32>
    %cst_55 = arith.constant 5.000000e-01 : f32
    %159 = vector.broadcast %cst_55 : f32 to vector<8x32xf32>
    %160 = arith.mulf %159, %158 : vector<8x32xf32>
    %cst_56 = arith.constant 0.707106769 : f32
    %161 = vector.broadcast %cst_56 : f32 to vector<8x32xf32>
    %162 = arith.mulf %158, %161 : vector<8x32xf32>
    %163 = math.absf %162 : vector<8x32xf32>
    %cst_57 = arith.constant 0.327591091 : f32
    %164 = vector.broadcast %cst_57 : f32 to vector<8x32xf32>
    %165 = arith.mulf %164, %163 : vector<8x32xf32>
    %cst_58 = arith.constant 1.000000e+00 : f32
    %166 = vector.broadcast %cst_58 : f32 to vector<8x32xf32>
    %167 = arith.addf %166, %165 : vector<8x32xf32>
    %cst_59 = arith.constant 1.000000e+00 : f32
    %168 = vector.broadcast %cst_59 : f32 to vector<8x32xf32>
    %169 = arith.divf %168, %167 : vector<8x32xf32>
    %cst_60 = arith.constant 1.06140542 : f32
    %170 = vector.broadcast %cst_60 : f32 to vector<8x32xf32>
    %171 = arith.mulf %170, %169 : vector<8x32xf32>
    %cst_61 = arith.constant -1.45315206 : f32
    %172 = vector.broadcast %cst_61 : f32 to vector<8x32xf32>
    %173 = arith.addf %171, %172 : vector<8x32xf32>
    %174 = arith.mulf %173, %169 : vector<8x32xf32>
    %cst_62 = arith.constant 1.42141378 : f32
    %175 = vector.broadcast %cst_62 : f32 to vector<8x32xf32>
    %176 = arith.addf %174, %175 : vector<8x32xf32>
    %177 = arith.mulf %176, %169 : vector<8x32xf32>
    %cst_63 = arith.constant -0.284496725 : f32
    %178 = vector.broadcast %cst_63 : f32 to vector<8x32xf32>
    %179 = arith.addf %177, %178 : vector<8x32xf32>
    %180 = arith.mulf %179, %169 : vector<8x32xf32>
    %cst_64 = arith.constant 0.254829586 : f32
    %181 = vector.broadcast %cst_64 : f32 to vector<8x32xf32>
    %182 = arith.addf %180, %181 : vector<8x32xf32>
    %183 = arith.mulf %182, %169 : vector<8x32xf32>
    %cst_65 = arith.constant 0.000000e+00 : f32
    %184 = vector.broadcast %cst_65 : f32 to vector<8x32xf32>
    %185 = arith.subf %184, %163 : vector<8x32xf32>
    %186 = arith.mulf %185, %163 : vector<8x32xf32>
    %187 = math.exp %186 : vector<8x32xf32>
    %188 = arith.mulf %183, %187 : vector<8x32xf32>
    %cst_66 = arith.constant 1.000000e+00 : f32
    %189 = vector.broadcast %cst_66 : f32 to vector<8x32xf32>
    %190 = arith.subf %189, %188 : vector<8x32xf32>
    %cst_67 = arith.constant 0.000000e+00 : f32
    %191 = vector.broadcast %cst_67 : f32 to vector<8x32xf32>
    %192 = arith.cmpf oge, %162, %191 : vector<8x32xf32>
    %cst_68 = arith.constant 0.000000e+00 : f32
    %193 = vector.broadcast %cst_68 : f32 to vector<8x32xf32>
    %194 = arith.subf %193, %190 : vector<8x32xf32>
    %195 = arith.select %192, %190, %194 : vector<8x32xi1>, vector<8x32xf32>
    %cst_69 = arith.constant 1.000000e+00 : f32
    %196 = vector.broadcast %cst_69 : f32 to vector<8x32xf32>
    %197 = arith.addf %196, %195 : vector<8x32xf32>
    %198 = arith.mulf %160, %197 : vector<8x32xf32>
    %199 = arith.mulf %155, %198 : vector<8x32xf32>
    %c24 = arith.constant 24 : index
    %c0_70 = arith.constant 0 : index
    %200 = vector.load %arg1[%c24, %c0_70] : memref<32x128xf32, #tpu.memory_space<vmem>>, vector<8x32xf32>
    %c384 = arith.constant 384 : index
    %c0_71 = arith.constant 0 : index
    %201 = vector.load %arg0[%c384, %c0_71] : memref<432x128xf32, #tpu.memory_space<vmem>>, vector<32x32xf32>
    %c416 = arith.constant 416 : index
    %c0_72 = arith.constant 0 : index
    %202 = vector.load %arg0[%c416, %c0_72] : memref<432x128xf32, #tpu.memory_space<vmem>>, vector<1x32xf32>
    %c424 = arith.constant 424 : index
    %c0_73 = arith.constant 0 : index
    %203 = vector.load %arg0[%c424, %c0_73] : memref<432x128xf32, #tpu.memory_space<vmem>>, vector<8x32xf32>
    %cst_74 = arith.constant dense<0.000000e+00> : vector<8x32xf32>
    %204 = tpu.matmul %200, %201, %cst_74 {dimension_numbers = #tpu.dot_dimension_numbers<[1], [0], [0], [1], [0, 0, 1, 1], [], []>} : vector<8x32xf32>, vector<32x32xf32>, vector<8x32xf32> -> vector<8x32xf32>
    %205 = vector.broadcast %202 : vector<1x32xf32> to vector<8x32xf32>
    %206 = arith.addf %204, %205 : vector<8x32xf32>
    %cst_75 = arith.constant 5.000000e-01 : f32
    %207 = vector.broadcast %cst_75 : f32 to vector<8x32xf32>
    %208 = arith.mulf %207, %206 : vector<8x32xf32>
    %cst_76 = arith.constant 0.707106769 : f32
    %209 = vector.broadcast %cst_76 : f32 to vector<8x32xf32>
    %210 = arith.mulf %206, %209 : vector<8x32xf32>
    %211 = math.absf %210 : vector<8x32xf32>
    %cst_77 = arith.constant 0.327591091 : f32
    %212 = vector.broadcast %cst_77 : f32 to vector<8x32xf32>
    %213 = arith.mulf %212, %211 : vector<8x32xf32>
    %cst_78 = arith.constant 1.000000e+00 : f32
    %214 = vector.broadcast %cst_78 : f32 to vector<8x32xf32>
    %215 = arith.addf %214, %213 : vector<8x32xf32>
    %cst_79 = arith.constant 1.000000e+00 : f32
    %216 = vector.broadcast %cst_79 : f32 to vector<8x32xf32>
    %217 = arith.divf %216, %215 : vector<8x32xf32>
    %cst_80 = arith.constant 1.06140542 : f32
    %218 = vector.broadcast %cst_80 : f32 to vector<8x32xf32>
    %219 = arith.mulf %218, %217 : vector<8x32xf32>
    %cst_81 = arith.constant -1.45315206 : f32
    %220 = vector.broadcast %cst_81 : f32 to vector<8x32xf32>
    %221 = arith.addf %219, %220 : vector<8x32xf32>
    %222 = arith.mulf %221, %217 : vector<8x32xf32>
    %cst_82 = arith.constant 1.42141378 : f32
    %223 = vector.broadcast %cst_82 : f32 to vector<8x32xf32>
    %224 = arith.addf %222, %223 : vector<8x32xf32>
    %225 = arith.mulf %224, %217 : vector<8x32xf32>
    %cst_83 = arith.constant -0.284496725 : f32
    %226 = vector.broadcast %cst_83 : f32 to vector<8x32xf32>
    %227 = arith.addf %225, %226 : vector<8x32xf32>
    %228 = arith.mulf %227, %217 : vector<8x32xf32>
    %cst_84 = arith.constant 0.254829586 : f32
    %229 = vector.broadcast %cst_84 : f32 to vector<8x32xf32>
    %230 = arith.addf %228, %229 : vector<8x32xf32>
    %231 = arith.mulf %230, %217 : vector<8x32xf32>
    %cst_85 = arith.constant 0.000000e+00 : f32
    %232 = vector.broadcast %cst_85 : f32 to vector<8x32xf32>
    %233 = arith.subf %232, %211 : vector<8x32xf32>
    %234 = arith.mulf %233, %211 : vector<8x32xf32>
    %235 = math.exp %234 : vector<8x32xf32>
    %236 = arith.mulf %231, %235 : vector<8x32xf32>
    %cst_86 = arith.constant 1.000000e+00 : f32
    %237 = vector.broadcast %cst_86 : f32 to vector<8x32xf32>
    %238 = arith.subf %237, %236 : vector<8x32xf32>
    %cst_87 = arith.constant 0.000000e+00 : f32
    %239 = vector.broadcast %cst_87 : f32 to vector<8x32xf32>
    %240 = arith.cmpf oge, %210, %239 : vector<8x32xf32>
    %cst_88 = arith.constant 0.000000e+00 : f32
    %241 = vector.broadcast %cst_88 : f32 to vector<8x32xf32>
    %242 = arith.subf %241, %238 : vector<8x32xf32>
    %243 = arith.select %240, %238, %242 : vector<8x32xi1>, vector<8x32xf32>
    %cst_89 = arith.constant 1.000000e+00 : f32
    %244 = vector.broadcast %cst_89 : f32 to vector<8x32xf32>
    %245 = arith.addf %244, %243 : vector<8x32xf32>
    %246 = arith.mulf %208, %245 : vector<8x32xf32>
    %247 = arith.mulf %203, %246 : vector<8x32xf32>
    %c168 = arith.constant 168 : index
    %c0_90 = arith.constant 0 : index
    %248 = vector.load %arg0[%c168, %c0_90] : memref<432x128xf32, #tpu.memory_space<vmem>>, vector<32x96xf32>
    %cst_91 = arith.constant dense<0.000000e+00> : vector<8x96xf32>
    %249 = tpu.matmul %151, %248, %cst_91 {dimension_numbers = #tpu.dot_dimension_numbers<[1], [0], [0], [1], [0, 0, 1, 1], [], []>} : vector<8x32xf32>, vector<32x96xf32>, vector<8x96xf32> -> vector<8x96xf32>
    %c328 = arith.constant 328 : index
    %c0_92 = arith.constant 0 : index
    %250 = vector.load %arg0[%c328, %c0_92] : memref<432x128xf32, #tpu.memory_space<vmem>>, vector<1x96xf32>
    %251 = vector.broadcast %250 : vector<1x96xf32> to vector<8x96xf32>
    %252 = arith.addf %249, %251 : vector<8x96xf32>
    %253 = vector.extract_strided_slice %252 {offsets = [0, 0], sizes = [8, 8], strides = [1, 1]} : vector<8x96xf32> to vector<8x8xf32>
    %254 = vector.extract_strided_slice %252 {offsets = [0, 32], sizes = [8, 8], strides = [1, 1]} : vector<8x96xf32> to vector<8x8xf32>
    %255 = vector.extract_strided_slice %252 {offsets = [0, 64], sizes = [8, 8], strides = [1, 1]} : vector<8x96xf32> to vector<8x8xf32>
    %cst_93 = arith.constant dense<0.000000e+00> : vector<8x8xf32>
    %256 = tpu.matmul %253, %254, %cst_93 {dimension_numbers = #tpu.dot_dimension_numbers<[1], [1], [0], [0], [0, 0, 1, 0], [], []>} : vector<8x8xf32>, vector<8x8xf32>, vector<8x8xf32> -> vector<8x8xf32>
    %257 = arith.addf %256, %3 : vector<8x8xf32>
    %cst_94 = arith.constant dense<0xFF800000> : vector<8xf32>
    %258 = vector.multi_reduction <maximumf>, %257, %cst_94 [1] : vector<8x8xf32> to vector<8xf32>
    %259 = vector.shape_cast %258 : vector<8xf32> to vector<8x1xf32>
    %260 = vector.broadcast %259 : vector<8x1xf32> to vector<8x8xf32>
    %261 = arith.subf %257, %260 : vector<8x8xf32>
    %262 = math.exp %261 : vector<8x8xf32>
    %cst_95 = arith.constant dense<0.000000e+00> : vector<8xf32>
    %263 = vector.multi_reduction <add>, %262, %cst_95 [1] : vector<8x8xf32> to vector<8xf32>
    %264 = vector.shape_cast %263 : vector<8xf32> to vector<8x1xf32>
    %265 = tpu.reciprocal %264 {approx = true} : vector<8x1xf32> -> vector<8x1xf32>
    %266 = vector.broadcast %265 : vector<8x1xf32> to vector<8x8xf32>
    %267 = arith.mulf %262, %266 : vector<8x8xf32>
    %cst_96 = arith.constant dense<0.000000e+00> : vector<8x8xf32>
    %268 = tpu.matmul %267, %255, %cst_96 {dimension_numbers = #tpu.dot_dimension_numbers<[1], [0], [0], [1], [0, 0, 1, 1], [], []>} : vector<8x8xf32>, vector<8x8xf32>, vector<8x8xf32> -> vector<8x8xf32>
    %269 = vector.extract_strided_slice %252 {offsets = [0, 8], sizes = [8, 8], strides = [1, 1]} : vector<8x96xf32> to vector<8x8xf32>
    %270 = vector.extract_strided_slice %252 {offsets = [0, 40], sizes = [8, 8], strides = [1, 1]} : vector<8x96xf32> to vector<8x8xf32>
    %271 = vector.extract_strided_slice %252 {offsets = [0, 72], sizes = [8, 8], strides = [1, 1]} : vector<8x96xf32> to vector<8x8xf32>
    %cst_97 = arith.constant dense<0.000000e+00> : vector<8x8xf32>
    %272 = tpu.matmul %269, %270, %cst_97 {dimension_numbers = #tpu.dot_dimension_numbers<[1], [1], [0], [0], [0, 0, 1, 0], [], []>} : vector<8x8xf32>, vector<8x8xf32>, vector<8x8xf32> -> vector<8x8xf32>
    %273 = arith.addf %272, %3 : vector<8x8xf32>
    %cst_98 = arith.constant dense<0xFF800000> : vector<8xf32>
    %274 = vector.multi_reduction <maximumf>, %273, %cst_98 [1] : vector<8x8xf32> to vector<8xf32>
    %275 = vector.shape_cast %274 : vector<8xf32> to vector<8x1xf32>
    %276 = vector.broadcast %275 : vector<8x1xf32> to vector<8x8xf32>
    %277 = arith.subf %273, %276 : vector<8x8xf32>
    %278 = math.exp %277 : vector<8x8xf32>
    %cst_99 = arith.constant dense<0.000000e+00> : vector<8xf32>
    %279 = vector.multi_reduction <add>, %278, %cst_99 [1] : vector<8x8xf32> to vector<8xf32>
    %280 = vector.shape_cast %279 : vector<8xf32> to vector<8x1xf32>
    %281 = tpu.reciprocal %280 {approx = true} : vector<8x1xf32> -> vector<8x1xf32>
    %282 = vector.broadcast %281 : vector<8x1xf32> to vector<8x8xf32>
    %283 = arith.mulf %278, %282 : vector<8x8xf32>
    %cst_100 = arith.constant dense<0.000000e+00> : vector<8x8xf32>
    %284 = tpu.matmul %283, %271, %cst_100 {dimension_numbers = #tpu.dot_dimension_numbers<[1], [0], [0], [1], [0, 0, 1, 1], [], []>} : vector<8x8xf32>, vector<8x8xf32>, vector<8x8xf32> -> vector<8x8xf32>
    %285 = vector.extract_strided_slice %252 {offsets = [0, 16], sizes = [8, 8], strides = [1, 1]} : vector<8x96xf32> to vector<8x8xf32>
    %286 = vector.extract_strided_slice %252 {offsets = [0, 48], sizes = [8, 8], strides = [1, 1]} : vector<8x96xf32> to vector<8x8xf32>
    %287 = vector.extract_strided_slice %252 {offsets = [0, 80], sizes = [8, 8], strides = [1, 1]} : vector<8x96xf32> to vector<8x8xf32>
    %cst_101 = arith.constant dense<0.000000e+00> : vector<8x8xf32>
    %288 = tpu.matmul %285, %286, %cst_101 {dimension_numbers = #tpu.dot_dimension_numbers<[1], [1], [0], [0], [0, 0, 1, 0], [], []>} : vector<8x8xf32>, vector<8x8xf32>, vector<8x8xf32> -> vector<8x8xf32>
    %289 = arith.addf %288, %3 : vector<8x8xf32>
    %cst_102 = arith.constant dense<0xFF800000> : vector<8xf32>
    %290 = vector.multi_reduction <maximumf>, %289, %cst_102 [1] : vector<8x8xf32> to vector<8xf32>
    %291 = vector.shape_cast %290 : vector<8xf32> to vector<8x1xf32>
    %292 = vector.broadcast %291 : vector<8x1xf32> to vector<8x8xf32>
    %293 = arith.subf %289, %292 : vector<8x8xf32>
    %294 = math.exp %293 : vector<8x8xf32>
    %cst_103 = arith.constant dense<0.000000e+00> : vector<8xf32>
    %295 = vector.multi_reduction <add>, %294, %cst_103 [1] : vector<8x8xf32> to vector<8xf32>
    %296 = vector.shape_cast %295 : vector<8xf32> to vector<8x1xf32>
    %297 = tpu.reciprocal %296 {approx = true} : vector<8x1xf32> -> vector<8x1xf32>
    %298 = vector.broadcast %297 : vector<8x1xf32> to vector<8x8xf32>
    %299 = arith.mulf %294, %298 : vector<8x8xf32>
    %cst_104 = arith.constant dense<0.000000e+00> : vector<8x8xf32>
    %300 = tpu.matmul %299, %287, %cst_104 {dimension_numbers = #tpu.dot_dimension_numbers<[1], [0], [0], [1], [0, 0, 1, 1], [], []>} : vector<8x8xf32>, vector<8x8xf32>, vector<8x8xf32> -> vector<8x8xf32>
    %301 = vector.extract_strided_slice %252 {offsets = [0, 24], sizes = [8, 8], strides = [1, 1]} : vector<8x96xf32> to vector<8x8xf32>
    %302 = vector.extract_strided_slice %252 {offsets = [0, 56], sizes = [8, 8], strides = [1, 1]} : vector<8x96xf32> to vector<8x8xf32>
    %303 = vector.extract_strided_slice %252 {offsets = [0, 88], sizes = [8, 8], strides = [1, 1]} : vector<8x96xf32> to vector<8x8xf32>
    %cst_105 = arith.constant dense<0.000000e+00> : vector<8x8xf32>
    %304 = tpu.matmul %301, %302, %cst_105 {dimension_numbers = #tpu.dot_dimension_numbers<[1], [1], [0], [0], [0, 0, 1, 0], [], []>} : vector<8x8xf32>, vector<8x8xf32>, vector<8x8xf32> -> vector<8x8xf32>
    %305 = arith.addf %304, %3 : vector<8x8xf32>
    %cst_106 = arith.constant dense<0xFF800000> : vector<8xf32>
    %306 = vector.multi_reduction <maximumf>, %305, %cst_106 [1] : vector<8x8xf32> to vector<8xf32>
    %307 = vector.shape_cast %306 : vector<8xf32> to vector<8x1xf32>
    %308 = vector.broadcast %307 : vector<8x1xf32> to vector<8x8xf32>
    %309 = arith.subf %305, %308 : vector<8x8xf32>
    %310 = math.exp %309 : vector<8x8xf32>
    %cst_107 = arith.constant dense<0.000000e+00> : vector<8xf32>
    %311 = vector.multi_reduction <add>, %310, %cst_107 [1] : vector<8x8xf32> to vector<8xf32>
    %312 = vector.shape_cast %311 : vector<8xf32> to vector<8x1xf32>
    %313 = tpu.reciprocal %312 {approx = true} : vector<8x1xf32> -> vector<8x1xf32>
    %314 = vector.broadcast %313 : vector<8x1xf32> to vector<8x8xf32>
    %315 = arith.mulf %310, %314 : vector<8x8xf32>
    %cst_108 = arith.constant dense<0.000000e+00> : vector<8x8xf32>
    %316 = tpu.matmul %315, %303, %cst_108 {dimension_numbers = #tpu.dot_dimension_numbers<[1], [0], [0], [1], [0, 0, 1, 1], [], []>} : vector<8x8xf32>, vector<8x8xf32>, vector<8x8xf32> -> vector<8x8xf32>
    %317 = tpu.concatenate %268, %284, %300, %316 in 1 : vector<8x8xf32>, vector<8x8xf32>, vector<8x8xf32>, vector<8x8xf32> -> vector<8x32xf32>
    %c200 = arith.constant 200 : index
    %c0_109 = arith.constant 0 : index
    %318 = vector.load %arg0[%c200, %c0_109] : memref<432x128xf32, #tpu.memory_space<vmem>>, vector<32x32xf32>
    %cst_110 = arith.constant dense<0.000000e+00> : vector<8x32xf32>
    %319 = tpu.matmul %317, %318, %cst_110 {dimension_numbers = #tpu.dot_dimension_numbers<[1], [0], [0], [1], [0, 0, 1, 1], [], []>} : vector<8x32xf32>, vector<32x32xf32>, vector<8x32xf32> -> vector<8x32xf32>
    %c329 = arith.constant 329 : index
    %c0_111 = arith.constant 0 : index
    %320 = vector.load %arg0[%c329, %c0_111] : memref<432x128xf32, #tpu.memory_space<vmem>>, vector<1x32xf32>
    %321 = vector.broadcast %320 : vector<1x32xf32> to vector<8x32xf32>
    %322 = arith.addf %319, %321 : vector<8x32xf32>
    %323 = arith.addf %322, %199 : vector<8x32xf32>
    %324 = arith.addf %323, %151 : vector<8x32xf32>
    %c330 = arith.constant 330 : index
    %c0_112 = arith.constant 0 : index
    %325 = vector.load %arg0[%c330, %c0_112] : memref<432x128xf32, #tpu.memory_space<vmem>>, vector<1x32xf32>
    %c331 = arith.constant 331 : index
    %c0_113 = arith.constant 0 : index
    %326 = vector.load %arg0[%c331, %c0_113] : memref<432x128xf32, #tpu.memory_space<vmem>>, vector<1x32xf32>
    %cst_114 = arith.constant dense<0.000000e+00> : vector<8xf32>
    %327 = vector.multi_reduction <add>, %324, %cst_114 [1] : vector<8x32xf32> to vector<8xf32>
    %328 = vector.shape_cast %327 : vector<8xf32> to vector<8x1xf32>
    %cst_115 = arith.constant 3.200000e+01 : f32
    %329 = vector.broadcast %cst_115 : f32 to vector<8x1xf32>
    %330 = arith.divf %328, %329 : vector<8x1xf32>
    %331 = vector.broadcast %330 : vector<8x1xf32> to vector<8x32xf32>
    %332 = arith.subf %324, %331 : vector<8x32xf32>
    %333 = arith.mulf %332, %332 : vector<8x32xf32>
    %cst_116 = arith.constant dense<0.000000e+00> : vector<8xf32>
    %334 = vector.multi_reduction <add>, %333, %cst_116 [1] : vector<8x32xf32> to vector<8xf32>
    %335 = vector.shape_cast %334 : vector<8xf32> to vector<8x1xf32>
    %cst_117 = arith.constant 3.200000e+01 : f32
    %336 = vector.broadcast %cst_117 : f32 to vector<8x1xf32>
    %337 = arith.divf %335, %336 : vector<8x1xf32>
    %cst_118 = arith.constant 9.99999996E-13 : f32
    %338 = vector.broadcast %cst_118 : f32 to vector<8x1xf32>
    %339 = arith.addf %337, %338 : vector<8x1xf32>
    %340 = math.rsqrt %339 : vector<8x1xf32>
    %341 = vector.broadcast %340 : vector<8x1xf32> to vector<8x32xf32>
    %342 = arith.mulf %332, %341 : vector<8x32xf32>
    %343 = vector.broadcast %325 : vector<1x32xf32> to vector<8x32xf32>
    %344 = arith.mulf %342, %343 : vector<8x32xf32>
    %345 = vector.broadcast %326 : vector<1x32xf32> to vector<8x32xf32>
    %346 = arith.addf %344, %345 : vector<8x32xf32>
    %c232 = arith.constant 232 : index
    %c0_119 = arith.constant 0 : index
    %347 = vector.load %arg0[%c232, %c0_119] : memref<432x128xf32, #tpu.memory_space<vmem>>, vector<32x64xf32>
    %cst_120 = arith.constant dense<0.000000e+00> : vector<8x64xf32>
    %348 = tpu.matmul %346, %347, %cst_120 {dimension_numbers = #tpu.dot_dimension_numbers<[1], [0], [0], [1], [0, 0, 1, 1], [], []>} : vector<8x32xf32>, vector<32x64xf32>, vector<8x64xf32> -> vector<8x64xf32>
    %c332 = arith.constant 332 : index
    %c0_121 = arith.constant 0 : index
    %349 = vector.load %arg0[%c332, %c0_121] : memref<432x128xf32, #tpu.memory_space<vmem>>, vector<1x64xf32>
    %350 = vector.broadcast %349 : vector<1x64xf32> to vector<8x64xf32>
    %351 = arith.addf %348, %350 : vector<8x64xf32>
    %cst_122 = arith.constant 5.000000e-01 : f32
    %352 = vector.broadcast %cst_122 : f32 to vector<8x64xf32>
    %353 = arith.mulf %352, %351 : vector<8x64xf32>
    %cst_123 = arith.constant 4.471500e-02 : f32
    %354 = vector.broadcast %cst_123 : f32 to vector<8x64xf32>
    %355 = arith.mulf %354, %351 : vector<8x64xf32>
    %356 = arith.mulf %355, %351 : vector<8x64xf32>
    %357 = arith.mulf %356, %351 : vector<8x64xf32>
    %358 = arith.addf %351, %357 : vector<8x64xf32>
    %cst_124 = arith.constant 0.797884583 : f32
    %359 = vector.broadcast %cst_124 : f32 to vector<8x64xf32>
    %360 = arith.mulf %359, %358 : vector<8x64xf32>
    %361 = math.tanh %360 : vector<8x64xf32>
    %cst_125 = arith.constant 1.000000e+00 : f32
    %362 = vector.broadcast %cst_125 : f32 to vector<8x64xf32>
    %363 = arith.addf %362, %361 : vector<8x64xf32>
    %364 = arith.mulf %353, %363 : vector<8x64xf32>
    %c264 = arith.constant 264 : index
    %c0_126 = arith.constant 0 : index
    %365 = vector.load %arg0[%c264, %c0_126] : memref<432x128xf32, #tpu.memory_space<vmem>>, vector<64x32xf32>
    %cst_127 = arith.constant dense<0.000000e+00> : vector<8x32xf32>
    %366 = tpu.matmul %364, %365, %cst_127 {dimension_numbers = #tpu.dot_dimension_numbers<[1], [0], [0], [1], [0, 0, 1, 1], [], []>} : vector<8x64xf32>, vector<64x32xf32>, vector<8x32xf32> -> vector<8x32xf32>
    %c333 = arith.constant 333 : index
    %c0_128 = arith.constant 0 : index
    %367 = vector.load %arg0[%c333, %c0_128] : memref<432x128xf32, #tpu.memory_space<vmem>>, vector<1x32xf32>
    %368 = vector.broadcast %367 : vector<1x32xf32> to vector<8x32xf32>
    %369 = arith.addf %366, %368 : vector<8x32xf32>
    %370 = arith.addf %369, %247 : vector<8x32xf32>
    %371 = arith.addf %370, %346 : vector<8x32xf32>
    %c334 = arith.constant 334 : index
    %c0_129 = arith.constant 0 : index
    %372 = vector.load %arg0[%c334, %c0_129] : memref<432x128xf32, #tpu.memory_space<vmem>>, vector<1x32xf32>
    %c335 = arith.constant 335 : index
    %c0_130 = arith.constant 0 : index
    %373 = vector.load %arg0[%c335, %c0_130] : memref<432x128xf32, #tpu.memory_space<vmem>>, vector<1x32xf32>
    %cst_131 = arith.constant dense<0.000000e+00> : vector<8xf32>
    %374 = vector.multi_reduction <add>, %371, %cst_131 [1] : vector<8x32xf32> to vector<8xf32>
    %375 = vector.shape_cast %374 : vector<8xf32> to vector<8x1xf32>
    %cst_132 = arith.constant 3.200000e+01 : f32
    %376 = vector.broadcast %cst_132 : f32 to vector<8x1xf32>
    %377 = arith.divf %375, %376 : vector<8x1xf32>
    %378 = vector.broadcast %377 : vector<8x1xf32> to vector<8x32xf32>
    %379 = arith.subf %371, %378 : vector<8x32xf32>
    %380 = arith.mulf %379, %379 : vector<8x32xf32>
    %cst_133 = arith.constant dense<0.000000e+00> : vector<8xf32>
    %381 = vector.multi_reduction <add>, %380, %cst_133 [1] : vector<8x32xf32> to vector<8xf32>
    %382 = vector.shape_cast %381 : vector<8xf32> to vector<8x1xf32>
    %cst_134 = arith.constant 3.200000e+01 : f32
    %383 = vector.broadcast %cst_134 : f32 to vector<8x1xf32>
    %384 = arith.divf %382, %383 : vector<8x1xf32>
    %cst_135 = arith.constant 9.99999996E-13 : f32
    %385 = vector.broadcast %cst_135 : f32 to vector<8x1xf32>
    %386 = arith.addf %384, %385 : vector<8x1xf32>
    %387 = math.rsqrt %386 : vector<8x1xf32>
    %388 = vector.broadcast %387 : vector<8x1xf32> to vector<8x32xf32>
    %389 = arith.mulf %379, %388 : vector<8x32xf32>
    %390 = vector.broadcast %372 : vector<1x32xf32> to vector<8x32xf32>
    %391 = arith.mulf %389, %390 : vector<8x32xf32>
    %392 = vector.broadcast %373 : vector<1x32xf32> to vector<8x32xf32>
    %393 = arith.addf %391, %392 : vector<8x32xf32>
    %cst_136 = arith.constant 0.000000e+00 : f32
    %394 = vector.broadcast %cst_136 : f32 to vector<8x64xf32>
    %395 = tpu.concatenate %151, %393, %394 in 1 : vector<8x32xf32>, vector<8x32xf32>, vector<8x64xf32> -> vector<8x128xf32>
    %c0_137 = arith.constant 0 : index
    %c0_138 = arith.constant 0 : index
    %396 = vector.load %arg2[%c0_137, %c0_138] : memref<8x128xf32, #tpu.memory_space<vmem>>, vector<8x128xf32>
    tpu.vector_store %arg2[%c0_137, %c0_138], %395 {strides = array<i32>} : memref<8x128xf32, #tpu.memory_space<vmem>>, vector<8x128xf32>,
    return
  }
}

</mosaic_0001>

<llo_original>
// kernel: bert_encoder_forward.1
$region0: #{bert_encoder_forward.1}
  #allocation0 [shape = 'u32[]', space=smem, size = 0x4, offset = 0x4, fixed_abs, tag = 'smem constant byte address 0x4 - core index']
  #allocation1 [shape = 'u32[144,128]{1,0:T(1,128)}', space=vmem, size = 0x12000, scoped, tag = 'internal scratch']
  %s0 = inlined_call_operand.hbm [shape: f32[432,128], index: 0, kind: input, shape index: {}]
  %s1 = inlined_call_operand.vmem [shape: f32[32,128], index: 1, kind: input, shape index: {}]
  %s2 = inlined_call_operand.vmem [shape: f32[8,128], index: 2, kind: output, shape index: {}]
  %s3 = sld [smem:[#allocation0]]
  $region22: #{bert_encoder_forward.1} parent=0
    _
  %s5 = ssub.s32 1, %s3
  %s6 = scalar_select 0, %s5, %s3
  $region1: #{bert_encoder_forward.1} parent=0
    #allocation2 [shape = 'u8[221184]{0}', space=vmem, size = 0x36000, scoped, tag = 'input window, operand 0, single buffered']
    #allocation3 [shape = 's32[1]{0}', space=sflag, size = 0x4, scoped, tag = 'scoped memory for bert_encoder_forward.1']
    %7 = vsyncpa [#allocation3], 0
    // Predicated region
    $region2: #{bert_encoder_forward.1} parent=1 // pred_check
      _
    $region3: #{bert_encoder_forward.1} parent=1 // pred_check_branch
      %9 = sbr.rel (0) target = $region5
    $region4: #{bert_encoder_forward.1} parent=1 // pred_region
      %s11 = ssub.s32 6912, 6912
      %12 = vsyncadd [#allocation3], %s11
      %s13 = sshll.u32 [#allocation2], 4
      %s14 = int_to_ptr.vmem [resolvable:$true] %s13
      %19 = dma.hbm_to_vmem [thread:$0]  %s0, 6912, %s14, [#allocation3], 128, 128, 8
    $region5: #{bert_encoder_forward.1} parent=1 // pred_fallthru
      _
    // Predicated region
    $region6: #{bert_encoder_forward.1} parent=1 // pred_check
      _
    $region7: #{bert_encoder_forward.1} parent=1 // pred_check_branch
      %21 = sbr.rel (0) target = $region9
    $region8: #{bert_encoder_forward.1} parent=1 // pred_region
      _
    $region9: #{bert_encoder_forward.1} parent=1 // pred_fallthru
      _
    // Predicated region
    $region10: #{bert_encoder_forward.1} parent=1 // pred_check
      _
    $region11: #{bert_encoder_forward.1} parent=1 // pred_check_branch
      %23 = sbr.rel (0) target = $region13
    $region12: #{bert_encoder_forward.1} parent=1 // pred_region
      %24 = dma.done [#allocation3], 6912
    $region13: #{bert_encoder_forward.1} parent=1 // pred_fallthru
      _
    %v25 = vld [vmem:[%s1] sm:$0xff]
    %v26 = vld [vmem:[%s1 + $0x8] sm:$0x1]
    %v27 = vlaneseq
    %v28 = vshrl.u32 %v27, 7
    %v29 = vsub.s32 0, %v28
    %v30 = vrot.slane %v26, %v29
    %v31 = vld [vmem:[#allocation2] sm:$0xff]
    %v32 = vld [vmem:[#allocation2 + $0x8] sm:$0xff]
    %v33 = vld [vmem:[#allocation2 + $0x10] sm:$0xff]
    %v34 = vld [vmem:[#allocation2 + $0x18] sm:$0xff]
    %v35 = vld [vmem:[#allocation2 + $0xa0] sm:$0x1]
    %v36 = vlaneseq
    %v37 = vshrl.u32 %v36, 7
    %v38 = vsub.s32 0, %v37
    %v39 = vrot.slane %v35, %v38
    %vm40 = vcmask 261120
    %v42 = vsel %vm40, %v25, 0
    %44 = vmatprep.subr.mxu0 0.0
    %45 = vmatpush1.msra.mxu0 %v31
    %46 = vmatprep.subr.mxu0 0.0
    %47 = vmatpush1.msra.mxu0 %v32
    %48 = vmatprep.subr.mxu0 0.0
    %49 = vmatpush1.msra.mxu0 %v33
    %50 = vmatprep.subr.mxu0 0.0
    %51 = vmatpush1.msra.mxu0 %v34
    %52 = vmatprep.subr.mxu0 0.0
    %53 = vmatpush1.msra.mxu0 0.0
    %54 = vmatprep.subr.mxu0 0.0
    %55 = vmatpush1.msra.mxu0 0.0
    %56 = vmatprep.subr.mxu0 0.0
    %57 = vmatpush1.msra.mxu0 0.0
    %58 = vmatprep.subr.mxu0 0.0
    %59 = vmatpush1.msra.mxu0 0.0
    %60 = vmatprep.subr.mxu0 0.0
    %61 = vmatpush1.msra.mxu0 0.0
    %62 = vmatprep.subr.mxu0 0.0
    %63 = vmatpush1.msra.mxu0 0.0
    %64 = vmatprep.subr.mxu0 0.0
    %65 = vmatpush1.msra.mxu0 0.0
    %66 = vmatprep.subr.mxu0 0.0
    %67 = vmatpush1.msra.mxu0 0.0
    %68 = vmatprep.subr.mxu0 0.0
    %69 = vmatpush1.msra.mxu0 0.0
    %70 = vmatprep.subr.mxu0 0.0
    %71 = vmatpush1.msra.mxu0 0.0
    %72 = vmatprep.subr.mxu0 0.0
    %73 = vmatpush1.msra.mxu0 0.0
    %74 = vmatprep.subr.mxu0 0.0
    %75 = vmatpush1.msra.mxu0 0.0
    %76 = vmatprep.subr.mxu0 0.0
    %77 = vmatpush1.msra.mxu0 0.0
    %78 = vmatprep.subr.mxu0 0.0
    %79 = vmatpush1.msra.mxu0 0.0
    %80 = vmatprep.subr.mxu0 0.0
    %81 = vmatpush1.msra.mxu0 0.0
    %82 = vmatprep.subr.mxu0 0.0
    %83 = vmatpush1.msra.mxu0 0.0
    %84 = vmatprep.subr.mxu0 0.0
    %85 = vmatpush1.msra.mxu0 0.0
    %86 = vmatprep.subr.mxu0 0.0
    %87 = vmatpush1.msra.mxu0 0.0
    %88 = vmatprep.subr.mxu0 0.0
    %89 = vmatpush1.msra.mxu0 0.0
    %90 = vmatprep.subr.mxu0 0.0
    %91 = vmatpush1.msra.mxu0 0.0
    %92 = vmatprep.subr.mxu0 0.0
    %93 = vmatpush1.msra.mxu0 0.0
    %94 = vmatprep.subr.mxu0 0.0
    %95 = vmatpush1.msra.mxu0 0.0
    %96 = vmatprep.subr.mxu0 0.0
    %97 = vmatpush1.msra.mxu0 0.0
    %98 = vmatprep.subr.mxu0 0.0
    %99 = vmatpush1.msra.mxu0 0.0
    %100 = vmatprep.subr.mxu0 0.0
    %101 = vmatpush1.msra.mxu0 0.0
    %102 = vmatprep.subr.mxu0 0.0
    %103 = vmatpush1.msra.mxu0 0.0
    %104 = vmatprep.subr.mxu0 0.0
    %105 = vmatpush1.msra.mxu0 0.0
    %106 = vmatprep.subr.mxu0 0.0
    %107 = vmatpush1.msra.mxu0 0.0
    %108 = vmatprep.mubr.f32.mxu0 0.0
    %109 = vmatmul.mubr.f32.gmra.mrb[0].mxu0 %v42
    %v110 = vpop.f32.mrb[0].mxu0
    %v111 = vadd.f32 %v39, %v110
    %v112 = vpop.f32.mrb[0].mxu0
    %113 = vdwg.mxu0
    %115 = vrot.lane.b32.xlu0 %v111, 96
    %v116 = vpop.permute.xlu0 %115
    %vm117 = vcmask 64512
    %v118 = vsel %vm117, %v111, 0
    %v120 = vsel %vm117, %v116, 0
    %122 = vmatprep.subr.mxu0 0.0
    %123 = vmatpush1.xpose.msra.mxu0 %v120
    %124 = vmatprep.subr.mxu0 0.0
    %125 = vmatpush1.xpose.msra.mxu0 0.0
    %126 = vmatprep.subr.mxu0 0.0
    %127 = vmatpush1.xpose.msra.mxu0 0.0
    %128 = vmatprep.subr.mxu0 0.0
    %129 = vmatpush1.xpose.msra.mxu0 0.0
    %130 = vmatprep.subr.mxu0 0.0
    %131 = vmatpush1.xpose.msra.mxu0 0.0
    %132 = vmatprep.subr.mxu0 0.0
    %133 = vmatpush1.xpose.msra.mxu0 0.0
    %134 = vmatprep.subr.mxu0 0.0
    %135 = vmatpush1.xpose.msra.mxu0 0.0
    %136 = vmatprep.subr.mxu0 0.0
    %137 = vmatpush1.xpose.msra.mxu0 0.0
    %138 = vmatprep.subr.mxu0 0.0
    %139 = vmatpush1.xpose.msra.mxu0 0.0
    %140 = vmatprep.subr.mxu0 0.0
    %141 = vmatpush1.xpose.msra.mxu0 0.0
    %142 = vmatprep.subr.mxu0 0.0
    %143 = vmatpush1.xpose.msra.mxu0 0.0
    %144 = vmatprep.subr.mxu0 0.0
    %145 = vmatpush1.xpose.msra.mxu0 0.0
    %146 = vmatprep.subr.mxu0 0.0
    %147 = vmatpush1.xpose.msra.mxu0 0.0
    %148 = vmatprep.subr.mxu0 0.0
    %149 = vmatpush1.xpose.msra.mxu0 0.0
    %150 = vmatprep.subr.mxu0 0.0
    %151 = vmatpush1.xpose.msra.mxu0 0.0
    %152 = vmatprep.subr.mxu0 0.0
    %153 = vmatpush1.xpose.msra.mxu0 0.0
    %154 = vmatprep.subr.mxu0 0.0
    %155 = vmatpush1.xpose.msra.mxu0 0.0
    %156 = vmatprep.subr.mxu0 0.0
    %157 = vmatpush1.xpose.msra.mxu0 0.0
    %158 = vmatprep.subr.mxu0 0.0
    %159 = vmatpush1.xpose.msra.mxu0 0.0
    %160 = vmatprep.subr.mxu0 0.0
    %161 = vmatpush1.xpose.msra.mxu0 0.0
    %162 = vmatprep.subr.mxu0 0.0
    %163 = vmatpush1.xpose.msra.mxu0 0.0
    %164 = vmatprep.subr.mxu0 0.0
    %165 = vmatpush1.xpose.msra.mxu0 0.0
    %166 = vmatprep.subr.mxu0 0.0
    %167 = vmatpush1.xpose.msra.mxu0 0.0
    %168 = vmatprep.subr.mxu0 0.0
    %169 = vmatpush1.xpose.msra.mxu0 0.0
    %170 = vmatprep.subr.mxu0 0.0
    %171 = vmatpush1.xpose.msra.mxu0 0.0
    %172 = vmatprep.subr.mxu0 0.0
    %173 = vmatpush1.xpose.msra.mxu0 0.0
    %174 = vmatprep.subr.mxu0 0.0
    %175 = vmatpush1.xpose.msra.mxu0 0.0
    %176 = vmatprep.subr.mxu0 0.0
    %177 = vmatpush1.xpose.msra.mxu0 0.0
    %178 = vmatprep.subr.mxu0 0.0
    %179 = vmatpush1.xpose.msra.mxu0 0.0
    %180 = vmatprep.subr.mxu0 0.0
    %181 = vmatpush1.xpose.msra.mxu0 0.0
    %182 = vmatprep.subr.mxu0 0.0
    %183 = vmatpush1.xpose.msra.mxu0 0.0
    %184 = vmatprep.subr.mxu0 0.0
    %185 = vmatpush1.xpose.msra.mxu0 0.0
    %186 = vmatprep.mubr.f32.mxu0 0.0
    %187 = vmatmul.mubr.f32.gmra.mrb[0].mxu0 %v118
    %v188 = vpop.f32.mrb[0].mxu0
    %v189 = vadd.f32 %v30, %v188
    %v190 = vpop.f32.mrb[0].mxu0
    %191 = vdwg.mxu0
    %v192 = vsel %vm117, %v189, -inf
    %193 = vmax.xlane.f32.xlu0 %v192
    %v194 = vpop.xlane.xlu0 %193
    %v195 = vsub.f32 %v189, %v194
    %v196 = vmul.f32 %v195, 1.442695
    %v197 = vpow.pop %v196
    %v198 = vsel %vm117, %v197, 0.0
    %199 = vadd.xlane.f32.xlu0 %v198
    %v200 = vpop.xlane.xlu0 %199
    %v201 = vrcp.pop %v200
    %v202 = vmul.f32 %v197, %v201
    %203 = vrot.lane.b32.xlu0 %v111, 64
    %v204 = vpop.permute.xlu0 %203
    %v207 = vsel %vm117, %v202, 0
    %209 = vmatprep.subr.mxu0 0.0
    %210 = vmatpush1.msra.mxu0 %v204
    %211 = vmatprep.subr.mxu0 0.0
    %212 = vmatpush1.msra.mxu0 0.0
    %213 = vmatprep.subr.mxu0 0.0
    %214 = vmatpush1.msra.mxu0 0.0
    %215 = vmatprep.subr.mxu0 0.0
    %216 = vmatpush1.msra.mxu0 0.0
    %217 = vmatprep.subr.mxu0 0.0
    %218 = vmatpush1.msra.mxu0 0.0
    %219 = vmatprep.subr.mxu0 0.0
    %220 = vmatpush1.msra.mxu0 0.0
    %221 = vmatprep.subr.mxu0 0.0
    %222 = vmatpush1.msra.mxu0 0.0
    %223 = vmatprep.subr.mxu0 0.0
    %224 = vmatpush1.msra.mxu0 0.0
    %225 = vmatprep.subr.mxu0 0.0
    %226 = vmatpush1.msra.mxu0 0.0
    %227 = vmatprep.subr.mxu0 0.0
    %228 = vmatpush1.msra.mxu0 0.0
    %229 = vmatprep.subr.mxu0 0.0
    %230 = vmatpush1.msra.mxu0 0.0
    %231 = vmatprep.subr.mxu0 0.0
    %232 = vmatpush1.msra.mxu0 0.0
    %233 = vmatprep.subr.mxu0 0.0
    %234 = vmatpush1.msra.mxu0 0.0
    %235 = vmatprep.subr.mxu0 0.0
    %236 = vmatpush1.msra.mxu0 0.0
    %237 = vmatprep.subr.mxu0 0.0
    %238 = vmatpush1.msra.mxu0 0.0
    %239 = vmatprep.subr.mxu0 0.0
    %240 = vmatpush1.msra.mxu0 0.0
    %241 = vmatprep.subr.mxu0 0.0
    %242 = vmatpush1.msra.mxu0 0.0
    %243 = vmatprep.subr.mxu0 0.0
    %244 = vmatpush1.msra.mxu0 0.0
    %245 = vmatprep.subr.mxu0 0.0
    %246 = vmatpush1.msra.mxu0 0.0
    %247 = vmatprep.subr.mxu0 0.0
    %248 = vmatpush1.msra.mxu0 0.0
    %249 = vmatprep.subr.mxu0 0.0
    %250 = vmatpush1.msra.mxu0 0.0
    %251 = vmatprep.subr.mxu0 0.0
    %252 = vmatpush1.msra.mxu0 0.0
    %253 = vmatprep.subr.mxu0 0.0
    %254 = vmatpush1.msra.mxu0 0.0
    %255 = vmatprep.subr.mxu0 0.0
    %256 = vmatpush1.msra.mxu0 0.0
    %257 = vmatprep.subr.mxu0 0.0
    %258 = vmatpush1.msra.mxu0 0.0
    %259 = vmatprep.subr.mxu0 0.0
    %260 = vmatpush1.msra.mxu0 0.0
    %261 = vmatprep.subr.mxu0 0.0
    %262 = vmatpush1.msra.mxu0 0.0
    %263 = vmatprep.subr.mxu0 0.0
    %264 = vmatpush1.msra.mxu0 0.0
    %265 = vmatprep.subr.mxu0 0.0
    %266 = vmatpush1.msra.mxu0 0.0
    %267 = vmatprep.subr.mxu0 0.0
    %268 = vmatpush1.msra.mxu0 0.0
    %269 = vmatprep.subr.mxu0 0.0
    %270 = vmatpush1.msra.mxu0 0.0
    %271 = vmatprep.subr.mxu0 0.0
    %272 = vmatpush1.msra.mxu0 0.0
    %273 = vmatprep.mubr.f32.mxu0 0.0
    %274 = vmatmul.mubr.f32.gmra.mrb[0].mxu0 %v207
    %v275 = vpop.f32.mrb[0].mxu0
    %v276 = vadd.f32 0.0, %v275
    %v277 = vpop.f32.mrb[0].mxu0
    %278 = vdwg.mxu0
    %279 = vrot.lane.b32.xlu0 %v111, 120
    %v280 = vpop.permute.xlu0 %279
    %281 = vrot.lane.b32.xlu0 %v111, 88
    %v282 = vpop.permute.xlu0 %281
    %v283 = vsel %vm117, %v280, 0
    %v285 = vsel %vm117, %v282, 0
    %287 = vmatprep.subr.mxu0 0.0
    %288 = vmatpush1.xpose.msra.mxu0 %v285
    %289 = vmatprep.subr.mxu0 0.0
    %290 = vmatpush1.xpose.msra.mxu0 0.0
    %291 = vmatprep.subr.mxu0 0.0
    %292 = vmatpush1.xpose.msra.mxu0 0.0
    %293 = vmatprep.subr.mxu0 0.0
    %294 = vmatpush1.xpose.msra.mxu0 0.0
    %295 = vmatprep.subr.mxu0 0.0
    %296 = vmatpush1.xpose.msra.mxu0 0.0
    %297 = vmatprep.subr.mxu0 0.0
    %298 = vmatpush1.xpose.msra.mxu0 0.0
    %299 = vmatprep.subr.mxu0 0.0
    %300 = vmatpush1.xpose.msra.mxu0 0.0
    %301 = vmatprep.subr.mxu0 0.0
    %302 = vmatpush1.xpose.msra.mxu0 0.0
    %303 = vmatprep.subr.mxu0 0.0
    %304 = vmatpush1.xpose.msra.mxu0 0.0
    %305 = vmatprep.subr.mxu0 0.0
    %306 = vmatpush1.xpose.msra.mxu0 0.0
    %307 = vmatprep.subr.mxu0 0.0
    %308 = vmatpush1.xpose.msra.mxu0 0.0
    %309 = vmatprep.subr.mxu0 0.0
    %310 = vmatpush1.xpose.msra.mxu0 0.0
    %311 = vmatprep.subr.mxu0 0.0
    %312 = vmatpush1.xpose.msra.mxu0 0.0
    %313 = vmatprep.subr.mxu0 0.0
    %314 = vmatpush1.xpose.msra.mxu0 0.0
    %315 = vmatprep.subr.mxu0 0.0
    %316 = vmatpush1.xpose.msra.mxu0 0.0
    %317 = vmatprep.subr.mxu0 0.0
    %318 = vmatpush1.xpose.msra.mxu0 0.0
    %319 = vmatprep.subr.mxu0 0.0
    %320 = vmatpush1.xpose.msra.mxu0 0.0
    %321 = vmatprep.subr.mxu0 0.0
    %322 = vmatpush1.xpose.msra.mxu0 0.0
    %323 = vmatprep.subr.mxu0 0.0
    %324 = vmatpush1.xpose.msra.mxu0 0.0
    %325 = vmatprep.subr.mxu0 0.0
    %326 = vmatpush1.xpose.msra.mxu0 0.0
    %327 = vmatprep.subr.mxu0 0.0
    %328 = vmatpush1.xpose.msra.mxu0 0.0
    %329 = vmatprep.subr.mxu0 0.0
    %330 = vmatpush1.xpose.msra.mxu0 0.0
    %331 = vmatprep.subr.mxu0 0.0
    %332 = vmatpush1.xpose.msra.mxu0 0.0
    %333 = vmatprep.subr.mxu0 0.0
    %334 = vmatpush1.xpose.msra.mxu0 0.0
    %335 = vmatprep.subr.mxu0 0.0
    %336 = vmatpush1.xpose.msra.mxu0 0.0
    %337 = vmatprep.subr.mxu0 0.0
    %338 = vmatpush1.xpose.msra.mxu0 0.0
    %339 = vmatprep.subr.mxu0 0.0
    %340 = vmatpush1.xpose.msra.mxu0 0.0
    %341 = vmatprep.subr.mxu0 0.0
    %342 = vmatpush1.xpose.msra.mxu0 0.0
    %343 = vmatprep.subr.mxu0 0.0
    %344 = vmatpush1.xpose.msra.mxu0 0.0
    %345 = vmatprep.subr.mxu0 0.0
    %346 = vmatpush1.xpose.msra.mxu0 0.0
    %347 = vmatprep.subr.mxu0 0.0
    %348 = vmatpush1.xpose.msra.mxu0 0.0
    %349 = vmatprep.subr.mxu0 0.0
    %350 = vmatpush1.xpose.msra.mxu0 0.0
    %351 = vmatprep.mubr.f32.mxu0 0.0
    %352 = vmatmul.mubr.f32.gmra.mrb[0].mxu0 %v283
    %v353 = vpop.f32.mrb[0].mxu0
    %v354 = vadd.f32 %v30, %v353
    %v355 = vpop.f32.mrb[0].mxu0
    %356 = vdwg.mxu0
    %v357 = vsel %vm117, %v354, -inf
    %358 = vmax.xlane.f32.xlu0 %v357
    %v359 = vpop.xlane.xlu0 %358
    %v360 = vsub.f32 %v354, %v359
    %v361 = vmul.f32 %v360, 1.442695
    %v362 = vpow.pop %v361
    %v363 = vsel %vm117, %v362, 0.0
    %364 = vadd.xlane.f32.xlu0 %v363
    %v365 = vpop.xlane.xlu0 %364
    %v366 = vrcp.pop %v365
    %v367 = vmul.f32 %v362, %v366
    %368 = vrot.lane.b32.xlu0 %v111, 56
    %v369 = vpop.permute.xlu0 %368
    %v372 = vsel %vm117, %v367, 0
    %374 = vmatprep.subr.mxu0 0.0
    %375 = vmatpush1.msra.mxu0 %v369
    %376 = vmatprep.subr.mxu0 0.0
    %377 = vmatpush1.msra.mxu0 0.0
    %378 = vmatprep.subr.mxu0 0.0
    %379 = vmatpush1.msra.mxu0 0.0
    %380 = vmatprep.subr.mxu0 0.0
    %381 = vmatpush1.msra.mxu0 0.0
    %382 = vmatprep.subr.mxu0 0.0
    %383 = vmatpush1.msra.mxu0 0.0
    %384 = vmatprep.subr.mxu0 0.0
    %385 = vmatpush1.msra.mxu0 0.0
    %386 = vmatprep.subr.mxu0 0.0
    %387 = vmatpush1.msra.mxu0 0.0
    %388 = vmatprep.subr.mxu0 0.0
    %389 = vmatpush1.msra.mxu0 0.0
    %390 = vmatprep.subr.mxu0 0.0
    %391 = vmatpush1.msra.mxu0 0.0
    %392 = vmatprep.subr.mxu0 0.0
    %393 = vmatpush1.msra.mxu0 0.0
    %394 = vmatprep.subr.mxu0 0.0
    %395 = vmatpush1.msra.mxu0 0.0
    %396 = vmatprep.subr.mxu0 0.0
    %397 = vmatpush1.msra.mxu0 0.0
    %398 = vmatprep.subr.mxu0 0.0
    %399 = vmatpush1.msra.mxu0 0.0
    %400 = vmatprep.subr.mxu0 0.0
    %401 = vmatpush1.msra.mxu0 0.0
    %402 = vmatprep.subr.mxu0 0.0
    %403 = vmatpush1.msra.mxu0 0.0
    %404 = vmatprep.subr.mxu0 0.0
    %405 = vmatpush1.msra.mxu0 0.0
    %406 = vmatprep.subr.mxu0 0.0
    %407 = vmatpush1.msra.mxu0 0.0
    %408 = vmatprep.subr.mxu0 0.0
    %409 = vmatpush1.msra.mxu0 0.0
    %410 = vmatprep.subr.mxu0 0.0
    %411 = vmatpush1.msra.mxu0 0.0
    %412 = vmatprep.subr.mxu0 0.0
    %413 = vmatpush1.msra.mxu0 0.0
    %414 = vmatprep.subr.mxu0 0.0
    %415 = vmatpush1.msra.mxu0 0.0
    %416 = vmatprep.subr.mxu0 0.0
    %417 = vmatpush1.msra.mxu0 0.0
    %418 = vmatprep.subr.mxu0 0.0
    %419 = vmatpush1.msra.mxu0 0.0
    %420 = vmatprep.subr.mxu0 0.0
    %421 = vmatpush1.msra.mxu0 0.0
    %422 = vmatprep.subr.mxu0 0.0
    %423 = vmatpush1.msra.mxu0 0.0
    %424 = vmatprep.subr.mxu0 0.0
    %425 = vmatpush1.msra.mxu0 0.0
    %426 = vmatprep.subr.mxu0 0.0
    %427 = vmatpush1.msra.mxu0 0.0
    %428 = vmatprep.subr.mxu0 0.0
    %429 = vmatpush1.msra.mxu0 0.0
    %430 = vmatprep.subr.mxu0 0.0
    %431 = vmatpush1.msra.mxu0 0.0
    %432 = vmatprep.subr.mxu0 0.0
    %433 = vmatpush1.msra.mxu0 0.0
    %434 = vmatprep.subr.mxu0 0.0
    %435 = vmatpush1.msra.mxu0 0.0
    %436 = vmatprep.subr.mxu0 0.0
    %437 = vmatpush1.msra.mxu0 0.0
    %438 = vmatprep.mubr.f32.mxu0 0.0
    %439 = vmatmul.mubr.f32.gmra.mrb[0].mxu0 %v372
    %v440 = vpop.f32.mrb[0].mxu0
    %v441 = vadd.f32 0.0, %v440
    %v442 = vpop.f32.mrb[0].mxu0
    %443 = vdwg.mxu0
    %444 = vrot.lane.b32.xlu0 %v111, 112
    %v445 = vpop.permute.xlu0 %444
    %446 = vrot.lane.b32.xlu0 %v111, 80
    %v447 = vpop.permute.xlu0 %446
    %v448 = vsel %vm117, %v445, 0
    %v450 = vsel %vm117, %v447, 0
    %452 = vmatprep.subr.mxu0 0.0
    %453 = vmatpush1.xpose.msra.mxu0 %v450
    %454 = vmatprep.subr.mxu0 0.0
    %455 = vmatpush1.xpose.msra.mxu0 0.0
    %456 = vmatprep.subr.mxu0 0.0
    %457 = vmatpush1.xpose.msra.mxu0 0.0
    %458 = vmatprep.subr.mxu0 0.0
    %459 = vmatpush1.xpose.msra.mxu0 0.0
    %460 = vmatprep.subr.mxu0 0.0
    %461 = vmatpush1.xpose.msra.mxu0 0.0
    %462 = vmatprep.subr.mxu0 0.0
    %463 = vmatpush1.xpose.msra.mxu0 0.0
    %464 = vmatprep.subr.mxu0 0.0
    %465 = vmatpush1.xpose.msra.mxu0 0.0
    %466 = vmatprep.subr.mxu0 0.0
    %467 = vmatpush1.xpose.msra.mxu0 0.0
    %468 = vmatprep.subr.mxu0 0.0
    %469 = vmatpush1.xpose.msra.mxu0 0.0
    %470 = vmatprep.subr.mxu0 0.0
    %471 = vmatpush1.xpose.msra.mxu0 0.0
    %472 = vmatprep.subr.mxu0 0.0
    %473 = vmatpush1.xpose.msra.mxu0 0.0
    %474 = vmatprep.subr.mxu0 0.0
    %475 = vmatpush1.xpose.msra.mxu0 0.0
    %476 = vmatprep.subr.mxu0 0.0
    %477 = vmatpush1.xpose.msra.mxu0 0.0
    %478 = vmatprep.subr.mxu0 0.0
    %479 = vmatpush1.xpose.msra.mxu0 0.0
    %480 = vmatprep.subr.mxu0 0.0
    %481 = vmatpush1.xpose.msra.mxu0 0.0
    %482 = vmatprep.subr.mxu0 0.0
    %483 = vmatpush1.xpose.msra.mxu0 0.0
    %484 = vmatprep.subr.mxu0 0.0
    %485 = vmatpush1.xpose.msra.mxu0 0.0
    %486 = vmatprep.subr.mxu0 0.0
    %487 = vmatpush1.xpose.msra.mxu0 0.0
    %488 = vmatprep.subr.mxu0 0.0
    %489 = vmatpush1.xpose.msra.mxu0 0.0
    %490 = vmatprep.subr.mxu0 0.0
    %491 = vmatpush1.xpose.msra.mxu0 0.0
    %492 = vmatprep.subr.mxu0 0.0
    %493 = vmatpush1.xpose.msra.mxu0 0.0
    %494 = vmatprep.subr.mxu0 0.0
    %495 = vmatpush1.xpose.msra.mxu0 0.0
    %496 = vmatprep.subr.mxu0 0.0
    %497 = vmatpush1.xpose.msra.mxu0 0.0
    %498 = vmatprep.subr.mxu0 0.0
    %499 = vmatpush1.xpose.msra.mxu0 0.0
    %500 = vmatprep.subr.mxu0 0.0
    %501 = vmatpush1.xpose.msra.mxu0 0.0
    %502 = vmatprep.subr.mxu0 0.0
    %503 = vmatpush1.xpose.msra.mxu0 0.0
    %504 = vmatprep.subr.mxu0 0.0
    %505 = vmatpush1.xpose.msra.mxu0 0.0
    %506 = vmatprep.subr.mxu0 0.0
    %507 = vmatpush1.xpose.msra.mxu0 0.0
    %508 = vmatprep.subr.mxu0 0.0
    %509 = vmatpush1.xpose.msra.mxu0 0.0
    %510 = vmatprep.subr.mxu0 0.0
    %511 = vmatpush1.xpose.msra.mxu0 0.0
    %512 = vmatprep.subr.mxu0 0.0
    %513 = vmatpush1.xpose.msra.mxu0 0.0
    %514 = vmatprep.subr.mxu0 0.0
    %515 = vmatpush1.xpose.msra.mxu0 0.0
    %516 = vmatprep.mubr.f32.mxu0 0.0
    %517 = vmatmul.mubr.f32.gmra.mrb[0].mxu0 %v448
    %v518 = vpop.f32.mrb[0].mxu0
    %v519 = vadd.f32 %v30, %v518
    %v520 = vpop.f32.mrb[0].mxu0
    %521 = vdwg.mxu0
    %v522 = vsel %vm117, %v519, -inf
    %523 = vmax.xlane.f32.xlu0 %v522
    %v524 = vpop.xlane.xlu0 %523
    %v525 = vsub.f32 %v519, %v524
    %v526 = vmul.f32 %v525, 1.442695
    %v527 = vpow.pop %v526
    %v528 = vsel %vm117, %v527, 0.0
    %529 = vadd.xlane.f32.xlu0 %v528
    %v530 = vpop.xlane.xlu0 %529
    %v531 = vrcp.pop %v530
    %v532 = vmul.f32 %v527, %v531
    %533 = vrot.lane.b32.xlu0 %v111, 48
    %v534 = vpop.permute.xlu0 %533
    %v537 = vsel %vm117, %v532, 0
    %539 = vmatprep.subr.mxu0 0.0
    %540 = vmatpush1.msra.mxu0 %v534
    %541 = vmatprep.subr.mxu0 0.0
    %542 = vmatpush1.msra.mxu0 0.0
    %543 = vmatprep.subr.mxu0 0.0
    %544 = vmatpush1.msra.mxu0 0.0
    %545 = vmatprep.subr.mxu0 0.0
    %546 = vmatpush1.msra.mxu0 0.0
    %547 = vmatprep.subr.mxu0 0.0
    %548 = vmatpush1.msra.mxu0 0.0
    %549 = vmatprep.subr.mxu0 0.0
    %550 = vmatpush1.msra.mxu0 0.0
    %551 = vmatprep.subr.mxu0 0.0
    %552 = vmatpush1.msra.mxu0 0.0
    %553 = vmatprep.subr.mxu0 0.0
    %554 = vmatpush1.msra.mxu0 0.0
    %555 = vmatprep.subr.mxu0 0.0
    %556 = vmatpush1.msra.mxu0 0.0
    %557 = vmatprep.subr.mxu0 0.0
    %558 = vmatpush1.msra.mxu0 0.0
    %559 = vmatprep.subr.mxu0 0.0
    %560 = vmatpush1.msra.mxu0 0.0
    %561 = vmatprep.subr.mxu0 0.0
    %562 = vmatpush1.msra.mxu0 0.0
    %563 = vmatprep.subr.mxu0 0.0
    %564 = vmatpush1.msra.mxu0 0.0
    %565 = vmatprep.subr.mxu0 0.0
    %566 = vmatpush1.msra.mxu0 0.0
    %567 = vmatprep.subr.mxu0 0.0
    %568 = vmatpush1.msra.mxu0 0.0
    %569 = vmatprep.subr.mxu0 0.0
    %570 = vmatpush1.msra.mxu0 0.0
    %571 = vmatprep.subr.mxu0 0.0
    %572 = vmatpush1.msra.mxu0 0.0
    %573 = vmatprep.subr.mxu0 0.0
    %574 = vmatpush1.msra.mxu0 0.0
    %575 = vmatprep.subr.mxu0 0.0
    %576 = vmatpush1.msra.mxu0 0.0
    %577 = vmatprep.subr.mxu0 0.0
    %578 = vmatpush1.msra.mxu0 0.0
    %579 = vmatprep.subr.mxu0 0.0
    %580 = vmatpush1.msra.mxu0 0.0
    %581 = vmatprep.subr.mxu0 0.0
    %582 = vmatpush1.msra.mxu0 0.0
    %583 = vmatprep.subr.mxu0 0.0
    %584 = vmatpush1.msra.mxu0 0.0
    %585 = vmatprep.subr.mxu0 0.0
    %586 = vmatpush1.msra.mxu0 0.0
    %587 = vmatprep.subr.mxu0 0.0
    %588 = vmatpush1.msra.mxu0 0.0
    %589 = vmatprep.subr.mxu0 0.0
    %590 = vmatpush1.msra.mxu0 0.0
    %591 = vmatprep.subr.mxu0 0.0
    %592 = vmatpush1.msra.mxu0 0.0
    %593 = vmatprep.subr.mxu0 0.0
    %594 = vmatpush1.msra.mxu0 0.0
    %595 = vmatprep.subr.mxu0 0.0
    %596 = vmatpush1.msra.mxu0 0.0
    %597 = vmatprep.subr.mxu0 0.0
    %598 = vmatpush1.msra.mxu0 0.0
    %599 = vmatprep.subr.mxu0 0.0
    %600 = vmatpush1.msra.mxu0 0.0
    %601 = vmatprep.subr.mxu0 0.0
    %602 = vmatpush1.msra.mxu0 0.0
    %603 = vmatprep.mubr.f32.mxu0 0.0
    %604 = vmatmul.mubr.f32.gmra.mrb[0].mxu0 %v537
    %v605 = vpop.f32.mrb[0].mxu0
    %v606 = vadd.f32 0.0, %v605
    %v607 = vpop.f32.mrb[0].mxu0
    %608 = vdwg.mxu0
    %609 = vrot.lane.b32.xlu0 %v111, 104
    %v610 = vpop.permute.xlu0 %609
    %611 = vrot.lane.b32.xlu0 %v111, 72
    %v612 = vpop.permute.xlu0 %611
    %v613 = vsel %vm117, %v610, 0
    %v615 = vsel %vm117, %v612, 0
    %617 = vmatprep.subr.mxu0 0.0
    %618 = vmatpush1.xpose.msra.mxu0 %v615
    %619 = vmatprep.subr.mxu0 0.0
    %620 = vmatpush1.xpose.msra.mxu0 0.0
    %621 = vmatprep.subr.mxu0 0.0
    %622 = vmatpush1.xpose.msra.mxu0 0.0
    %623 = vmatprep.subr.mxu0 0.0
    %624 = vmatpush1.xpose.msra.mxu0 0.0
    %625 = vmatprep.subr.mxu0 0.0
    %626 = vmatpush1.xpose.msra.mxu0 0.0
    %627 = vmatprep.subr.mxu0 0.0
    %628 = vmatpush1.xpose.msra.mxu0 0.0
    %629 = vmatprep.subr.mxu0 0.0
    %630 = vmatpush1.xpose.msra.mxu0 0.0
    %631 = vmatprep.subr.mxu0 0.0
    %632 = vmatpush1.xpose.msra.mxu0 0.0
    %633 = vmatprep.subr.mxu0 0.0
    %634 = vmatpush1.xpose.msra.mxu0 0.0
    %635 = vmatprep.subr.mxu0 0.0
    %636 = vmatpush1.xpose.msra.mxu0 0.0
    %637 = vmatprep.subr.mxu0 0.0
    %638 = vmatpush1.xpose.msra.mxu0 0.0
    %639 = vmatprep.subr.mxu0 0.0
    %640 = vmatpush1.xpose.msra.mxu0 0.0
    %641 = vmatprep.subr.mxu0 0.0
    %642 = vmatpush1.xpose.msra.mxu0 0.0
    %643 = vmatprep.subr.mxu0 0.0
    %644 = vmatpush1.xpose.msra.mxu0 0.0
    %645 = vmatprep.subr.mxu0 0.0
    %646 = vmatpush1.xpose.msra.mxu0 0.0
    %647 = vmatprep.subr.mxu0 0.0
    %648 = vmatpush1.xpose.msra.mxu0 0.0
    %649 = vmatprep.subr.mxu0 0.0
    %650 = vmatpush1.xpose.msra.mxu0 0.0
    %651 = vmatprep.subr.mxu0 0.0
    %652 = vmatpush1.xpose.msra.mxu0 0.0
    %653 = vmatprep.subr.mxu0 0.0
    %654 = vmatpush1.xpose.msra.mxu0 0.0
    %655 = vmatprep.subr.mxu0 0.0
    %656 = vmatpush1.xpose.msra.mxu0 0.0
    %657 = vmatprep.subr.mxu0 0.0
    %658 = vmatpush1.xpose.msra.mxu0 0.0
    %659 = vmatprep.subr.mxu0 0.0
    %660 = vmatpush1.xpose.msra.mxu0 0.0
    %661 = vmatprep.subr.mxu0 0.0
    %662 = vmatpush1.xpose.msra.mxu0 0.0
    %663 = vmatprep.subr.mxu0 0.0
    %664 = vmatpush1.xpose.msra.mxu0 0.0
    %665 = vmatprep.subr.mxu0 0.0
    %666 = vmatpush1.xpose.msra.mxu0 0.0
    %667 = vmatprep.subr.mxu0 0.0
    %668 = vmatpush1.xpose.msra.mxu0 0.0
    %669 = vmatprep.subr.mxu0 0.0
    %670 = vmatpush1.xpose.msra.mxu0 0.0
    %671 = vmatprep.subr.mxu0 0.0
    %672 = vmatpush1.xpose.msra.mxu0 0.0
    %673 = vmatprep.subr.mxu0 0.0
    %674 = vmatpush1.xpose.msra.mxu0 0.0
    %675 = vmatprep.subr.mxu0 0.0
    %676 = vmatpush1.xpose.msra.mxu0 0.0
    %677 = vmatprep.subr.mxu0 0.0
    %678 = vmatpush1.xpose.msra.mxu0 0.0
    %679 = vmatprep.subr.mxu0 0.0
    %680 = vmatpush1.xpose.msra.mxu0 0.0
    %681 = vmatprep.mubr.f32.mxu0 0.0
    %682 = vmatmul.mubr.f32.gmra.mrb[0].mxu0 %v613
    %v683 = vpop.f32.mrb[0].mxu0
    %v684 = vadd.f32 %v30, %v683
    %v685 = vpop.f32.mrb[0].mxu0
    %686 = vdwg.mxu0
    %v687 = vsel %vm117, %v684, -inf
    %688 = vmax.xlane.f32.xlu0 %v687
    %v689 = vpop.xlane.xlu0 %688
    %v690 = vsub.f32 %v684, %v689
    %v691 = vmul.f32 %v690, 1.442695
    %v692 = vpow.pop %v691
    %v693 = vsel %vm117, %v692, 0.0
    %694 = vadd.xlane.f32.xlu0 %v693
    %v695 = vpop.xlane.xlu0 %694
    %v696 = vrcp.pop %v695
    %v697 = vmul.f32 %v692, %v696
    %698 = vrot.lane.b32.xlu0 %v111, 40
    %v699 = vpop.permute.xlu0 %698
    %v702 = vsel %vm117, %v697, 0
    %704 = vmatprep.subr.mxu0 0.0
    %705 = vmatpush1.msra.mxu0 %v699
    %706 = vmatprep.subr.mxu0 0.0
    %707 = vmatpush1.msra.mxu0 0.0
    %708 = vmatprep.subr.mxu0 0.0
    %709 = vmatpush1.msra.mxu0 0.0
    %710 = vmatprep.subr.mxu0 0.0
    %711 = vmatpush1.msra.mxu0 0.0
    %712 = vmatprep.subr.mxu0 0.0
    %713 = vmatpush1.msra.mxu0 0.0
    %714 = vmatprep.subr.mxu0 0.0
    %715 = vmatpush1.msra.mxu0 0.0
    %716 = vmatprep.subr.mxu0 0.0
    %717 = vmatpush1.msra.mxu0 0.0
    %718 = vmatprep.subr.mxu0 0.0
    %719 = vmatpush1.msra.mxu0 0.0
    %720 = vmatprep.subr.mxu0 0.0
    %721 = vmatpush1.msra.mxu0 0.0
    %722 = vmatprep.subr.mxu0 0.0
    %723 = vmatpush1.msra.mxu0 0.0
    %724 = vmatprep.subr.mxu0 0.0
    %725 = vmatpush1.msra.mxu0 0.0
    %726 = vmatprep.subr.mxu0 0.0
    %727 = vmatpush1.msra.mxu0 0.0
    %728 = vmatprep.subr.mxu0 0.0
    %729 = vmatpush1.msra.mxu0 0.0
    %730 = vmatprep.subr.mxu0 0.0
    %731 = vmatpush1.msra.mxu0 0.0
    %732 = vmatprep.subr.mxu0 0.0
    %733 = vmatpush1.msra.mxu0 0.0
    %734 = vmatprep.subr.mxu0 0.0
    %735 = vmatpush1.msra.mxu0 0.0
    %736 = vmatprep.subr.mxu0 0.0
    %737 = vmatpush1.msra.mxu0 0.0
    %738 = vmatprep.subr.mxu0 0.0
    %739 = vmatpush1.msra.mxu0 0.0
    %740 = vmatprep.subr.mxu0 0.0
    %741 = vmatpush1.msra.mxu0 0.0
    %742 = vmatprep.subr.mxu0 0.0
    %743 = vmatpush1.msra.mxu0 0.0
    %744 = vmatprep.subr.mxu0 0.0
    %745 = vmatpush1.msra.mxu0 0.0
    %746 = vmatprep.subr.mxu0 0.0
    %747 = vmatpush1.msra.mxu0 0.0
    %748 = vmatprep.subr.mxu0 0.0
    %749 = vmatpush1.msra.mxu0 0.0
    %750 = vmatprep.subr.mxu0 0.0
    %751 = vmatpush1.msra.mxu0 0.0
    %752 = vmatprep.subr.mxu0 0.0
    %753 = vmatpush1.msra.mxu0 0.0
    %754 = vmatprep.subr.mxu0 0.0
    %755 = vmatpush1.msra.mxu0 0.0
    %756 = vmatprep.subr.mxu0 0.0
    %757 = vmatpush1.msra.mxu0 0.0
    %758 = vmatprep.subr.mxu0 0.0
    %759 = vmatpush1.msra.mxu0 0.0
    %760 = vmatprep.subr.mxu0 0.0
    %761 = vmatpush1.msra.mxu0 0.0
    %762 = vmatprep.subr.mxu0 0.0
    %763 = vmatpush1.msra.mxu0 0.0
    %764 = vmatprep.subr.mxu0 0.0
    %765 = vmatpush1.msra.mxu0 0.0
    %766 = vmatprep.subr.mxu0 0.0
    %767 = vmatpush1.msra.mxu0 0.0
    %768 = vmatprep.mubr.f32.mxu0 0.0
    %769 = vmatmul.mubr.f32.gmra.mrb[0].mxu0 %v702
    %v770 = vpop.f32.mrb[0].mxu0
    %v771 = vadd.f32 0.0, %v770
    %v772 = vpop.f32.mrb[0].mxu0
    %773 = vdwg.mxu0
    %775 = vrot.lane.b32.xlu0 %v441, 8
    %v776 = vpop.permute.xlu0 %775
    %779 = vrot.lane.b32.xlu0 %v606, 16
    %v780 = vpop.permute.xlu0 %779
    %783 = vrot.lane.b32.xlu0 %v771, 24
    %v784 = vpop.permute.xlu0 %783
    %v786 = vsel %vm117, %v276, %v776
    %vm787 = vcmask 130048
    %v788 = vsel %vm787, %v786, %v780
    %vm789 = vcmask 195584
    %v790 = vsel %vm789, %v788, %v784
    %v791 = vld [vmem:[#allocation2 + $0x20] sm:$0xff]
    %v792 = vld [vmem:[#allocation2 + $0x28] sm:$0xff]
    %v793 = vld [vmem:[#allocation2 + $0x30] sm:$0xff]
    %v794 = vld [vmem:[#allocation2 + $0x38] sm:$0xff]
    %v795 = vld [vmem:[#allocation2 + $0xa1] sm:$0x1]
    %v796 = vlaneseq
    %v797 = vshrl.u32 %v796, 7
    %v798 = vsub.s32 0, %v797
    %v799 = vrot.slane %v795, %v798
    %v801 = vsel %vm40, %v790, 0
    %803 = vmatprep.subr.mxu0 0.0
    %804 = vmatpush1.msra.mxu0 %v791
    %805 = vmatprep.subr.mxu0 0.0
    %806 = vmatpush1.msra.mxu0 %v792
    %807 = vmatprep.subr.mxu0 0.0
    %808 = vmatpush1.msra.mxu0 %v793
    %809 = vmatprep.subr.mxu0 0.0
    %810 = vmatpush1.msra.mxu0 %v794
    %811 = vmatprep.subr.mxu0 0.0
    %812 = vmatpush1.msra.mxu0 0.0
    %813 = vmatprep.subr.mxu0 0.0
    %814 = vmatpush1.msra.mxu0 0.0
    %815 = vmatprep.subr.mxu0 0.0
    %816 = vmatpush1.msra.mxu0 0.0
    %817 = vmatprep.subr.mxu0 0.0
    %818 = vmatpush1.msra.mxu0 0.0
    %819 = vmatprep.subr.mxu0 0.0
    %820 = vmatpush1.msra.mxu0 0.0
    %821 = vmatprep.subr.mxu0 0.0
    %822 = vmatpush1.msra.mxu0 0.0
    %823 = vmatprep.subr.mxu0 0.0
    %824 = vmatpush1.msra.mxu0 0.0
    %825 = vmatprep.subr.mxu0 0.0
    %826 = vmatpush1.msra.mxu0 0.0
    %827 = vmatprep.subr.mxu0 0.0
    %828 = vmatpush1.msra.mxu0 0.0
    %829 = vmatprep.subr.mxu0 0.0
    %830 = vmatpush1.msra.mxu0 0.0
    %831 = vmatprep.subr.mxu0 0.0
    %832 = vmatpush1.msra.mxu0 0.0
    %833 = vmatprep.subr.mxu0 0.0
    %834 = vmatpush1.msra.mxu0 0.0
    %835 = vmatprep.subr.mxu0 0.0
    %836 = vmatpush1.msra.mxu0 0.0
    %837 = vmatprep.subr.mxu0 0.0
    %838 = vmatpush1.msra.mxu0 0.0
    %839 = vmatprep.subr.mxu0 0.0
    %840 = vmatpush1.msra.mxu0 0.0
    %841 = vmatprep.subr.mxu0 0.0
    %842 = vmatpush1.msra.mxu0 0.0
    %843 = vmatprep.subr.mxu0 0.0
    %844 = vmatpush1.msra.mxu0 0.0
    %845 = vmatprep.subr.mxu0 0.0
    %846 = vmatpush1.msra.mxu0 0.0
    %847 = vmatprep.subr.mxu0 0.0
    %848 = vmatpush1.msra.mxu0 0.0
    %849 = vmatprep.subr.mxu0 0.0
    %850 = vmatpush1.msra.mxu0 0.0
    %851 = vmatprep.subr.mxu0 0.0
    %852 = vmatpush1.msra.mxu0 0.0
    %853 = vmatprep.subr.mxu0 0.0
    %854 = vmatpush1.msra.mxu0 0.0
    %855 = vmatprep.subr.mxu0 0.0
    %856 = vmatpush1.msra.mxu0 0.0
    %857 = vmatprep.subr.mxu0 0.0
    %858 = vmatpush1.msra.mxu0 0.0
    %859 = vmatprep.subr.mxu0 0.0
    %860 = vmatpush1.msra.mxu0 0.0
    %861 = vmatprep.subr.mxu0 0.0
    %862 = vmatpush1.msra.mxu0 0.0
    %863 = vmatprep.subr.mxu0 0.0
    %864 = vmatpush1.msra.mxu0 0.0
    %865 = vmatprep.subr.mxu0 0.0
    %866 = vmatpush1.msra.mxu0 0.0
    %867 = vmatprep.mubr.f32.mxu0 0.0
    %868 = vmatmul.mubr.f32.gmra.mrb[0].mxu0 %v801
    %v869 = vpop.f32.mrb[0].mxu0
    %v870 = vadd.f32 %v799, %v869
    %v871 = vpop.f32.mrb[0].mxu0
    %872 = vdwg.mxu0
    %v873 = vadd.f32 %v870, 0.0
    %v874 = vadd.f32 %v873, %v25
    %v875 = vld [vmem:[#allocation2 + $0xa2] sm:$0x1]
    %v876 = vld [vmem:[#allocation2 + $0xa3] sm:$0x1]
    %v877 = vsel %vm40, %v874, 0.0
    %878 = vadd.xlane.f32.xlu0 %v877
    %v879 = vpop.xlane.xlu0 %878
    %v880 = vrcp.pop 32.0
    %v881 = vmul.f32 %v879, %v880
    %v882 = vsub.f32 %v874, %v881
    %v883 = vmul.f32 %v882, %v882
    %v884 = vsel %vm40, %v883, 0.0
    %885 = vadd.xlane.f32.xlu0 %v884
    %v886 = vpop.xlane.xlu0 %885
    %v887 = vmul.f32 %v886, %v880
    %v888 = vadd.f32 %v887, 1e-12
    %v889 = vrsqrt.pop %v888
    %v890 = vmul.f32 %v882, %v889
    %v891 = vlaneseq
    %v892 = vshrl.u32 %v891, 7
    %v893 = vsub.s32 0, %v892
    %v894 = vrot.slane %v875, %v893
    %v895 = vmul.f32 %v890, %v894
    %v896 = vlaneseq
    %v897 = vshrl.u32 %v896, 7
    %v898 = vsub.s32 0, %v897
    %v899 = vrot.slane %v876, %v898
    %v900 = vadd.f32 %v895, %v899
    %v901 = vld [vmem:[#allocation2 + $0x40] sm:$0xff]
    %v902 = vld [vmem:[#allocation2 + $0x48] sm:$0xff]
    %v903 = vld [vmem:[#allocation2 + $0x50] sm:$0xff]
    %v904 = vld [vmem:[#allocation2 + $0x58] sm:$0xff]
    %v905 = vld [vmem:[#allocation2 + $0xa4] sm:$0x1]
    %v906 = vlaneseq
    %v907 = vshrl.u32 %v906, 7
    %v908 = vsub.s32 0, %v907
    %v909 = vrot.slane %v905, %v908
    %v911 = vsel %vm40, %v900, 0
    %913 = vmatprep.subr.mxu0 0.0
    %914 = vmatpush1.msra.mxu0 %v901
    %915 = vmatprep.subr.mxu0 0.0
    %916 = vmatpush1.msra.mxu0 %v902
    %917 = vmatprep.subr.mxu0 0.0
    %918 = vmatpush1.msra.mxu0 %v903
    %919 = vmatprep.subr.mxu0 0.0
    %920 = vmatpush1.msra.mxu0 %v904
    %921 = vmatprep.subr.mxu0 0.0
    %922 = vmatpush1.msra.mxu0 0.0
    %923 = vmatprep.subr.mxu0 0.0
    %924 = vmatpush1.msra.mxu0 0.0
    %925 = vmatprep.subr.mxu0 0.0
    %926 = vmatpush1.msra.mxu0 0.0
    %927 = vmatprep.subr.mxu0 0.0
    %928 = vmatpush1.msra.mxu0 0.0
    %929 = vmatprep.subr.mxu0 0.0
    %930 = vmatpush1.msra.mxu0 0.0
    %931 = vmatprep.subr.mxu0 0.0
    %932 = vmatpush1.msra.mxu0 0.0
    %933 = vmatprep.subr.mxu0 0.0
    %934 = vmatpush1.msra.mxu0 0.0
    %935 = vmatprep.subr.mxu0 0.0
    %936 = vmatpush1.msra.mxu0 0.0
    %937 = vmatprep.subr.mxu0 0.0
    %938 = vmatpush1.msra.mxu0 0.0
    %939 = vmatprep.subr.mxu0 0.0
    %940 = vmatpush1.msra.mxu0 0.0
    %941 = vmatprep.subr.mxu0 0.0
    %942 = vmatpush1.msra.mxu0 0.0
    %943 = vmatprep.subr.mxu0 0.0
    %944 = vmatpush1.msra.mxu0 0.0
    %945 = vmatprep.subr.mxu0 0.0
    %946 = vmatpush1.msra.mxu0 0.0
    %947 = vmatprep.subr.mxu0 0.0
    %948 = vmatpush1.msra.mxu0 0.0
    %949 = vmatprep.subr.mxu0 0.0
    %950 = vmatpush1.msra.mxu0 0.0
    %951 = vmatprep.subr.mxu0 0.0
    %952 = vmatpush1.msra.mxu0 0.0
    %953 = vmatprep.subr.mxu0 0.0
    %954 = vmatpush1.msra.mxu0 0.0
    %955 = vmatprep.subr.mxu0 0.0
    %956 = vmatpush1.msra.mxu0 0.0
    %957 = vmatprep.subr.mxu0 0.0
    %958 = vmatpush1.msra.mxu0 0.0
    %959 = vmatprep.subr.mxu0 0.0
    %960 = vmatpush1.msra.mxu0 0.0
    %961 = vmatprep.subr.mxu0 0.0
    %962 = vmatpush1.msra.mxu0 0.0
    %963 = vmatprep.subr.mxu0 0.0
    %964 = vmatpush1.msra.mxu0 0.0
    %965 = vmatprep.subr.mxu0 0.0
    %966 = vmatpush1.msra.mxu0 0.0
    %967 = vmatprep.subr.mxu0 0.0
    %968 = vmatpush1.msra.mxu0 0.0
    %969 = vmatprep.subr.mxu0 0.0
    %970 = vmatpush1.msra.mxu0 0.0
    %971 = vmatprep.subr.mxu0 0.0
    %972 = vmatpush1.msra.mxu0 0.0
    %973 = vmatprep.subr.mxu0 0.0
    %974 = vmatpush1.msra.mxu0 0.0
    %975 = vmatprep.subr.mxu0 0.0
    %976 = vmatpush1.msra.mxu0 0.0
    %977 = vmatprep.mubr.f32.mxu0 0.0
    %978 = vmatmul.mubr.f32.gmra.mrb[0].mxu0 %v911
    %v979 = vpop.f32.mrb[0].mxu0
    %v980 = vadd.f32 %v909, %v979
    %v981 = vpop.f32.mrb[0].mxu0
    %982 = vdwg.mxu0
    %v983 = vmul.f32 %v980, 0.5
    %v984 = vmul.f32 %v980, 0.044715
    %v985 = vmul.f32 %v984, %v980
    %v986 = vmul.f32 %v985, %v980
    %v987 = vadd.f32 %v980, %v986
    %v988 = vmul.f32 %v987, 0.7978846
    %v989 = vtanh.pop %v988
    %v990 = vadd.f32 %v989, 1.0
    %v991 = vmul.f32 %v983, %v990
    %v992 = vld [vmem:[#allocation2 + $0x60] sm:$0xff]
    %v993 = vld [vmem:[#allocation2 + $0x68] sm:$0xff]
    %v994 = vld [vmem:[#allocation2 + $0x70] sm:$0xff]
    %v995 = vld [vmem:[#allocation2 + $0x78] sm:$0xff]
    %v996 = vld [vmem:[#allocation2 + $0x80] sm:$0xff]
    %v997 = vld [vmem:[#allocation2 + $0x88] sm:$0xff]
    %v998 = vld [vmem:[#allocation2 + $0x90] sm:$0xff]
    %v999 = vld [vmem:[#allocation2 + $0x98] sm:$0xff]
    %v1000 = vld [vmem:[#allocation2 + $0xa5] sm:$0x1]
    %v1001 = vlaneseq
    %v1002 = vshrl.u32 %v1001, 7
    %v1003 = vsub.s32 0, %v1002
    %v1004 = vrot.slane %v1000, %v1003
    %vm1005 = vcmask 523264
    %v1007 = vsel %vm1005, %v991, 0
    %1009 = vmatprep.subr.mxu0 0.0
    %1010 = vmatpush1.msra.mxu0 %v992
    %1011 = vmatprep.subr.mxu0 0.0
    %1012 = vmatpush1.msra.mxu0 %v993
    %1013 = vmatprep.subr.mxu0 0.0
    %1014 = vmatpush1.msra.mxu0 %v994
    %1015 = vmatprep.subr.mxu0 0.0
    %1016 = vmatpush1.msra.mxu0 %v995
    %1017 = vmatprep.subr.mxu0 0.0
    %1018 = vmatpush1.msra.mxu0 %v996
    %1019 = vmatprep.subr.mxu0 0.0
    %1020 = vmatpush1.msra.mxu0 %v997
    %1021 = vmatprep.subr.mxu0 0.0
    %1022 = vmatpush1.msra.mxu0 %v998
    %1023 = vmatprep.subr.mxu0 0.0
    %1024 = vmatpush1.msra.mxu0 %v999
    %1025 = vmatprep.subr.mxu0 0.0
    %1026 = vmatpush1.msra.mxu0 0.0
    %1027 = vmatprep.subr.mxu0 0.0
    %1028 = vmatpush1.msra.mxu0 0.0
    %1029 = vmatprep.subr.mxu0 0.0
    %1030 = vmatpush1.msra.mxu0 0.0
    %1031 = vmatprep.subr.mxu0 0.0
    %1032 = vmatpush1.msra.mxu0 0.0
    %1033 = vmatprep.subr.mxu0 0.0
    %1034 = vmatpush1.msra.mxu0 0.0
    %1035 = vmatprep.subr.mxu0 0.0
    %1036 = vmatpush1.msra.mxu0 0.0
    %1037 = vmatprep.subr.mxu0 0.0
    %1038 = vmatpush1.msra.mxu0 0.0
    %1039 = vmatprep.subr.mxu0 0.0
    %1040 = vmatpush1.msra.mxu0 0.0
    %1041 = vmatprep.subr.mxu0 0.0
    %1042 = vmatpush1.msra.mxu0 0.0
    %1043 = vmatprep.subr.mxu0 0.0
    %1044 = vmatpush1.msra.mxu0 0.0
    %1045 = vmatprep.subr.mxu0 0.0
    %1046 = vmatpush1.msra.mxu0 0.0
    %1047 = vmatprep.subr.mxu0 0.0
    %1048 = vmatpush1.msra.mxu0 0.0
    %1049 = vmatprep.subr.mxu0 0.0
    %1050 = vmatpush1.msra.mxu0 0.0
    %1051 = vmatprep.subr.mxu0 0.0
    %1052 = vmatpush1.msra.mxu0 0.0
    %1053 = vmatprep.subr.mxu0 0.0
    %1054 = vmatpush1.msra.mxu0 0.0
    %1055 = vmatprep.subr.mxu0 0.0
    %1056 = vmatpush1.msra.mxu0 0.0
    %1057 = vmatprep.subr.mxu0 0.0
    %1058 = vmatpush1.msra.mxu0 0.0
    %1059 = vmatprep.subr.mxu0 0.0
    %1060 = vmatpush1.msra.mxu0 0.0
    %1061 = vmatprep.subr.mxu0 0.0
    %1062 = vmatpush1.msra.mxu0 0.0
    %1063 = vmatprep.subr.mxu0 0.0
    %1064 = vmatpush1.msra.mxu0 0.0
    %1065 = vmatprep.subr.mxu0 0.0
    %1066 = vmatpush1.msra.mxu0 0.0
    %1067 = vmatprep.subr.mxu0 0.0
    %1068 = vmatpush1.msra.mxu0 0.0
    %1069 = vmatprep.subr.mxu0 0.0
    %1070 = vmatpush1.msra.mxu0 0.0
    %1071 = vmatprep.subr.mxu0 0.0
    %1072 = vmatpush1.msra.mxu0 0.0
    %1073 = vmatprep.mubr.f32.mxu0 0.0
    %1074 = vmatmul.mubr.f32.gmra.mrb[0].mxu0 %v1007
    %v1075 = vpop.f32.mrb[0].mxu0
    %v1076 = vadd.f32 %v1004, %v1075
    %v1077 = vpop.f32.mrb[0].mxu0
    %1078 = vdwg.mxu0
    %v1079 = vadd.f32 %v1076, 0.0
    %v1080 = vadd.f32 %v1079, %v900
    %v1081 = vld [vmem:[#allocation2 + $0xa6] sm:$0x1]
    %v1082 = vld [vmem:[#allocation2 + $0xa7] sm:$0x1]
    %v1083 = vsel %vm40, %v1080, 0.0
    %1084 = vadd.xlane.f32.xlu0 %v1083
    %v1085 = vpop.xlane.xlu0 %1084
    %v1086 = vmul.f32 %v1085, %v880
    %v1087 = vsub.f32 %v1080, %v1086
    %v1088 = vmul.f32 %v1087, %v1087
    %v1089 = vsel %vm40, %v1088, 0.0
    %1090 = vadd.xlane.f32.xlu0 %v1089
    %v1091 = vpop.xlane.xlu0 %1090
    %v1092 = vmul.f32 %v1091, %v880
    %v1093 = vadd.f32 %v1092, 1e-12
    %v1094 = vrsqrt.pop %v1093
    %v1095 = vmul.f32 %v1087, %v1094
    %v1096 = vlaneseq
    %v1097 = vshrl.u32 %v1096, 7
    %v1098 = vsub.s32 0, %v1097
    %v1099 = vrot.slane %v1081, %v1098
    %v1100 = vmul.f32 %v1095, %v1099
    %v1101 = vlaneseq
    %v1102 = vshrl.u32 %v1101, 7
    %v1103 = vsub.s32 0, %v1102
    %v1104 = vrot.slane %v1082, %v1103
    %v1105 = vadd.f32 %v1100, %v1104
    %v1106 = vld [vmem:[%s1 + $0x10] sm:$0xff]
    %v1107 = vld [vmem:[#allocation2 + $0x150] sm:$0xff]
    %v1108 = vld [vmem:[#allocation2 + $0x158] sm:$0xff]
    %v1109 = vld [vmem:[#allocation2 + $0x160] sm:$0xff]
    %v1110 = vld [vmem:[#allocation2 + $0x168] sm:$0xff]
    %v1111 = vld [vmem:[#allocation2 + $0x170] sm:$0x1]
    %v1112 = vld [vmem:[#allocation2 + $0x178] sm:$0xff]
    %v1113 = vlaneseq
    %v1114 = vshrl.u32 %v1113, 7
    %v1115 = vsub.s32 0, %v1114
    %v1116 = vrot.slane %v1111, %v1115
    %v1118 = vsel %vm40, %v1106, 0
    %1120 = vmatprep.subr.mxu0 0.0
    %1121 = vmatpush1.msra.mxu0 %v1107
    %1122 = vmatprep.subr.mxu0 0.0
    %1123 = vmatpush1.msra.mxu0 %v1108
    %1124 = vmatprep.subr.mxu0 0.0
    %1125 = vmatpush1.msra.mxu0 %v1109
    %1126 = vmatprep.subr.mxu0 0.0
    %1127 = vmatpush1.msra.mxu0 %v1110
    %1128 = vmatprep.subr.mxu0 0.0
    %1129 = vmatpush1.msra.mxu0 0.0
    %1130 = vmatprep.subr.mxu0 0.0
    %1131 = vmatpush1.msra.mxu0 0.0
    %1132 = vmatprep.subr.mxu0 0.0
    %1133 = vmatpush1.msra.mxu0 0.0
    %1134 = vmatprep.subr.mxu0 0.0
    %1135 = vmatpush1.msra.mxu0 0.0
    %1136 = vmatprep.subr.mxu0 0.0
    %1137 = vmatpush1.msra.mxu0 0.0
    %1138 = vmatprep.subr.mxu0 0.0
    %1139 = vmatpush1.msra.mxu0 0.0
    %1140 = vmatprep.subr.mxu0 0.0
    %1141 = vmatpush1.msra.mxu0 0.0
    %1142 = vmatprep.subr.mxu0 0.0
    %1143 = vmatpush1.msra.mxu0 0.0
    %1144 = vmatprep.subr.mxu0 0.0
    %1145 = vmatpush1.msra.mxu0 0.0
    %1146 = vmatprep.subr.mxu0 0.0
    %1147 = vmatpush1.msra.mxu0 0.0
    %1148 = vmatprep.subr.mxu0 0.0
    %1149 = vmatpush1.msra.mxu0 0.0
    %1150 = vmatprep.subr.mxu0 0.0
    %1151 = vmatpush1.msra.mxu0 0.0
    %1152 = vmatprep.subr.mxu0 0.0
    %1153 = vmatpush1.msra.mxu0 0.0
    %1154 = vmatprep.subr.mxu0 0.0
    %1155 = vmatpush1.msra.mxu0 0.0
    %1156 = vmatprep.subr.mxu0 0.0
    %1157 = vmatpush1.msra.mxu0 0.0
    %1158 = vmatprep.subr.mxu0 0.0
    %1159 = vmatpush1.msra.mxu0 0.0
    %1160 = vmatprep.subr.mxu0 0.0
    %1161 = vmatpush1.msra.mxu0 0.0
    %1162 = vmatprep.subr.mxu0 0.0
    %1163 = vmatpush1.msra.mxu0 0.0
    %1164 = vmatprep.subr.mxu0 0.0
    %1165 = vmatpush1.msra.mxu0 0.0
    %1166 = vmatprep.subr.mxu0 0.0
    %1167 = vmatpush1.msra.mxu0 0.0
    %1168 = vmatprep.subr.mxu0 0.0
    %1169 = vmatpush1.msra.mxu0 0.0
    %1170 = vmatprep.subr.mxu0 0.0
    %1171 = vmatpush1.msra.mxu0 0.0
    %1172 = vmatprep.subr.mxu0 0.0
    %1173 = vmatpush1.msra.mxu0 0.0
    %1174 = vmatprep.subr.mxu0 0.0
    %1175 = vmatpush1.msra.mxu0 0.0
    %1176 = vmatprep.subr.mxu0 0.0
    %1177 = vmatpush1.msra.mxu0 0.0
    %1178 = vmatprep.subr.mxu0 0.0
    %1179 = vmatpush1.msra.mxu0 0.0
    %1180 = vmatprep.subr.mxu0 0.0
    %1181 = vmatpush1.msra.mxu0 0.0
    %1182 = vmatprep.subr.mxu0 0.0
    %1183 = vmatpush1.msra.mxu0 0.0
    %1184 = vmatprep.mubr.f32.mxu0 0.0
    %1185 = vmatmul.mubr.f32.gmra.mrb[0].mxu0 %v1118
    %v1186 = vpop.f32.mrb[0].mxu0
    %v1187 = vadd.f32 %v1116, %v1186
    %v1188 = vpop.f32.mrb[0].mxu0
    %1189 = vdwg.mxu0
    %v1190 = vmul.f32 %v1187, 0.5
    %v1191 = vmul.f32 %v1187, 0.70710677
    %v1192 = vand.u32 2147483647, %v1191
    %v1193 = vmul.f32 %v1192, 0.3275911
    %v1194 = vadd.f32 %v1193, 1.0
    %v1195 = vrcp.pop %v1194
    %v1196 = vmul.f32 1.0, %v1195
    %v1197 = vmul.f32 %v1196, 1.0614054
    %v1198 = vadd.f32 %v1197, -1.4531521
    %v1199 = vmul.f32 %v1198, %v1196
    %v1200 = vadd.f32 %v1199, 1.4214138
    %v1201 = vmul.f32 %v1200, %v1196
    %v1202 = vadd.f32 %v1201, -0.28449672
    %v1203 = vmul.f32 %v1202, %v1196
    %v1204 = vadd.f32 %v1203, 0.2548296
    %v1205 = vmul.f32 %v1204, %v1196
    %v1206 = vsub.f32 0.0, %v1192
    %v1207 = vmul.f32 %v1206, %v1192
    %v1208 = vmul.f32 %v1207, 1.442695
    %v1209 = vpow.pop %v1208
    %v1210 = vmul.f32 %v1205, %v1209
    %v1211 = vsub.f32 1.0, %v1210
    %vm1212 = vcmp.ge.f32.partialorder %v1191, 0.0
    %v1213 = vsub.f32 0.0, %v1211
    %v1214 = vsel %vm1212, %v1211, %v1213
    %v1215 = vadd.f32 %v1214, 1.0
    %v1216 = vmul.f32 %v1190, %v1215
    %v1217 = vmul.f32 %v1112, %v1216
    %v1218 = vld [vmem:[%s1 + $0x18] sm:$0xff]
    %v1219 = vld [vmem:[#allocation2 + $0x180] sm:$0xff]
    %v1220 = vld [vmem:[#allocation2 + $0x188] sm:$0xff]
    %v1221 = vld [vmem:[#allocation2 + $0x190] sm:$0xff]
    %v1222 = vld [vmem:[#allocation2 + $0x198] sm:$0xff]
    %v1223 = vld [vmem:[#allocation2 + $0x1a0] sm:$0x1]
    %v1224 = vld [vmem:[#allocation2 + $0x1a8] sm:$0xff]
    %v1225 = vlaneseq
    %v1226 = vshrl.u32 %v1225, 7
    %v1227 = vsub.s32 0, %v1226
    %v1228 = vrot.slane %v1223, %v1227
    %v1230 = vsel %vm40, %v1218, 0
    %1232 = vmatprep.subr.mxu0 0.0
    %1233 = vmatpush1.msra.mxu0 %v1219
    %1234 = vmatprep.subr.mxu0 0.0
    %1235 = vmatpush1.msra.mxu0 %v1220
    %1236 = vmatprep.subr.mxu0 0.0
    %1237 = vmatpush1.msra.mxu0 %v1221
    %1238 = vmatprep.subr.mxu0 0.0
    %1239 = vmatpush1.msra.mxu0 %v1222
    %1240 = vmatprep.subr.mxu0 0.0
    %1241 = vmatpush1.msra.mxu0 0.0
    %1242 = vmatprep.subr.mxu0 0.0
    %1243 = vmatpush1.msra.mxu0 0.0
    %1244 = vmatprep.subr.mxu0 0.0
    %1245 = vmatpush1.msra.mxu0 0.0
    %1246 = vmatprep.subr.mxu0 0.0
    %1247 = vmatpush1.msra.mxu0 0.0
    %1248 = vmatprep.subr.mxu0 0.0
    %1249 = vmatpush1.msra.mxu0 0.0
    %1250 = vmatprep.subr.mxu0 0.0
    %1251 = vmatpush1.msra.mxu0 0.0
    %1252 = vmatprep.subr.mxu0 0.0
    %1253 = vmatpush1.msra.mxu0 0.0
    %1254 = vmatprep.subr.mxu0 0.0
    %1255 = vmatpush1.msra.mxu0 0.0
    %1256 = vmatprep.subr.mxu0 0.0
    %1257 = vmatpush1.msra.mxu0 0.0
    %1258 = vmatprep.subr.mxu0 0.0
    %1259 = vmatpush1.msra.mxu0 0.0
    %1260 = vmatprep.subr.mxu0 0.0
    %1261 = vmatpush1.msra.mxu0 0.0
    %1262 = vmatprep.subr.mxu0 0.0
    %1263 = vmatpush1.msra.mxu0 0.0
    %1264 = vmatprep.subr.mxu0 0.0
    %1265 = vmatpush1.msra.mxu0 0.0
    %1266 = vmatprep.subr.mxu0 0.0
    %1267 = vmatpush1.msra.mxu0 0.0
    %1268 = vmatprep.subr.mxu0 0.0
    %1269 = vmatpush1.msra.mxu0 0.0
    %1270 = vmatprep.subr.mxu0 0.0
    %1271 = vmatpush1.msra.mxu0 0.0
    %1272 = vmatprep.subr.mxu0 0.0
    %1273 = vmatpush1.msra.mxu0 0.0
    %1274 = vmatprep.subr.mxu0 0.0
    %1275 = vmatpush1.msra.mxu0 0.0
    %1276 = vmatprep.subr.mxu0 0.0
    %1277 = vmatpush1.msra.mxu0 0.0
    %1278 = vmatprep.subr.mxu0 0.0
    %1279 = vmatpush1.msra.mxu0 0.0
    %1280 = vmatprep.subr.mxu0 0.0
    %1281 = vmatpush1.msra.mxu0 0.0
    %1282 = vmatprep.subr.mxu0 0.0
    %1283 = vmatpush1.msra.mxu0 0.0
    %1284 = vmatprep.subr.mxu0 0.0
    %1285 = vmatpush1.msra.mxu0 0.0
    %1286 = vmatprep.subr.mxu0 0.0
    %1287 = vmatpush1.msra.mxu0 0.0
    %1288 = vmatprep.subr.mxu0 0.0
    %1289 = vmatpush1.msra.mxu0 0.0
    %1290 = vmatprep.subr.mxu0 0.0
    %1291 = vmatpush1.msra.mxu0 0.0
    %1292 = vmatprep.subr.mxu0 0.0
    %1293 = vmatpush1.msra.mxu0 0.0
    %1294 = vmatprep.subr.mxu0 0.0
    %1295 = vmatpush1.msra.mxu0 0.0
    %1296 = vmatprep.mubr.f32.mxu0 0.0
    %1297 = vmatmul.mubr.f32.gmra.mrb[0].mxu0 %v1230
    %v1298 = vpop.f32.mrb[0].mxu0
    %v1299 = vadd.f32 %v1228, %v1298
    %v1300 = vpop.f32.mrb[0].mxu0
    %1301 = vdwg.mxu0
    %v1302 = vmul.f32 %v1299, 0.5
    %v1303 = vmul.f32 %v1299, 0.70710677
    %v1304 = vand.u32 2147483647, %v1303
    %v1305 = vmul.f32 %v1304, 0.3275911
    %v1306 = vadd.f32 %v1305, 1.0
    %v1307 = vrcp.pop %v1306
    %v1308 = vmul.f32 1.0, %v1307
    %v1309 = vmul.f32 %v1308, 1.0614054
    %v1310 = vadd.f32 %v1309, -1.4531521
    %v1311 = vmul.f32 %v1310, %v1308
    %v1312 = vadd.f32 %v1311, 1.4214138
    %v1313 = vmul.f32 %v1312, %v1308
    %v1314 = vadd.f32 %v1313, -0.28449672
    %v1315 = vmul.f32 %v1314, %v1308
    %v1316 = vadd.f32 %v1315, 0.2548296
    %v1317 = vmul.f32 %v1316, %v1308
    %v1318 = vsub.f32 0.0, %v1304
    %v1319 = vmul.f32 %v1318, %v1304
    %v1320 = vmul.f32 %v1319, 1.442695
    %v1321 = vpow.pop %v1320
    %v1322 = vmul.f32 %v1317, %v1321
    %v1323 = vsub.f32 1.0, %v1322
    %vm1324 = vcmp.ge.f32.partialorder %v1303, 0.0
    %v1325 = vsub.f32 0.0, %v1323
    %v1326 = vsel %vm1324, %v1323, %v1325
    %v1327 = vadd.f32 %v1326, 1.0
    %v1328 = vmul.f32 %v1302, %v1327
    %v1329 = vmul.f32 %v1224, %v1328
    %v1330 = vld [vmem:[#allocation2 + $0xa8] sm:$0xff]
    %v1331 = vld [vmem:[#allocation2 + $0xb0] sm:$0xff]
    %v1332 = vld [vmem:[#allocation2 + $0xb8] sm:$0xff]
    %v1333 = vld [vmem:[#allocation2 + $0xc0] sm:$0xff]
    %v1334 = vld [vmem:[#allocation2 + $0x148] sm:$0x1]
    %v1335 = vlaneseq
    %v1336 = vshrl.u32 %v1335, 7
    %v1337 = vsub.s32 0, %v1336
    %v1338 = vrot.slane %v1334, %v1337
    %v1340 = vsel %vm40, %v1105, 0
    %1342 = vmatprep.subr.mxu0 0.0
    %1343 = vmatpush1.msra.mxu0 %v1330
    %1344 = vmatprep.subr.mxu0 0.0
    %1345 = vmatpush1.msra.mxu0 %v1331
    %1346 = vmatprep.subr.mxu0 0.0
    %1347 = vmatpush1.msra.mxu0 %v1332
    %1348 = vmatprep.subr.mxu0 0.0
    %1349 = vmatpush1.msra.mxu0 %v1333
    %1350 = vmatprep.subr.mxu0 0.0
    %1351 = vmatpush1.msra.mxu0 0.0
    %1352 = vmatprep.subr.mxu0 0.0
    %1353 = vmatpush1.msra.mxu0 0.0
    %1354 = vmatprep.subr.mxu0 0.0
    %1355 = vmatpush1.msra.mxu0 0.0
    %1356 = vmatprep.subr.mxu0 0.0
    %1357 = vmatpush1.msra.mxu0 0.0
    %1358 = vmatprep.subr.mxu0 0.0
    %1359 = vmatpush1.msra.mxu0 0.0
    %1360 = vmatprep.subr.mxu0 0.0
    %1361 = vmatpush1.msra.mxu0 0.0
    %1362 = vmatprep.subr.mxu0 0.0
    %1363 = vmatpush1.msra.mxu0 0.0
    %1364 = vmatprep.subr.mxu0 0.0
    %1365 = vmatpush1.msra.mxu0 0.0
    %1366 = vmatprep.subr.mxu0 0.0
    %1367 = vmatpush1.msra.mxu0 0.0
    %1368 = vmatprep.subr.mxu0 0.0
    %1369 = vmatpush1.msra.mxu0 0.0
    %1370 = vmatprep.subr.mxu0 0.0
    %1371 = vmatpush1.msra.mxu0 0.0
    %1372 = vmatprep.subr.mxu0 0.0
    %1373 = vmatpush1.msra.mxu0 0.0
    %1374 = vmatprep.subr.mxu0 0.0
    %1375 = vmatpush1.msra.mxu0 0.0
    %1376 = vmatprep.subr.mxu0 0.0
    %1377 = vmatpush1.msra.mxu0 0.0
    %1378 = vmatprep.subr.mxu0 0.0
    %1379 = vmatpush1.msra.mxu0 0.0
    %1380 = vmatprep.subr.mxu0 0.0
    %1381 = vmatpush1.msra.mxu0 0.0
    %1382 = vmatprep.subr.mxu0 0.0
    %1383 = vmatpush1.msra.mxu0 0.0
    %1384 = vmatprep.subr.mxu0 0.0
    %1385 = vmatpush1.msra.mxu0 0.0
    %1386 = vmatprep.subr.mxu0 0.0
    %1387 = vmatpush1.msra.mxu0 0.0
    %1388 = vmatprep.subr.mxu0 0.0
    %1389 = vmatpush1.msra.mxu0 0.0
    %1390 = vmatprep.subr.mxu0 0.0
    %1391 = vmatpush1.msra.mxu0 0.0
    %1392 = vmatprep.subr.mxu0 0.0
    %1393 = vmatpush1.msra.mxu0 0.0
    %1394 = vmatprep.subr.mxu0 0.0
    %1395 = vmatpush1.msra.mxu0 0.0
    %1396 = vmatprep.subr.mxu0 0.0
    %1397 = vmatpush1.msra.mxu0 0.0
    %1398 = vmatprep.subr.mxu0 0.0
    %1399 = vmatpush1.msra.mxu0 0.0
    %1400 = vmatprep.subr.mxu0 0.0
    %1401 = vmatpush1.msra.mxu0 0.0
    %1402 = vmatprep.subr.mxu0 0.0
    %1403 = vmatpush1.msra.mxu0 0.0
    %1404 = vmatprep.subr.mxu0 0.0
    %1405 = vmatpush1.msra.mxu0 0.0
    %1406 = vmatprep.mubr.f32.mxu0 0.0
    %1407 = vmatmul.mubr.f32.gmra.mrb[0].mxu0 %v1340
    %v1408 = vpop.f32.mrb[0].mxu0
    %v1409 = vadd.f32 %v1338, %v1408
    %v1410 = vpop.f32.mrb[0].mxu0
    %1411 = vdwg.mxu0
    %1413 = vrot.lane.b32.xlu0 %v1409, 96
    %v1414 = vpop.permute.xlu0 %1413
    %v1415 = vsel %vm117, %v1409, 0
    %v1417 = vsel %vm117, %v1414, 0
    %1419 = vmatprep.subr.mxu0 0.0
    %1420 = vmatpush1.xpose.msra.mxu0 %v1417
    %1421 = vmatprep.subr.mxu0 0.0
    %1422 = vmatpush1.xpose.msra.mxu0 0.0
    %1423 = vmatprep.subr.mxu0 0.0
    %1424 = vmatpush1.xpose.msra.mxu0 0.0
    %1425 = vmatprep.subr.mxu0 0.0
    %1426 = vmatpush1.xpose.msra.mxu0 0.0
    %1427 = vmatprep.subr.mxu0 0.0
    %1428 = vmatpush1.xpose.msra.mxu0 0.0
    %1429 = vmatprep.subr.mxu0 0.0
    %1430 = vmatpush1.xpose.msra.mxu0 0.0
    %1431 = vmatprep.subr.mxu0 0.0
    %1432 = vmatpush1.xpose.msra.mxu0 0.0
    %1433 = vmatprep.subr.mxu0 0.0
    %1434 = vmatpush1.xpose.msra.mxu0 0.0
    %1435 = vmatprep.subr.mxu0 0.0
    %1436 = vmatpush1.xpose.msra.mxu0 0.0
    %1437 = vmatprep.subr.mxu0 0.0
    %1438 = vmatpush1.xpose.msra.mxu0 0.0
    %1439 = vmatprep.subr.mxu0 0.0
    %1440 = vmatpush1.xpose.msra.mxu0 0.0
    %1441 = vmatprep.subr.mxu0 0.0
    %1442 = vmatpush1.xpose.msra.mxu0 0.0
    %1443 = vmatprep.subr.mxu0 0.0
    %1444 = vmatpush1.xpose.msra.mxu0 0.0
    %1445 = vmatprep.subr.mxu0 0.0
    %1446 = vmatpush1.xpose.msra.mxu0 0.0
    %1447 = vmatprep.subr.mxu0 0.0
    %1448 = vmatpush1.xpose.msra.mxu0 0.0
    %1449 = vmatprep.subr.mxu0 0.0
    %1450 = vmatpush1.xpose.msra.mxu0 0.0
    %1451 = vmatprep.subr.mxu0 0.0
    %1452 = vmatpush1.xpose.msra.mxu0 0.0
    %1453 = vmatprep.subr.mxu0 0.0
    %1454 = vmatpush1.xpose.msra.mxu0 0.0
    %1455 = vmatprep.subr.mxu0 0.0
    %1456 = vmatpush1.xpose.msra.mxu0 0.0
    %1457 = vmatprep.subr.mxu0 0.0
    %1458 = vmatpush1.xpose.msra.mxu0 0.0
    %1459 = vmatprep.subr.mxu0 0.0
    %1460 = vmatpush1.xpose.msra.mxu0 0.0
    %1461 = vmatprep.subr.mxu0 0.0
    %1462 = vmatpush1.xpose.msra.mxu0 0.0
    %1463 = vmatprep.subr.mxu0 0.0
    %1464 = vmatpush1.xpose.msra.mxu0 0.0
    %1465 = vmatprep.subr.mxu0 0.0
    %1466 = vmatpush1.xpose.msra.mxu0 0.0
    %1467 = vmatprep.subr.mxu0 0.0
    %1468 = vmatpush1.xpose.msra.mxu0 0.0
    %1469 = vmatprep.subr.mxu0 0.0
    %1470 = vmatpush1.xpose.msra.mxu0 0.0
    %1471 = vmatprep.subr.mxu0 0.0
    %1472 = vmatpush1.xpose.msra.mxu0 0.0
    %1473 = vmatprep.subr.mxu0 0.0
    %1474 = vmatpush1.xpose.msra.mxu0 0.0
    %1475 = vmatprep.subr.mxu0 0.0
    %1476 = vmatpush1.xpose.msra.mxu0 0.0
    %1477 = vmatprep.subr.mxu0 0.0
    %1478 = vmatpush1.xpose.msra.mxu0 0.0
    %1479 = vmatprep.subr.mxu0 0.0
    %1480 = vmatpush1.xpose.msra.mxu0 0.0
    %1481 = vmatprep.subr.mxu0 0.0
    %1482 = vmatpush1.xpose.msra.mxu0 0.0
    %1483 = vmatprep.mubr.f32.mxu0 0.0
    %1484 = vmatmul.mubr.f32.gmra.mrb[0].mxu0 %v1415
    %v1485 = vpop.f32.mrb[0].mxu0
    %v1486 = vadd.f32 %v30, %v1485
    %v1487 = vpop.f32.mrb[0].mxu0
    %1488 = vdwg.mxu0
    %v1489 = vsel %vm117, %v1486, -inf
    %1490 = vmax.xlane.f32.xlu0 %v1489
    %v1491 = vpop.xlane.xlu0 %1490
    %v1492 = vsub.f32 %v1486, %v1491
    %v1493 = vmul.f32 %v1492, 1.442695
    %v1494 = vpow.pop %v1493
    %v1495 = vsel %vm117, %v1494, 0.0
    %1496 = vadd.xlane.f32.xlu0 %v1495
    %v1497 = vpop.xlane.xlu0 %1496
    %v1498 = vrcp.pop %v1497
    %v1499 = vmul.f32 %v1494, %v1498
    %1500 = vrot.lane.b32.xlu0 %v1409, 64
    %v1501 = vpop.permute.xlu0 %1500
    %v1504 = vsel %vm117, %v1499, 0
    %1506 = vmatprep.subr.mxu0 0.0
    %1507 = vmatpush1.msra.mxu0 %v1501
    %1508 = vmatprep.subr.mxu0 0.0
    %1509 = vmatpush1.msra.mxu0 0.0
    %1510 = vmatprep.subr.mxu0 0.0
    %1511 = vmatpush1.msra.mxu0 0.0
    %1512 = vmatprep.subr.mxu0 0.0
    %1513 = vmatpush1.msra.mxu0 0.0
    %1514 = vmatprep.subr.mxu0 0.0
    %1515 = vmatpush1.msra.mxu0 0.0
    %1516 = vmatprep.subr.mxu0 0.0
    %1517 = vmatpush1.msra.mxu0 0.0
    %1518 = vmatprep.subr.mxu0 0.0
    %1519 = vmatpush1.msra.mxu0 0.0
    %1520 = vmatprep.subr.mxu0 0.0
    %1521 = vmatpush1.msra.mxu0 0.0
    %1522 = vmatprep.subr.mxu0 0.0
    %1523 = vmatpush1.msra.mxu0 0.0
    %1524 = vmatprep.subr.mxu0 0.0
    %1525 = vmatpush1.msra.mxu0 0.0
    %1526 = vmatprep.subr.mxu0 0.0
    %1527 = vmatpush1.msra.mxu0 0.0
    %1528 = vmatprep.subr.mxu0 0.0
    %1529 = vmatpush1.msra.mxu0 0.0
    %1530 = vmatprep.subr.mxu0 0.0
    %1531 = vmatpush1.msra.mxu0 0.0
    %1532 = vmatprep.subr.mxu0 0.0
    %1533 = vmatpush1.msra.mxu0 0.0
    %1534 = vmatprep.subr.mxu0 0.0
    %1535 = vmatpush1.msra.mxu0 0.0
    %1536 = vmatprep.subr.mxu0 0.0
    %1537 = vmatpush1.msra.mxu0 0.0
    %1538 = vmatprep.subr.mxu0 0.0
    %1539 = vmatpush1.msra.mxu0 0.0
    %1540 = vmatprep.subr.mxu0 0.0
    %1541 = vmatpush1.msra.mxu0 0.0
    %1542 = vmatprep.subr.mxu0 0.0
    %1543 = vmatpush1.msra.mxu0 0.0
    %1544 = vmatprep.subr.mxu0 0.0
    %1545 = vmatpush1.msra.mxu0 0.0
    %1546 = vmatprep.subr.mxu0 0.0
    %1547 = vmatpush1.msra.mxu0 0.0
    %1548 = vmatprep.subr.mxu0 0.0
    %1549 = vmatpush1.msra.mxu0 0.0
    %1550 = vmatprep.subr.mxu0 0.0
    %1551 = vmatpush1.msra.mxu0 0.0
    %1552 = vmatprep.subr.mxu0 0.0
    %1553 = vmatpush1.msra.mxu0 0.0
    %1554 = vmatprep.subr.mxu0 0.0
    %1555 = vmatpush1.msra.mxu0 0.0
    %1556 = vmatprep.subr.mxu0 0.0
    %1557 = vmatpush1.msra.mxu0 0.0
    %1558 = vmatprep.subr.mxu0 0.0
    %1559 = vmatpush1.msra.mxu0 0.0
    %1560 = vmatprep.subr.mxu0 0.0
    %1561 = vmatpush1.msra.mxu0 0.0
    %1562 = vmatprep.subr.mxu0 0.0
    %1563 = vmatpush1.msra.mxu0 0.0
    %1564 = vmatprep.subr.mxu0 0.0
    %1565 = vmatpush1.msra.mxu0 0.0
    %1566 = vmatprep.subr.mxu0 0.0
    %1567 = vmatpush1.msra.mxu0 0.0
    %1568 = vmatprep.subr.mxu0 0.0
    %1569 = vmatpush1.msra.mxu0 0.0
    %1570 = vmatprep.mubr.f32.mxu0 0.0
    %1571 = vmatmul.mubr.f32.gmra.mrb[0].mxu0 %v1504
    %v1572 = vpop.f32.mrb[0].mxu0
    %v1573 = vadd.f32 0.0, %v1572
    %v1574 = vpop.f32.mrb[0].mxu0
    %1575 = vdwg.mxu0
    %1576 = vrot.lane.b32.xlu0 %v1409, 120
    %v1577 = vpop.permute.xlu0 %1576
    %1578 = vrot.lane.b32.xlu0 %v1409, 88
    %v1579 = vpop.permute.xlu0 %1578
    %v1580 = vsel %vm117, %v1577, 0
    %v1582 = vsel %vm117, %v1579, 0
    %1584 = vmatprep.subr.mxu0 0.0
    %1585 = vmatpush1.xpose.msra.mxu0 %v1582
    %1586 = vmatprep.subr.mxu0 0.0
    %1587 = vmatpush1.xpose.msra.mxu0 0.0
    %1588 = vmatprep.subr.mxu0 0.0
    %1589 = vmatpush1.xpose.msra.mxu0 0.0
    %1590 = vmatprep.subr.mxu0 0.0
    %1591 = vmatpush1.xpose.msra.mxu0 0.0
    %1592 = vmatprep.subr.mxu0 0.0
    %1593 = vmatpush1.xpose.msra.mxu0 0.0
    %1594 = vmatprep.subr.mxu0 0.0
    %1595 = vmatpush1.xpose.msra.mxu0 0.0
    %1596 = vmatprep.subr.mxu0 0.0
    %1597 = vmatpush1.xpose.msra.mxu0 0.0
    %1598 = vmatprep.subr.mxu0 0.0
    %1599 = vmatpush1.xpose.msra.mxu0 0.0
    %1600 = vmatprep.subr.mxu0 0.0
    %1601 = vmatpush1.xpose.msra.mxu0 0.0
    %1602 = vmatprep.subr.mxu0 0.0
    %1603 = vmatpush1.xpose.msra.mxu0 0.0
    %1604 = vmatprep.subr.mxu0 0.0
    %1605 = vmatpush1.xpose.msra.mxu0 0.0
    %1606 = vmatprep.subr.mxu0 0.0
    %1607 = vmatpush1.xpose.msra.mxu0 0.0
    %1608 = vmatprep.subr.mxu0 0.0
    %1609 = vmatpush1.xpose.msra.mxu0 0.0
    %1610 = vmatprep.subr.mxu0 0.0
    %1611 = vmatpush1.xpose.msra.mxu0 0.0
    %1612 = vmatprep.subr.mxu0 0.0
    %1613 = vmatpush1.xpose.msra.mxu0 0.0
    %1614 = vmatprep.subr.mxu0 0.0
    %1615 = vmatpush1.xpose.msra.mxu0 0.0
    %1616 = vmatprep.subr.mxu0 0.0
    %1617 = vmatpush1.xpose.msra.mxu0 0.0
    %1618 = vmatprep.subr.mxu0 0.0
    %1619 = vmatpush1.xpose.msra.mxu0 0.0
    %1620 = vmatprep.subr.mxu0 0.0
    %1621 = vmatpush1.xpose.msra.mxu0 0.0
    %1622 = vmatprep.subr.mxu0 0.0
    %1623 = vmatpush1.xpose.msra.mxu0 0.0
    %1624 = vmatprep.subr.mxu0 0.0
    %1625 = vmatpush1.xpose.msra.mxu0 0.0
    %1626 = vmatprep.subr.mxu0 0.0
    %1627 = vmatpush1.xpose.msra.mxu0 0.0
    %1628 = vmatprep.subr.mxu0 0.0
    %1629 = vmatpush1.xpose.msra.mxu0 0.0
    %1630 = vmatprep.subr.mxu0 0.0
    %1631 = vmatpush1.xpose.msra.mxu0 0.0
    %1632 = vmatprep.subr.mxu0 0.0
    %1633 = vmatpush1.xpose.msra.mxu0 0.0
    %1634 = vmatprep.subr.mxu0 0.0
    %1635 = vmatpush1.xpose.msra.mxu0 0.0
    %1636 = vmatprep.subr.mxu0 0.0
    %1637 = vmatpush1.xpose.msra.mxu0 0.0
    %1638 = vmatprep.subr.mxu0 0.0
    %1639 = vmatpush1.xpose.msra.mxu0 0.0
    %1640 = vmatprep.subr.mxu0 0.0
    %1641 = vmatpush1.xpose.msra.mxu0 0.0
    %1642 = vmatprep.subr.mxu0 0.0
    %1643 = vmatpush1.xpose.msra.mxu0 0.0
    %1644 = vmatprep.subr.mxu0 0.0
    %1645 = vmatpush1.xpose.msra.mxu0 0.0
    %1646 = vmatprep.subr.mxu0 0.0
    %1647 = vmatpush1.xpose.msra.mxu0 0.0
    %1648 = vmatprep.mubr.f32.mxu0 0.0
    %1649 = vmatmul.mubr.f32.gmra.mrb[0].mxu0 %v1580
    %v1650 = vpop.f32.mrb[0].mxu0
    %v1651 = vadd.f32 %v30, %v1650
    %v1652 = vpop.f32.mrb[0].mxu0
    %1653 = vdwg.mxu0
    %v1654 = vsel %vm117, %v1651, -inf
    %1655 = vmax.xlane.f32.xlu0 %v1654
    %v1656 = vpop.xlane.xlu0 %1655
    %v1657 = vsub.f32 %v1651, %v1656
    %v1658 = vmul.f32 %v1657, 1.442695
    %v1659 = vpow.pop %v1658
    %v1660 = vsel %vm117, %v1659, 0.0
    %1661 = vadd.xlane.f32.xlu0 %v1660
    %v1662 = vpop.xlane.xlu0 %1661
    %v1663 = vrcp.pop %v1662
    %v1664 = vmul.f32 %v1659, %v1663
    %1665 = vrot.lane.b32.xlu0 %v1409, 56
    %v1666 = vpop.permute.xlu0 %1665
    %v1669 = vsel %vm117, %v1664, 0
    %1671 = vmatprep.subr.mxu0 0.0
    %1672 = vmatpush1.msra.mxu0 %v1666
    %1673 = vmatprep.subr.mxu0 0.0
    %1674 = vmatpush1.msra.mxu0 0.0
    %1675 = vmatprep.subr.mxu0 0.0
    %1676 = vmatpush1.msra.mxu0 0.0
    %1677 = vmatprep.subr.mxu0 0.0
    %1678 = vmatpush1.msra.mxu0 0.0
    %1679 = vmatprep.subr.mxu0 0.0
    %1680 = vmatpush1.msra.mxu0 0.0
    %1681 = vmatprep.subr.mxu0 0.0
    %1682 = vmatpush1.msra.mxu0 0.0
    %1683 = vmatprep.subr.mxu0 0.0
    %1684 = vmatpush1.msra.mxu0 0.0
    %1685 = vmatprep.subr.mxu0 0.0
    %1686 = vmatpush1.msra.mxu0 0.0
    %1687 = vmatprep.subr.mxu0 0.0
    %1688 = vmatpush1.msra.mxu0 0.0
    %1689 = vmatprep.subr.mxu0 0.0
    %1690 = vmatpush1.msra.mxu0 0.0
    %1691 = vmatprep.subr.mxu0 0.0
    %1692 = vmatpush1.msra.mxu0 0.0
    %1693 = vmatprep.subr.mxu0 0.0
    %1694 = vmatpush1.msra.mxu0 0.0
    %1695 = vmatprep.subr.mxu0 0.0
    %1696 = vmatpush1.msra.mxu0 0.0
    %1697 = vmatprep.subr.mxu0 0.0
    %1698 = vmatpush1.msra.mxu0 0.0
    %1699 = vmatprep.subr.mxu0 0.0
    %1700 = vmatpush1.msra.mxu0 0.0
    %1701 = vmatprep.subr.mxu0 0.0
    %1702 = vmatpush1.msra.mxu0 0.0
    %1703 = vmatprep.subr.mxu0 0.0
    %1704 = vmatpush1.msra.mxu0 0.0
    %1705 = vmatprep.subr.mxu0 0.0
    %1706 = vmatpush1.msra.mxu0 0.0
    %1707 = vmatprep.subr.mxu0 0.0
    %1708 = vmatpush1.msra.mxu0 0.0
    %1709 = vmatprep.subr.mxu0 0.0
    %1710 = vmatpush1.msra.mxu0 0.0
    %1711 = vmatprep.subr.mxu0 0.0
    %1712 = vmatpush1.msra.mxu0 0.0
    %1713 = vmatprep.subr.mxu0 0.0
    %1714 = vmatpush1.msra.mxu0 0.0
    %1715 = vmatprep.subr.mxu0 0.0
    %1716 = vmatpush1.msra.mxu0 0.0
    %1717 = vmatprep.subr.mxu0 0.0
    %1718 = vmatpush1.msra.mxu0 0.0
    %1719 = vmatprep.subr.mxu0 0.0
    %1720 = vmatpush1.msra.mxu0 0.0
    %1721 = vmatprep.subr.mxu0 0.0
    %1722 = vmatpush1.msra.mxu0 0.0
    %1723 = vmatprep.subr.mxu0 0.0
    %1724 = vmatpush1.msra.mxu0 0.0
    %1725 = vmatprep.subr.mxu0 0.0
    %1726 = vmatpush1.msra.mxu0 0.0
    %1727 = vmatprep.subr.mxu0 0.0
    %1728 = vmatpush1.msra.mxu0 0.0
    %1729 = vmatprep.subr.mxu0 0.0
    %1730 = vmatpush1.msra.mxu0 0.0
    %1731 = vmatprep.subr.mxu0 0.0
    %1732 = vmatpush1.msra.mxu0 0.0
    %1733 = vmatprep.subr.mxu0 0.0
    %1734 = vmatpush1.msra.mxu0 0.0
    %1735 = vmatprep.mubr.f32.mxu0 0.0
    %1736 = vmatmul.mubr.f32.gmra.mrb[0].mxu0 %v1669
    %v1737 = vpop.f32.mrb[0].mxu0
    %v1738 = vadd.f32 0.0, %v1737
    %v1739 = vpop.f32.mrb[0].mxu0
    %1740 = vdwg.mxu0
    %1741 = vrot.lane.b32.xlu0 %v1409, 112
    %v1742 = vpop.permute.xlu0 %1741
    %1743 = vrot.lane.b32.xlu0 %v1409, 80
    %v1744 = vpop.permute.xlu0 %1743
    %v1745 = vsel %vm117, %v1742, 0
    %v1747 = vsel %vm117, %v1744, 0
    %1749 = vmatprep.subr.mxu0 0.0
    %1750 = vmatpush1.xpose.msra.mxu0 %v1747
    %1751 = vmatprep.subr.mxu0 0.0
    %1752 = vmatpush1.xpose.msra.mxu0 0.0
    %1753 = vmatprep.subr.mxu0 0.0
    %1754 = vmatpush1.xpose.msra.mxu0 0.0
    %1755 = vmatprep.subr.mxu0 0.0
    %1756 = vmatpush1.xpose.msra.mxu0 0.0
    %1757 = vmatprep.subr.mxu0 0.0
    %1758 = vmatpush1.xpose.msra.mxu0 0.0
    %1759 = vmatprep.subr.mxu0 0.0
    %1760 = vmatpush1.xpose.msra.mxu0 0.0
    %1761 = vmatprep.subr.mxu0 0.0
    %1762 = vmatpush1.xpose.msra.mxu0 0.0
    %1763 = vmatprep.subr.mxu0 0.0
    %1764 = vmatpush1.xpose.msra.mxu0 0.0
    %1765 = vmatprep.subr.mxu0 0.0
    %1766 = vmatpush1.xpose.msra.mxu0 0.0
    %1767 = vmatprep.subr.mxu0 0.0
    %1768 = vmatpush1.xpose.msra.mxu0 0.0
    %1769 = vmatprep.subr.mxu0 0.0
    %1770 = vmatpush1.xpose.msra.mxu0 0.0
    %1771 = vmatprep.subr.mxu0 0.0
    %1772 = vmatpush1.xpose.msra.mxu0 0.0
    %1773 = vmatprep.subr.mxu0 0.0
    %1774 = vmatpush1.xpose.msra.mxu0 0.0
    %1775 = vmatprep.subr.mxu0 0.0
    %1776 = vmatpush1.xpose.msra.mxu0 0.0
    %1777 = vmatprep.subr.mxu0 0.0
    %1778 = vmatpush1.xpose.msra.mxu0 0.0
    %1779 = vmatprep.subr.mxu0 0.0
    %1780 = vmatpush1.xpose.msra.mxu0 0.0
    %1781 = vmatprep.subr.mxu0 0.0
    %1782 = vmatpush1.xpose.msra.mxu0 0.0
    %1783 = vmatprep.subr.mxu0 0.0
    %1784 = vmatpush1.xpose.msra.mxu0 0.0
    %1785 = vmatprep.subr.mxu0 0.0
    %1786 = vmatpush1.xpose.msra.mxu0 0.0
    %1787 = vmatprep.subr.mxu0 0.0
    %1788 = vmatpush1.xpose.msra.mxu0 0.0
    %1789 = vmatprep.subr.mxu0 0.0
    %1790 = vmatpush1.xpose.msra.mxu0 0.0
    %1791 = vmatprep.subr.mxu0 0.0
    %1792 = vmatpush1.xpose.msra.mxu0 0.0
    %1793 = vmatprep.subr.mxu0 0.0
    %1794 = vmatpush1.xpose.msra.mxu0 0.0
    %1795 = vmatprep.subr.mxu0 0.0
    %1796 = vmatpush1.xpose.msra.mxu0 0.0
    %1797 = vmatprep.subr.mxu0 0.0
    %1798 = vmatpush1.xpose.msra.mxu0 0.0
    %1799 = vmatprep.subr.mxu0 0.0
    %1800 = vmatpush1.xpose.msra.mxu0 0.0
    %1801 = vmatprep.subr.mxu0 0.0
    %1802 = vmatpush1.xpose.msra.mxu0 0.0
    %1803 = vmatprep.subr.mxu0 0.0
    %1804 = vmatpush1.xpose.msra.mxu0 0.0
    %1805 = vmatprep.subr.mxu0 0.0
    %1806 = vmatpush1.xpose.msra.mxu0 0.0
    %1807 = vmatprep.subr.mxu0 0.0
    %1808 = vmatpush1.xpose.msra.mxu0 0.0
    %1809 = vmatprep.subr.mxu0 0.0
    %1810 = vmatpush1.xpose.msra.mxu0 0.0
    %1811 = vmatprep.subr.mxu0 0.0
    %1812 = vmatpush1.xpose.msra.mxu0 0.0
    %1813 = vmatprep.mubr.f32.mxu0 0.0
    %1814 = vmatmul.mubr.f32.gmra.mrb[0].mxu0 %v1745
    %v1815 = vpop.f32.mrb[0].mxu0
    %v1816 = vadd.f32 %v30, %v1815
    %v1817 = vpop.f32.mrb[0].mxu0
    %1818 = vdwg.mxu0
    %v1819 = vsel %vm117, %v1816, -inf
    %1820 = vmax.xlane.f32.xlu0 %v1819
    %v1821 = vpop.xlane.xlu0 %1820
    %v1822 = vsub.f32 %v1816, %v1821
    %v1823 = vmul.f32 %v1822, 1.442695
    %v1824 = vpow.pop %v1823
    %v1825 = vsel %vm117, %v1824, 0.0
    %1826 = vadd.xlane.f32.xlu0 %v1825
    %v1827 = vpop.xlane.xlu0 %1826
    %v1828 = vrcp.pop %v1827
    %v1829 = vmul.f32 %v1824, %v1828
    %1830 = vrot.lane.b32.xlu0 %v1409, 48
    %v1831 = vpop.permute.xlu0 %1830
    %v1834 = vsel %vm117, %v1829, 0
    %1836 = vmatprep.subr.mxu0 0.0
    %1837 = vmatpush1.msra.mxu0 %v1831
    %1838 = vmatprep.subr.mxu0 0.0
    %1839 = vmatpush1.msra.mxu0 0.0
    %1840 = vmatprep.subr.mxu0 0.0
    %1841 = vmatpush1.msra.mxu0 0.0
    %1842 = vmatprep.subr.mxu0 0.0
    %1843 = vmatpush1.msra.mxu0 0.0
    %1844 = vmatprep.subr.mxu0 0.0
    %1845 = vmatpush1.msra.mxu0 0.0
    %1846 = vmatprep.subr.mxu0 0.0
    %1847 = vmatpush1.msra.mxu0 0.0
    %1848 = vmatprep.subr.mxu0 0.0
    %1849 = vmatpush1.msra.mxu0 0.0
    %1850 = vmatprep.subr.mxu0 0.0
    %1851 = vmatpush1.msra.mxu0 0.0
    %1852 = vmatprep.subr.mxu0 0.0
    %1853 = vmatpush1.msra.mxu0 0.0
    %1854 = vmatprep.subr.mxu0 0.0
    %1855 = vmatpush1.msra.mxu0 0.0
    %1856 = vmatprep.subr.mxu0 0.0
    %1857 = vmatpush1.msra.mxu0 0.0
    %1858 = vmatprep.subr.mxu0 0.0
    %1859 = vmatpush1.msra.mxu0 0.0
    %1860 = vmatprep.subr.mxu0 0.0
    %1861 = vmatpush1.msra.mxu0 0.0
    %1862 = vmatprep.subr.mxu0 0.0
    %1863 = vmatpush1.msra.mxu0 0.0
    %1864 = vmatprep.subr.mxu0 0.0
    %1865 = vmatpush1.msra.mxu0 0.0
    %1866 = vmatprep.subr.mxu0 0.0
    %1867 = vmatpush1.msra.mxu0 0.0
    %1868 = vmatprep.subr.mxu0 0.0
    %1869 = vmatpush1.msra.mxu0 0.0
    %1870 = vmatprep.subr.mxu0 0.0
    %1871 = vmatpush1.msra.mxu0 0.0
    %1872 = vmatprep.subr.mxu0 0.0
    %1873 = vmatpush1.msra.mxu0 0.0
    %1874 = vmatprep.subr.mxu0 0.0
    %1875 = vmatpush1.msra.mxu0 0.0
    %1876 = vmatprep.subr.mxu0 0.0
    %1877 = vmatpush1.msra.mxu0 0.0
    %1878 = vmatprep.subr.mxu0 0.0
    %1879 = vmatpush1.msra.mxu0 0.0
    %1880 = vmatprep.subr.mxu0 0.0
    %1881 = vmatpush1.msra.mxu0 0.0
    %1882 = vmatprep.subr.mxu0 0.0
    %1883 = vmatpush1.msra.mxu0 0.0
    %1884 = vmatprep.subr.mxu0 0.0
    %1885 = vmatpush1.msra.mxu0 0.0
    %1886 = vmatprep.subr.mxu0 0.0
    %1887 = vmatpush1.msra.mxu0 0.0
    %1888 = vmatprep.subr.mxu0 0.0
    %1889 = vmatpush1.msra.mxu0 0.0
    %1890 = vmatprep.subr.mxu0 0.0
    %1891 = vmatpush1.msra.mxu0 0.0
    %1892 = vmatprep.subr.mxu0 0.0
    %1893 = vmatpush1.msra.mxu0 0.0
    %1894 = vmatprep.subr.mxu0 0.0
    %1895 = vmatpush1.msra.mxu0 0.0
    %1896 = vmatprep.subr.mxu0 0.0
    %1897 = vmatpush1.msra.mxu0 0.0
    %1898 = vmatprep.subr.mxu0 0.0
    %1899 = vmatpush1.msra.mxu0 0.0
    %1900 = vmatprep.mubr.f32.mxu0 0.0
    %1901 = vmatmul.mubr.f32.gmra.mrb[0].mxu0 %v1834
    %v1902 = vpop.f32.mrb[0].mxu0
    %v1903 = vadd.f32 0.0, %v1902
    %v1904 = vpop.f32.mrb[0].mxu0
    %1905 = vdwg.mxu0
    %1906 = vrot.lane.b32.xlu0 %v1409, 104
    %v1907 = vpop.permute.xlu0 %1906
    %1908 = vrot.lane.b32.xlu0 %v1409, 72
    %v1909 = vpop.permute.xlu0 %1908
    %v1910 = vsel %vm117, %v1907, 0
    %v1912 = vsel %vm117, %v1909, 0
    %1914 = vmatprep.subr.mxu0 0.0
    %1915 = vmatpush1.xpose.msra.mxu0 %v1912
    %1916 = vmatprep.subr.mxu0 0.0
    %1917 = vmatpush1.xpose.msra.mxu0 0.0
    %1918 = vmatprep.subr.mxu0 0.0
    %1919 = vmatpush1.xpose.msra.mxu0 0.0
    %1920 = vmatprep.subr.mxu0 0.0
    %1921 = vmatpush1.xpose.msra.mxu0 0.0
    %1922 = vmatprep.subr.mxu0 0.0
    %1923 = vmatpush1.xpose.msra.mxu0 0.0
    %1924 = vmatprep.subr.mxu0 0.0
    %1925 = vmatpush1.xpose.msra.mxu0 0.0
    %1926 = vmatprep.subr.mxu0 0.0
    %1927 = vmatpush1.xpose.msra.mxu0 0.0
    %1928 = vmatprep.subr.mxu0 0.0
    %1929 = vmatpush1.xpose.msra.mxu0 0.0
    %1930 = vmatprep.subr.mxu0 0.0
    %1931 = vmatpush1.xpose.msra.mxu0 0.0
    %1932 = vmatprep.subr.mxu0 0.0
    %1933 = vmatpush1.xpose.msra.mxu0 0.0
    %1934 = vmatprep.subr.mxu0 0.0
    %1935 = vmatpush1.xpose.msra.mxu0 0.0
    %1936 = vmatprep.subr.mxu0 0.0
    %1937 = vmatpush1.xpose.msra.mxu0 0.0
    %1938 = vmatprep.subr.mxu0 0.0
    %1939 = vmatpush1.xpose.msra.mxu0 0.0
    %1940 = vmatprep.subr.mxu0 0.0
    %1941 = vmatpush1.xpose.msra.mxu0 0.0
    %1942 = vmatprep.subr.mxu0 0.0
    %1943 = vmatpush1.xpose.msra.mxu0 0.0
    %1944 = vmatprep.subr.mxu0 0.0
    %1945 = vmatpush1.xpose.msra.mxu0 0.0
    %1946 = vmatprep.subr.mxu0 0.0
    %1947 = vmatpush1.xpose.msra.mxu0 0.0
    %1948 = vmatprep.subr.mxu0 0.0
    %1949 = vmatpush1.xpose.msra.mxu0 0.0
    %1950 = vmatprep.subr.mxu0 0.0
    %1951 = vmatpush1.xpose.msra.mxu0 0.0
    %1952 = vmatprep.subr.mxu0 0.0
    %1953 = vmatpush1.xpose.msra.mxu0 0.0
    %1954 = vmatprep.subr.mxu0 0.0
    %1955 = vmatpush1.xpose.msra.mxu0 0.0
    %1956 = vmatprep.subr.mxu0 0.0
    %1957 = vmatpush1.xpose.msra.mxu0 0.0
    %1958 = vmatprep.subr.mxu0 0.0
    %1959 = vmatpush1.xpose.msra.mxu0 0.0
    %1960 = vmatprep.subr.mxu0 0.0
    %1961 = vmatpush1.xpose.msra.mxu0 0.0
    %1962 = vmatprep.subr.mxu0 0.0
    %1963 = vmatpush1.xpose.msra.mxu0 0.0
    %1964 = vmatprep.subr.mxu0 0.0
    %1965 = vmatpush1.xpose.msra.mxu0 0.0
    %1966 = vmatprep.subr.mxu0 0.0
    %1967 = vmatpush1.xpose.msra.mxu0 0.0
    %1968 = vmatprep.subr.mxu0 0.0
    %1969 = vmatpush1.xpose.msra.mxu0 0.0
    %1970 = vmatprep.subr.mxu0 0.0
    %1971 = vmatpush1.xpose.msra.mxu0 0.0
    %1972 = vmatprep.subr.mxu0 0.0
    %1973 = vmatpush1.xpose.msra.mxu0 0.0
    %1974 = vmatprep.subr.mxu0 0.0
    %1975 = vmatpush1.xpose.msra.mxu0 0.0
    %1976 = vmatprep.subr.mxu0 0.0
    %1977 = vmatpush1.xpose.msra.mxu0 0.0
    %1978 = vmatprep.mubr.f32.mxu0 0.0
    %1979 = vmatmul.mubr.f32.gmra.mrb[0].mxu0 %v1910
    %v1980 = vpop.f32.mrb[0].mxu0
    %v1981 = vadd.f32 %v30, %v1980
    %v1982 = vpop.f32.mrb[0].mxu0
    %1983 = vdwg.mxu0
    %v1984 = vsel %vm117, %v1981, -inf
    %1985 = vmax.xlane.f32.xlu0 %v1984
    %v1986 = vpop.xlane.xlu0 %1985
    %v1987 = vsub.f32 %v1981, %v1986
    %v1988 = vmul.f32 %v1987, 1.442695
    %v1989 = vpow.pop %v1988
    %v1990 = vsel %vm117, %v1989, 0.0
    %1991 = vadd.xlane.f32.xlu0 %v1990
    %v1992 = vpop.xlane.xlu0 %1991
    %v1993 = vrcp.pop %v1992
    %v1994 = vmul.f32 %v1989, %v1993
    %1995 = vrot.lane.b32.xlu0 %v1409, 40
    %v1996 = vpop.permute.xlu0 %1995
    %v1999 = vsel %vm117, %v1994, 0
    %2001 = vmatprep.subr.mxu0 0.0
    %2002 = vmatpush1.msra.mxu0 %v1996
    %2003 = vmatprep.subr.mxu0 0.0
    %2004 = vmatpush1.msra.mxu0 0.0
    %2005 = vmatprep.subr.mxu0 0.0
    %2006 = vmatpush1.msra.mxu0 0.0
    %2007 = vmatprep.subr.mxu0 0.0
    %2008 = vmatpush1.msra.mxu0 0.0
    %2009 = vmatprep.subr.mxu0 0.0
    %2010 = vmatpush1.msra.mxu0 0.0
    %2011 = vmatprep.subr.mxu0 0.0
    %2012 = vmatpush1.msra.mxu0 0.0
    %2013 = vmatprep.subr.mxu0 0.0
    %2014 = vmatpush1.msra.mxu0 0.0
    %2015 = vmatprep.subr.mxu0 0.0
    %2016 = vmatpush1.msra.mxu0 0.0
    %2017 = vmatprep.subr.mxu0 0.0
    %2018 = vmatpush1.msra.mxu0 0.0
    %2019 = vmatprep.subr.mxu0 0.0
    %2020 = vmatpush1.msra.mxu0 0.0
    %2021 = vmatprep.subr.mxu0 0.0
    %2022 = vmatpush1.msra.mxu0 0.0
    %2023 = vmatprep.subr.mxu0 0.0
    %2024 = vmatpush1.msra.mxu0 0.0
    %2025 = vmatprep.subr.mxu0 0.0
    %2026 = vmatpush1.msra.mxu0 0.0
    %2027 = vmatprep.subr.mxu0 0.0
    %2028 = vmatpush1.msra.mxu0 0.0
    %2029 = vmatprep.subr.mxu0 0.0
    %2030 = vmatpush1.msra.mxu0 0.0
    %2031 = vmatprep.subr.mxu0 0.0
    %2032 = vmatpush1.msra.mxu0 0.0
    %2033 = vmatprep.subr.mxu0 0.0
    %2034 = vmatpush1.msra.mxu0 0.0
    %2035 = vmatprep.subr.mxu0 0.0
    %2036 = vmatpush1.msra.mxu0 0.0
    %2037 = vmatprep.subr.mxu0 0.0
    %2038 = vmatpush1.msra.mxu0 0.0
    %2039 = vmatprep.subr.mxu0 0.0
    %2040 = vmatpush1.msra.mxu0 0.0
    %2041 = vmatprep.subr.mxu0 0.0
    %2042 = vmatpush1.msra.mxu0 0.0
    %2043 = vmatprep.subr.mxu0 0.0
    %2044 = vmatpush1.msra.mxu0 0.0
    %2045 = vmatprep.subr.mxu0 0.0
    %2046 = vmatpush1.msra.mxu0 0.0
    %2047 = vmatprep.subr.mxu0 0.0
    %2048 = vmatpush1.msra.mxu0 0.0
    %2049 = vmatprep.subr.mxu0 0.0
    %2050 = vmatpush1.msra.mxu0 0.0
    %2051 = vmatprep.subr.mxu0 0.0
    %2052 = vmatpush1.msra.mxu0 0.0
    %2053 = vmatprep.subr.mxu0 0.0
    %2054 = vmatpush1.msra.mxu0 0.0
    %2055 = vmatprep.subr.mxu0 0.0
    %2056 = vmatpush1.msra.mxu0 0.0
    %2057 = vmatprep.subr.mxu0 0.0
    %2058 = vmatpush1.msra.mxu0 0.0
    %2059 = vmatprep.subr.mxu0 0.0
    %2060 = vmatpush1.msra.mxu0 0.0
    %2061 = vmatprep.subr.mxu0 0.0
    %2062 = vmatpush1.msra.mxu0 0.0
    %2063 = vmatprep.subr.mxu0 0.0
    %2064 = vmatpush1.msra.mxu0 0.0
    %2065 = vmatprep.mubr.f32.mxu0 0.0
    %2066 = vmatmul.mubr.f32.gmra.mrb[0].mxu0 %v1999
    %v2067 = vpop.f32.mrb[0].mxu0
    %v2068 = vadd.f32 0.0, %v2067
    %v2069 = vpop.f32.mrb[0].mxu0
    %2070 = vdwg.mxu0
    %2072 = vrot.lane.b32.xlu0 %v1738, 8
    %v2073 = vpop.permute.xlu0 %2072
    %2076 = vrot.lane.b32.xlu0 %v1903, 16
    %v2077 = vpop.permute.xlu0 %2076
    %2080 = vrot.lane.b32.xlu0 %v2068, 24
    %v2081 = vpop.permute.xlu0 %2080
    %v2083 = vsel %vm117, %v1573, %v2073
    %v2084 = vsel %vm787, %v2083, %v2077
    %v2085 = vsel %vm789, %v2084, %v2081
    %v2086 = vld [vmem:[#allocation2 + $0xc8] sm:$0xff]
    %v2087 = vld [vmem:[#allocation2 + $0xd0] sm:$0xff]
    %v2088 = vld [vmem:[#allocation2 + $0xd8] sm:$0xff]
    %v2089 = vld [vmem:[#allocation2 + $0xe0] sm:$0xff]
    %v2090 = vld [vmem:[#allocation2 + $0x149] sm:$0x1]
    %v2091 = vlaneseq
    %v2092 = vshrl.u32 %v2091, 7
    %v2093 = vsub.s32 0, %v2092
    %v2094 = vrot.slane %v2090, %v2093
    %v2096 = vsel %vm40, %v2085, 0
    %2098 = vmatprep.subr.mxu0 0.0
    %2099 = vmatpush1.msra.mxu0 %v2086
    %2100 = vmatprep.subr.mxu0 0.0
    %2101 = vmatpush1.msra.mxu0 %v2087
    %2102 = vmatprep.subr.mxu0 0.0
    %2103 = vmatpush1.msra.mxu0 %v2088
    %2104 = vmatprep.subr.mxu0 0.0
    %2105 = vmatpush1.msra.mxu0 %v2089
    %2106 = vmatprep.subr.mxu0 0.0
    %2107 = vmatpush1.msra.mxu0 0.0
    %2108 = vmatprep.subr.mxu0 0.0
    %2109 = vmatpush1.msra.mxu0 0.0
    %2110 = vmatprep.subr.mxu0 0.0
    %2111 = vmatpush1.msra.mxu0 0.0
    %2112 = vmatprep.subr.mxu0 0.0
    %2113 = vmatpush1.msra.mxu0 0.0
    %2114 = vmatprep.subr.mxu0 0.0
    %2115 = vmatpush1.msra.mxu0 0.0
    %2116 = vmatprep.subr.mxu0 0.0
    %2117 = vmatpush1.msra.mxu0 0.0
    %2118 = vmatprep.subr.mxu0 0.0
    %2119 = vmatpush1.msra.mxu0 0.0
    %2120 = vmatprep.subr.mxu0 0.0
    %2121 = vmatpush1.msra.mxu0 0.0
    %2122 = vmatprep.subr.mxu0 0.0
    %2123 = vmatpush1.msra.mxu0 0.0
    %2124 = vmatprep.subr.mxu0 0.0
    %2125 = vmatpush1.msra.mxu0 0.0
    %2126 = vmatprep.subr.mxu0 0.0
    %2127 = vmatpush1.msra.mxu0 0.0
    %2128 = vmatprep.subr.mxu0 0.0
    %2129 = vmatpush1.msra.mxu0 0.0
    %2130 = vmatprep.subr.mxu0 0.0
    %2131 = vmatpush1.msra.mxu0 0.0
    %2132 = vmatprep.subr.mxu0 0.0
    %2133 = vmatpush1.msra.mxu0 0.0
    %2134 = vmatprep.subr.mxu0 0.0
    %2135 = vmatpush1.msra.mxu0 0.0
    %2136 = vmatprep.subr.mxu0 0.0
    %2137 = vmatpush1.msra.mxu0 0.0
    %2138 = vmatprep.subr.mxu0 0.0
    %2139 = vmatpush1.msra.mxu0 0.0
    %2140 = vmatprep.subr.mxu0 0.0
    %2141 = vmatpush1.msra.mxu0 0.0
    %2142 = vmatprep.subr.mxu0 0.0
    %2143 = vmatpush1.msra.mxu0 0.0
    %2144 = vmatprep.subr.mxu0 0.0
    %2145 = vmatpush1.msra.mxu0 0.0
    %2146 = vmatprep.subr.mxu0 0.0
    %2147 = vmatpush1.msra.mxu0 0.0
    %2148 = vmatprep.subr.mxu0 0.0
    %2149 = vmatpush1.msra.mxu0 0.0
    %2150 = vmatprep.subr.mxu0 0.0
    %2151 = vmatpush1.msra.mxu0 0.0
    %2152 = vmatprep.subr.mxu0 0.0
    %2153 = vmatpush1.msra.mxu0 0.0
    %2154 = vmatprep.subr.mxu0 0.0
    %2155 = vmatpush1.msra.mxu0 0.0
    %2156 = vmatprep.subr.mxu0 0.0
    %2157 = vmatpush1.msra.mxu0 0.0
    %2158 = vmatprep.subr.mxu0 0.0
    %2159 = vmatpush1.msra.mxu0 0.0
    %2160 = vmatprep.subr.mxu0 0.0
    %2161 = vmatpush1.msra.mxu0 0.0
    %2162 = vmatprep.mubr.f32.mxu0 0.0
    %2163 = vmatmul.mubr.f32.gmra.mrb[0].mxu0 %v2096
    %v2164 = vpop.f32.mrb[0].mxu0
    %v2165 = vadd.f32 %v2094, %v2164
    %v2166 = vpop.f32.mrb[0].mxu0
    %2167 = vdwg.mxu0
    %v2168 = vadd.f32 %v2165, %v1217
    %v2169 = vadd.f32 %v2168, %v1105
    %v2170 = vld [vmem:[#allocation2 + $0x14a] sm:$0x1]
    %v2171 = vld [vmem:[#allocation2 + $0x14b] sm:$0x1]
    %v2172 = vsel %vm40, %v2169, 0.0
    %2173 = vadd.xlane.f32.xlu0 %v2172
    %v2174 = vpop.xlane.xlu0 %2173
    %v2175 = vmul.f32 %v2174, %v880
    %v2176 = vsub.f32 %v2169, %v2175
    %v2177 = vmul.f32 %v2176, %v2176
    %v2178 = vsel %vm40, %v2177, 0.0
    %2179 = vadd.xlane.f32.xlu0 %v2178
    %v2180 = vpop.xlane.xlu0 %2179
    %v2181 = vmul.f32 %v2180, %v880
    %v2182 = vadd.f32 %v2181, 1e-12
    %v2183 = vrsqrt.pop %v2182
    %v2184 = vmul.f32 %v2176, %v2183
    %v2185 = vlaneseq
    %v2186 = vshrl.u32 %v2185, 7
    %v2187 = vsub.s32 0, %v2186
    %v2188 = vrot.slane %v2170, %v2187
    %v2189 = vmul.f32 %v2184, %v2188
    %v2190 = vlaneseq
    %v2191 = vshrl.u32 %v2190, 7
    %v2192 = vsub.s32 0, %v2191
    %v2193 = vrot.slane %v2171, %v2192
    %v2194 = vadd.f32 %v2189, %v2193
    %v2195 = vld [vmem:[#allocation2 + $0xe8] sm:$0xff]
    %v2196 = vld [vmem:[#allocation2 + $0xf0] sm:$0xff]
    %v2197 = vld [vmem:[#allocation2 + $0xf8] sm:$0xff]
    %v2198 = vld [vmem:[#allocation2 + $0x100] sm:$0xff]
    %v2199 = vld [vmem:[#allocation2 + $0x14c] sm:$0x1]
    %v2200 = vlaneseq
    %v2201 = vshrl.u32 %v2200, 7
    %v2202 = vsub.s32 0, %v2201
    %v2203 = vrot.slane %v2199, %v2202
    %v2205 = vsel %vm40, %v2194, 0
    %2207 = vmatprep.subr.mxu0 0.0
    %2208 = vmatpush1.msra.mxu0 %v2195
    %2209 = vmatprep.subr.mxu0 0.0
    %2210 = vmatpush1.msra.mxu0 %v2196
    %2211 = vmatprep.subr.mxu0 0.0
    %2212 = vmatpush1.msra.mxu0 %v2197
    %2213 = vmatprep.subr.mxu0 0.0
    %2214 = vmatpush1.msra.mxu0 %v2198
    %2215 = vmatprep.subr.mxu0 0.0
    %2216 = vmatpush1.msra.mxu0 0.0
    %2217 = vmatprep.subr.mxu0 0.0
    %2218 = vmatpush1.msra.mxu0 0.0
    %2219 = vmatprep.subr.mxu0 0.0
    %2220 = vmatpush1.msra.mxu0 0.0
    %2221 = vmatprep.subr.mxu0 0.0
    %2222 = vmatpush1.msra.mxu0 0.0
    %2223 = vmatprep.subr.mxu0 0.0
    %2224 = vmatpush1.msra.mxu0 0.0
    %2225 = vmatprep.subr.mxu0 0.0
    %2226 = vmatpush1.msra.mxu0 0.0
    %2227 = vmatprep.subr.mxu0 0.0
    %2228 = vmatpush1.msra.mxu0 0.0
    %2229 = vmatprep.subr.mxu0 0.0
    %2230 = vmatpush1.msra.mxu0 0.0
    %2231 = vmatprep.subr.mxu0 0.0
    %2232 = vmatpush1.msra.mxu0 0.0
    %2233 = vmatprep.subr.mxu0 0.0
    %2234 = vmatpush1.msra.mxu0 0.0
    %2235 = vmatprep.subr.mxu0 0.0
    %2236 = vmatpush1.msra.mxu0 0.0
    %2237 = vmatprep.subr.mxu0 0.0
    %2238 = vmatpush1.msra.mxu0 0.0
    %2239 = vmatprep.subr.mxu0 0.0
    %2240 = vmatpush1.msra.mxu0 0.0
    %2241 = vmatprep.subr.mxu0 0.0
    %2242 = vmatpush1.msra.mxu0 0.0
    %2243 = vmatprep.subr.mxu0 0.0
    %2244 = vmatpush1.msra.mxu0 0.0
    %2245 = vmatprep.subr.mxu0 0.0
    %2246 = vmatpush1.msra.mxu0 0.0
    %2247 = vmatprep.subr.mxu0 0.0
    %2248 = vmatpush1.msra.mxu0 0.0
    %2249 = vmatprep.subr.mxu0 0.0
    %2250 = vmatpush1.msra.mxu0 0.0
    %2251 = vmatprep.subr.mxu0 0.0
    %2252 = vmatpush1.msra.mxu0 0.0
    %2253 = vmatprep.subr.mxu0 0.0
    %2254 = vmatpush1.msra.mxu0 0.0
    %2255 = vmatprep.subr.mxu0 0.0
    %2256 = vmatpush1.msra.mxu0 0.0
    %2257 = vmatprep.subr.mxu0 0.0
    %2258 = vmatpush1.msra.mxu0 0.0
    %2259 = vmatprep.subr.mxu0 0.0
    %2260 = vmatpush1.msra.mxu0 0.0
    %2261 = vmatprep.subr.mxu0 0.0
    %2262 = vmatpush1.msra.mxu0 0.0
    %2263 = vmatprep.subr.mxu0 0.0
    %2264 = vmatpush1.msra.mxu0 0.0
    %2265 = vmatprep.subr.mxu0 0.0
    %2266 = vmatpush1.msra.mxu0 0.0
    %2267 = vmatprep.subr.mxu0 0.0
    %2268 = vmatpush1.msra.mxu0 0.0
    %2269 = vmatprep.subr.mxu0 0.0
    %2270 = vmatpush1.msra.mxu0 0.0
    %2271 = vmatprep.mubr.f32.mxu0 0.0
    %2272 = vmatmul.mubr.f32.gmra.mrb[0].mxu0 %v2205
    %v2273 = vpop.f32.mrb[0].mxu0
    %v2274 = vadd.f32 %v2203, %v2273
    %v2275 = vpop.f32.mrb[0].mxu0
    %2276 = vdwg.mxu0
    %v2277 = vmul.f32 %v2274, 0.5
    %v2278 = vmul.f32 %v2274, 0.044715
    %v2279 = vmul.f32 %v2278, %v2274
    %v2280 = vmul.f32 %v2279, %v2274
    %v2281 = vadd.f32 %v2274, %v2280
    %v2282 = vmul.f32 %v2281, 0.7978846
    %v2283 = vtanh.pop %v2282
    %v2284 = vadd.f32 %v2283, 1.0
    %v2285 = vmul.f32 %v2277, %v2284
    %v2286 = vld [vmem:[#allocation2 + $0x108] sm:$0xff]
    %v2287 = vld [vmem:[#allocation2 + $0x110] sm:$0xff]
    %v2288 = vld [vmem:[#allocation2 + $0x118] sm:$0xff]
    %v2289 = vld [vmem:[#allocation2 + $0x120] sm:$0xff]
    %v2290 = vld [vmem:[#allocation2 + $0x128] sm:$0xff]
    %v2291 = vld [vmem:[#allocation2 + $0x130] sm:$0xff]
    %v2292 = vld [vmem:[#allocation2 + $0x138] sm:$0xff]
    %v2293 = vld [vmem:[#allocation2 + $0x140] sm:$0xff]
    %v2294 = vld [vmem:[#allocation2 + $0x14d] sm:$0x1]
    %v2295 = vlaneseq
    %v2296 = vshrl.u32 %v2295, 7
    %v2297 = vsub.s32 0, %v2296
    %v2298 = vrot.slane %v2294, %v2297
    %v2300 = vsel %vm1005, %v2285, 0
    %2302 = vmatprep.subr.mxu0 0.0
    %2303 = vmatpush1.msra.mxu0 %v2286
    %2304 = vmatprep.subr.mxu0 0.0
    %2305 = vmatpush1.msra.mxu0 %v2287
    %2306 = vmatprep.subr.mxu0 0.0
    %2307 = vmatpush1.msra.mxu0 %v2288
    %2308 = vmatprep.subr.mxu0 0.0
    %2309 = vmatpush1.msra.mxu0 %v2289
    %2310 = vmatprep.subr.mxu0 0.0
    %2311 = vmatpush1.msra.mxu0 %v2290
    %2312 = vmatprep.subr.mxu0 0.0
    %2313 = vmatpush1.msra.mxu0 %v2291
    %2314 = vmatprep.subr.mxu0 0.0
    %2315 = vmatpush1.msra.mxu0 %v2292
    %2316 = vmatprep.subr.mxu0 0.0
    %2317 = vmatpush1.msra.mxu0 %v2293
    %2318 = vmatprep.subr.mxu0 0.0
    %2319 = vmatpush1.msra.mxu0 0.0
    %2320 = vmatprep.subr.mxu0 0.0
    %2321 = vmatpush1.msra.mxu0 0.0
    %2322 = vmatprep.subr.mxu0 0.0
    %2323 = vmatpush1.msra.mxu0 0.0
    %2324 = vmatprep.subr.mxu0 0.0
    %2325 = vmatpush1.msra.mxu0 0.0
    %2326 = vmatprep.subr.mxu0 0.0
    %2327 = vmatpush1.msra.mxu0 0.0
    %2328 = vmatprep.subr.mxu0 0.0
    %2329 = vmatpush1.msra.mxu0 0.0
    %2330 = vmatprep.subr.mxu0 0.0
    %2331 = vmatpush1.msra.mxu0 0.0
    %2332 = vmatprep.subr.mxu0 0.0
    %2333 = vmatpush1.msra.mxu0 0.0
    %2334 = vmatprep.subr.mxu0 0.0
    %2335 = vmatpush1.msra.mxu0 0.0
    %2336 = vmatprep.subr.mxu0 0.0
    %2337 = vmatpush1.msra.mxu0 0.0
    %2338 = vmatprep.subr.mxu0 0.0
    %2339 = vmatpush1.msra.mxu0 0.0
    %2340 = vmatprep.subr.mxu0 0.0
    %2341 = vmatpush1.msra.mxu0 0.0
    %2342 = vmatprep.subr.mxu0 0.0
    %2343 = vmatpush1.msra.mxu0 0.0
    %2344 = vmatprep.subr.mxu0 0.0
    %2345 = vmatpush1.msra.mxu0 0.0
    %2346 = vmatprep.subr.mxu0 0.0
    %2347 = vmatpush1.msra.mxu0 0.0
    %2348 = vmatprep.subr.mxu0 0.0
    %2349 = vmatpush1.msra.mxu0 0.0
    %2350 = vmatprep.subr.mxu0 0.0
    %2351 = vmatpush1.msra.mxu0 0.0
    %2352 = vmatprep.subr.mxu0 0.0
    %2353 = vmatpush1.msra.mxu0 0.0
    %2354 = vmatprep.subr.mxu0 0.0
    %2355 = vmatpush1.msra.mxu0 0.0
    %2356 = vmatprep.subr.mxu0 0.0
    %2357 = vmatpush1.msra.mxu0 0.0
    %2358 = vmatprep.subr.mxu0 0.0
    %2359 = vmatpush1.msra.mxu0 0.0
    %2360 = vmatprep.subr.mxu0 0.0
    %2361 = vmatpush1.msra.mxu0 0.0
    %2362 = vmatprep.subr.mxu0 0.0
    %2363 = vmatpush1.msra.mxu0 0.0
    %2364 = vmatprep.subr.mxu0 0.0
    %2365 = vmatpush1.msra.mxu0 0.0
    %2366 = vmatprep.mubr.f32.mxu0 0.0
    %2367 = vmatmul.mubr.f32.gmra.mrb[0].mxu0 %v2300
    %v2368 = vpop.f32.mrb[0].mxu0
    %v2369 = vadd.f32 %v2298, %v2368
    %v2370 = vpop.f32.mrb[0].mxu0
    %2371 = vdwg.mxu0
    %v2372 = vadd.f32 %v2369, %v1329
    %v2373 = vadd.f32 %v2372, %v2194
    %v2374 = vld [vmem:[#allocation2 + $0x14e] sm:$0x1]
    %v2375 = vld [vmem:[#allocation2 + $0x14f] sm:$0x1]
    %v2376 = vsel %vm40, %v2373, 0.0
    %2377 = vadd.xlane.f32.xlu0 %v2376
    %v2378 = vpop.xlane.xlu0 %2377
    %v2379 = vmul.f32 %v2378, %v880
    %v2380 = vsub.f32 %v2373, %v2379
    %v2381 = vmul.f32 %v2380, %v2380
    %v2382 = vsel %vm40, %v2381, 0.0
    %2383 = vadd.xlane.f32.xlu0 %v2382
    %v2384 = vpop.xlane.xlu0 %2383
    %v2385 = vmul.f32 %v2384, %v880
    %v2386 = vadd.f32 %v2385, 1e-12
    %v2387 = vrsqrt.pop %v2386
    %v2388 = vmul.f32 %v2380, %v2387
    %v2389 = vlaneseq
    %v2390 = vshrl.u32 %v2389, 7
    %v2391 = vsub.s32 0, %v2390
    %v2392 = vrot.slane %v2374, %v2391
    %v2393 = vmul.f32 %v2388, %v2392
    %v2394 = vlaneseq
    %v2395 = vshrl.u32 %v2394, 7
    %v2396 = vsub.s32 0, %v2395
    %v2397 = vrot.slane %v2375, %v2396
    %v2398 = vadd.f32 %v2393, %v2397
    %2400 = vrot.lane.b32.xlu0 %v2398, 32
    %v2401 = vpop.permute.xlu0 %2400
    %v2403 = vsel %vm40, %v1105, %v2401
    %v2404 = vsel %vm1005, %v2403, 0.0
    %2405 = vst [vmem:[%s2] sm:$0xff] %v2404
    // Predicated region
    $region14: #{bert_encoder_forward.1} parent=1 // pred_check
      _
    $region15: #{bert_encoder_forward.1} parent=1 // pred_check_branch
      %2407 = sbr.rel (0) target = $region17
    $region16: #{bert_encoder_forward.1} parent=1 // pred_region
      _
    $region17: #{bert_encoder_forward.1} parent=1 // pred_fallthru
      _
    // Predicated region
    $region18: #{bert_encoder_forward.1} parent=1 // pred_check
      _
    $region19: #{bert_encoder_forward.1} parent=1 // pred_check_branch
      %2409 = sbr.rel (0) target = $region21
    $region20: #{bert_encoder_forward.1} parent=1 // pred_region
      _
    $region21: #{bert_encoder_forward.1} parent=1 // pred_fallthru
      _
    %2410 = vsyncpa [#allocation3], 1

</llo_original>
